<compile_context>
chip_gen: v6e
topology: v6e:2x2x1
jax: 0.10.0
libtpu: 0.0.40
codegen_flags: <defaults>
</compile_context>

<pallas_src>
import functools
import numpy as np
import jax
import jax.numpy as jnp
from jax.experimental import pallas as pl
from jax.experimental.pallas import tpu as pltpu


def _osg_kernel(coords_ref, feats_ref, w1c_ref, w1f_ref, b1_ref, w2_ref, b2_ref,
                grid_ref, inv_beta_ref, out_ref, *, grid_res, dhw_chunk, c_out):
    Dg = Hg = Wg = grid_res
    coords_t = coords_ref[0]                       # (3, TM)  transposed coords
    feats = feats_ref[0]                           # (P, TM, F)
    TM = coords_t.shape[1]

    # ---------------- MLP (transposed: channels on sublanes, points on lanes) -----------
    fsum = jnp.sum(feats, axis=0)                  # (TM, F); 1/P is folded into w1f
    h_t = (jnp.dot(w1c_ref[...], coords_t, preferred_element_type=jnp.float32)
           + jax.lax.dot_general(w1f_ref[...], fsum,
                                 dimension_numbers=(((1,), (1,)), ((), ())),
                                 preferred_element_type=jnp.float32)
           + b1_ref[...])                          # (Hd, TM)
    # softplus (numerically stable)
    h_t = jnp.maximum(h_t, 0.0) + jnp.log(1.0 + jnp.exp(-jnp.abs(h_t)))
    y_t = (jnp.dot(w2_ref[...], h_t, preferred_element_type=jnp.float32)
           + b2_ref[...])                          # (C_out, TM)

    # row 0 -> delta_sdf (raw), rows 1.. -> rgb = sigmoid * 1.002 - 0.001
    sig = pl.reciprocal(1.0 + jnp.exp(-y_t), approx=True)
    rgbish = sig * (1.0 + 2 * 0.001) - 0.001
    row_idx = jax.lax.broadcasted_iota(jnp.int32, (c_out, TM), 0)
    head = jnp.where(row_idx == 0, y_t, rgbish)    # (C_out, TM)

    # ---------- trilinear grid_sample (align_corners=True, padding_mode='border') --------
    gx = coords_t[0:1, :]                          # x -> W
    gy = coords_t[1:2, :]                          # y -> H
    gz = coords_t[2:3, :]                          # z -> D
    ix = jnp.clip((gx + 1.0) * (0.5 * (Wg - 1)), 0.0, Wg - 1.0)
    iy = jnp.clip((gy + 1.0) * (0.5 * (Hg - 1)), 0.0, Hg - 1.0)
    iz = jnp.clip((gz + 1.0) * (0.5 * (Dg - 1)), 0.0, Dg - 1.0)
    x0f = jnp.floor(ix); y0f = jnp.floor(iy); z0f = jnp.floor(iz)
    fx = ix - x0f; fy = iy - y0f; fz = iz - z0f
    x0 = x0f.astype(jnp.int32); x1 = jnp.minimum(x0 + 1, Wg - 1)
    y0 = y0f.astype(jnp.int32); y1 = jnp.minimum(y0 + 1, Hg - 1)
    z0 = z0f.astype(jnp.int32); z1 = jnp.minimum(z0 + 1, Dg - 1)

    corners = []                                   # 8 x ((1,TM) flat index, (1,TM) weight)
    for zc, wz in ((z0, 1.0 - fz), (z1, fz)):
        for yc, wy in ((y0, 1.0 - fy), (y1, fy)):
            zy = (zc * Hg + yc) * Wg
            wzy = wz * wy
            for xc, wx in ((x0, 1.0 - fx), (x1, fx)):
                corners.append((zy + xc, wzy * wx))

    def gather_chunk(c):
        # Accumulate all 8 corner weights into one (chunk, TM) mask, then one MXU dot
        # against the grid chunk performs the gather-reduce (single reduction total).
        base = c * dhw_chunk
        cell = jax.lax.broadcasted_iota(jnp.int32, (dhw_chunk, TM), 0) + base
        w_total = jnp.zeros((dhw_chunk, TM), jnp.float32)
        for flat_c, w_c in corners:
            w_total = w_total + jnp.where(cell == flat_c, w_c, 0.0)
        g_row = grid_ref[pl.ds(c, 1), :]           # (1, chunk)
        return jnp.dot(g_row, w_total, preferred_element_type=jnp.float32)  # (1, TM)

    n_chunks = grid_ref.shape[0]
    if n_chunks == 1:
        sdf_t = gather_chunk(0)
    else:
        sdf_t = jax.lax.fori_loop(0, n_chunks,
                                  lambda c, acc: acc + gather_chunk(c),
                                  jnp.zeros((1, TM), jnp.float32))

    inv_beta = inv_beta_ref[0]                     # scalar from SMEM (= 1/beta)
    sigma_t = pl.reciprocal(1.0 + jnp.exp(sdf_t * inv_beta), approx=True) * inv_beta

    # one lane-dense output block: rows = [delta_sdf | rgb (C_out-1) | sigma]
    out_ref[0, 0:c_out, :] = head
    out_ref[0, c_out:c_out + 1, :] = sigma_t


def _round_up(x, m):
    return ((x + m - 1) // m) * m


def _pick_tile_m(M):
    for cand in (512, 256, 128):
        if M % cand == 0:
            return cand
    raise ValueError("M must be a multiple of 128 (pad the sample dimension).")


def osg_decoder_forward(coords, feats, w1, b1, w2, b2, sdf_grid, sigmoid_beta,
                        *, tile_m=None):
    """coords (N,M,3), feats (N,P,M,F), w1 (3+F,Hd), w2 (Hd,C_out), sdf_grid (1,1,D,H,W)."""
    N, M, _ = coords.shape
    _, P, _, F = feats.shape
    Hd = w1.shape[1]
    C_out = w2.shape[1]
    C_total = C_out + 1
    Dg, Hg, Wg = sdf_grid.shape[-3:]
    assert Dg == Hg == Wg, "kernel assumes a cubic SDF grid"
    if tile_m is None:
        tile_m = _pick_tile_m(M)
    assert M % tile_m == 0

    # ---- layout / parameter prep (cheap XLA-side plumbing) ----
    coords_t = jnp.swapaxes(coords, 1, 2).astype(jnp.float32)     # (N, 3, M), lane-dense
    w1_t = jnp.asarray(w1, jnp.float32).T                         # (Hd, 3+F)
    w1c_t = w1_t[:, :3]                                           # (Hd, 3)
    w1f_t = w1_t[:, 3:] / float(P)                                # fold 1/P of the plane mean
    b1c = jnp.asarray(b1, jnp.float32).reshape(Hd, 1)
    w2_t = jnp.asarray(w2, jnp.float32).T                         # (C_out, Hd)
    b2c = jnp.asarray(b2, jnp.float32).reshape(C_out, 1)
    inv_beta = (1.0 / jnp.asarray(sigmoid_beta, jnp.float32)).reshape(1)

    # SDF grid flattened row-major over (D,H,W) and chunked along DHW so the per-chunk
    # (chunk, tile_m) gather temporaries stay bounded (<~4 MiB each).
    # TODO(synk): for very large grids (DHW*4B >> VMEM) keep the grid in HBM
    # (memory_space=pl.ANY) and DMA per-chunk instead of a resident VMEM block.
    DHW = Dg * Hg * Wg
    mask_budget = 4 * 2**20
    chunk_cap = max(128, (mask_budget // (4 * tile_m)) // 128 * 128)
    chunk = min(_round_up(DHW, 128), chunk_cap)
    dhw_pad = _round_up(DHW, chunk)
    grid2d = jnp.pad(sdf_grid.reshape(-1).astype(jnp.float32),
                     (0, dhw_pad - DHW)).reshape(dhw_pad // chunk, chunk)
    n_chunks = grid2d.shape[0]

    kernel = functools.partial(_osg_kernel, grid_res=Dg, dhw_chunk=chunk, c_out=C_out)

    # advisory cost for the XLA scheduler
    flops = int(N * M * (2 * (3 + F) * Hd + 2 * Hd * C_out + 20 * dhw_pad))
    transcendentals = int(N * M * (Hd + C_out + 2))
    bytes_accessed = int(4 * (N * M * 3 + N * P * M * F + dhw_pad
                              + N * C_total * M + Hd * (4 + F) + C_out * (Hd + 1)))

    # VMEM budget: double-buffered I/O blocks + grid + weights + gather temporaries.
    est_vmem = 4 * (2 * (3 * tile_m + P * tile_m * F + C_total * tile_m)
                    + n_chunks * chunk
                    + Hd * (4 + F) + C_out * (Hd + 1)
                    + 6 * chunk * tile_m)
    vmem_limit = int(min(max(est_vmem, 32 * 2**20), 64 * 2**20))

    out = pl.pallas_call(
        kernel,
        out_shape=jax.ShapeDtypeStruct((N, C_total, M), jnp.float32),
        grid=(N, M // tile_m),
        in_specs=[
            pl.BlockSpec((1, 3, tile_m), lambda n, m: (n, 0, m)),
            pl.BlockSpec((1, P, tile_m, F), lambda n, m: (n, 0, m, 0)),
            pl.BlockSpec((Hd, 3), lambda n, m: (0, 0)),
            pl.BlockSpec((Hd, F), lambda n, m: (0, 0)),
            pl.BlockSpec((Hd, 1), lambda n, m: (0, 0)),
            pl.BlockSpec((C_out, Hd), lambda n, m: (0, 0)),
            pl.BlockSpec((C_out, 1), lambda n, m: (0, 0)),
            pl.BlockSpec((n_chunks, chunk), lambda n, m: (0, 0)),
            pl.BlockSpec(memory_space=pltpu.MemorySpace.SMEM),
        ],
        out_specs=pl.BlockSpec((1, C_total, tile_m), lambda n, m: (n, 0, m)),
        compiler_params=pltpu.CompilerParams(
            dimension_semantics=("parallel", "parallel"),
            vmem_limit_bytes=vmem_limit),
        cost_estimate=pl.CostEstimate(flops=flops, transcendentals=transcendentals,
                                      bytes_accessed=bytes_accessed),
    )(coords_t, feats.astype(jnp.float32), w1c_t, w1f_t, b1c, w2_t, b2c, grid2d, inv_beta)

    # slice the merged lane-dense output back to the PyTorch layout
    dsdf = jnp.swapaxes(out[:, 0:1, :], 1, 2)            # (N, M, 1)
    rgb = jnp.swapaxes(out[:, 1:C_out, :], 1, 2)         # (N, M, C_out-1)
    sigma = jnp.swapaxes(out[:, C_out:C_total, :], 1, 2) # (N, M, 1)
    return {"rgb": rgb, "sigma": sigma, "delta_sdf": dsdf}


def ref_forward(coords, feats, w1, b1, w2, b2, sdf_grid, beta):
    """Pure-JAX reference mirroring the PyTorch forward."""
    fmean = feats.mean(axis=1)
    x = jnp.concatenate([coords, fmean], axis=-1)
    h = jax.nn.softplus(x @ w1 + b1)
    y = h @ w2 + b2
    rgb = jax.nn.sigmoid(y[..., 1:]) * (1 + 2 * 0.001) - 0.001
    dsdf = y[..., 0:1]

    Dg, Hg, Wg = sdf_grid.shape[-3:]
    g = sdf_grid[0, 0]
    ix = jnp.clip((coords[..., 0] + 1) * 0.5 * (Wg - 1), 0, Wg - 1)
    iy = jnp.clip((coords[..., 1] + 1) * 0.5 * (Hg - 1), 0, Hg - 1)
    iz = jnp.clip((coords[..., 2] + 1) * 0.5 * (Dg - 1), 0, Dg - 1)
    x0 = jnp.floor(ix).astype(jnp.int32); x1 = jnp.minimum(x0 + 1, Wg - 1)
    y0 = jnp.floor(iy).astype(jnp.int32); y1 = jnp.minimum(y0 + 1, Hg - 1)
    z0 = jnp.floor(iz).astype(jnp.int32); z1 = jnp.minimum(z0 + 1, Dg - 1)
    fx = ix - x0; fy = iy - y0; fz = iz - z0
    at = lambda zc, yc, xc: g[zc, yc, xc]
    v = (at(z0, y0, x0) * (1 - fz) * (1 - fy) * (1 - fx)
         + at(z0, y0, x1) * (1 - fz) * (1 - fy) * fx
         + at(z0, y1, x0) * (1 - fz) * fy * (1 - fx)
         + at(z0, y1, x1) * (1 - fz) * fy * fx
         + at(z1, y0, x0) * fz * (1 - fy) * (1 - fx)
         + at(z1, y0, x1) * fz * (1 - fy) * fx
         + at(z1, y1, x0) * fz * fy * (1 - fx)
         + at(z1, y1, x1) * fz * fy * fx)
    sdf = v[..., None]
    sigma = jax.nn.sigmoid(-sdf / beta) / beta
    return {"rgb": rgb, "sigma": sigma, "delta_sdf": dsdf}


if __name__ == "__main__":
    # Small shapes consistent with the module: n_features=32, decoder_output_dim=32
    N, P, M, F = 2, 3, 256, 32
    HIDDEN = 64
    C_IN = F + 3
    C_OUT = 1 + 32
    LR_MUL = 1.0
    R = 8  # synthetic SDF grid resolution

    key = jax.random.PRNGKey(0)
    k1, k2, kc, kf = jax.random.split(key, 4)

    # FullyConnectedLayer: weight ~ randn(out,in)/lr_mul, gain = lr_mul/sqrt(in), bias_init=0
    w1_raw = jax.random.normal(k1, (HIDDEN, C_IN), jnp.float32) / LR_MUL
    w2_raw = jax.random.normal(k2, (C_OUT, HIDDEN), jnp.float32) / LR_MUL
    w1 = (w1_raw * (LR_MUL / np.sqrt(C_IN))).T     # effective (C_IN, HIDDEN)
    w2 = (w2_raw * (LR_MUL / np.sqrt(HIDDEN))).T   # effective (HIDDEN, C_OUT)
    b1 = jnp.zeros((HIDDEN,), jnp.float32)
    b2 = jnp.zeros((C_OUT,), jnp.float32)
    sigmoid_beta = jnp.float32(0.1)

    # TODO(synk): 'precomputed_sdf_y-0.3.npy' is not loadable here; use a deterministic
    # synthetic sphere SDF grid with the same (1,1,D,H,W) layout instead.
    lin = jnp.linspace(-1.0, 1.0, R)
    zz, yy, xx = jnp.meshgrid(lin, lin, lin, indexing="ij")   # (D,H,W) = (z,y,x)
    sdf_grid = (jnp.sqrt(xx ** 2 + (yy + 0.3) ** 2 + zz ** 2) - 0.5)
    sdf_grid = sdf_grid.reshape(1, 1, R, R, R).astype(jnp.float32)

    coords = jax.random.uniform(kc, (N, M, 3), jnp.float32, minval=-1.0, maxval=1.0)
    feats = 0.5 * jax.random.normal(kf, (N, P, M, F), jnp.float32)

    out = osg_decoder_forward(coords, feats, w1, b1, w2, b2, sdf_grid, sigmoid_beta)
    jax.block_until_ready(out)

    ref = ref_forward(coords, feats, w1, b1, w2, b2, sdf_grid, sigmoid_beta)
    for name in ("rgb", "sigma", "delta_sdf"):
        np.testing.assert_allclose(np.asarray(out[name]), np.asarray(ref[name]),
                                   rtol=5e-2, atol=5e-2)
    assert out["rgb"].shape == (N, M, C_OUT - 1)
    assert out["sigma"].shape == (N, M, 1)
    assert out["delta_sdf"].shape == (N, M, 1)
    print("KERNEL_OK")
</pallas_src>

<mosaic_0001>
module attributes {stable_mosaic.version = 11 : i64} {
  func.func @_osg_kernel(%arg0: i32, %arg1: i32, %arg2: memref<1x3x256xf32, #tpu.memory_space<vmem>>, %arg3: memref<1x3x256x32xf32, #tpu.memory_space<vmem>>, %arg4: memref<64x3xf32, #tpu.memory_space<vmem>>, %arg5: memref<64x32xf32, #tpu.memory_space<vmem>>, %arg6: memref<64x1xf32, #tpu.memory_space<vmem>>, %arg7: memref<33x64xf32, #tpu.memory_space<vmem>>, %arg8: memref<33x1xf32, #tpu.memory_space<vmem>>, %arg9: memref<1x512xf32, #tpu.memory_space<vmem>>, %arg10: memref<1xf32, #tpu.memory_space<smem>>, %arg11: memref<1x34x256xf32, #tpu.memory_space<vmem>>) attributes {dimension_semantics = [#tpu.dimension_semantics<parallel>, #tpu.dimension_semantics<parallel>], iteration_bounds = array<i64: 2, 1>, scalar_prefetch = 0 : i64, scratch_operands = 0 : i64, tpu.core_type = #tpu.core_type<tc>, window_params = [{transform_indices = @transform_0, window_bounds = array<i64: 1, 3, 256>}, {transform_indices = @transform_1, window_bounds = array<i64: 1, 3, 256, 32>}, {pipeline_mode = #tpu.pipeline_mode<synchronous>, transform_indices = @transform_2, window_bounds = array<i64: 64, 3>}, {pipeline_mode = #tpu.pipeline_mode<synchronous>, transform_indices = @transform_3, window_bounds = array<i64: 64, 32>}, {pipeline_mode = #tpu.pipeline_mode<synchronous>, transform_indices = @transform_4, window_bounds = array<i64: 64, 1>}, {pipeline_mode = #tpu.pipeline_mode<synchronous>, transform_indices = @transform_5, window_bounds = array<i64: 33, 64>}, {pipeline_mode = #tpu.pipeline_mode<synchronous>, transform_indices = @transform_6, window_bounds = array<i64: 33, 1>}, {pipeline_mode = #tpu.pipeline_mode<synchronous>, transform_indices = @transform_7, window_bounds = array<i64: 1, 512>}, {transform_indices = @transform_8, window_bounds = array<i64: 1>}, {transform_indices = @transform_9, window_bounds = array<i64: 1, 34, 256>}]} {
    %c0 = arith.constant 0 : index
    %c0_0 = arith.constant 0 : index
    %c0_1 = arith.constant 0 : index
    %0 = vector.load %arg2[%c0, %c0_0, %c0_1] : memref<1x3x256xf32, #tpu.memory_space<vmem>>, vector<1x3x256xf32>
    %1 = vector.shape_cast %0 : vector<1x3x256xf32> to vector<3x256xf32>
    %c0_2 = arith.constant 0 : index
    %c0_3 = arith.constant 0 : index
    %c0_4 = arith.constant 0 : index
    %c0_5 = arith.constant 0 : index
    %2 = vector.load %arg3[%c0_2, %c0_3, %c0_4, %c0_5] : memref<1x3x256x32xf32, #tpu.memory_space<vmem>>, vector<1x3x256x32xf32>
    %3 = vector.shape_cast %2 : vector<1x3x256x32xf32> to vector<3x256x32xf32>
    %cst = arith.constant dense<0.000000e+00> : vector<256x32xf32>
    %4 = vector.multi_reduction <add>, %3, %cst [0] : vector<3x256x32xf32> to vector<256x32xf32>
    %c0_6 = arith.constant 0 : index
    %c0_7 = arith.constant 0 : index
    %5 = vector.load %arg4[%c0_6, %c0_7] : memref<64x3xf32, #tpu.memory_space<vmem>>, vector<64x3xf32>
    %cst_8 = arith.constant dense<0.000000e+00> : vector<64x256xf32>
    %6 = tpu.matmul %5, %1, %cst_8 {dimension_numbers = #tpu.dot_dimension_numbers<[1], [0], [0], [1], [0, 0, 1, 1], [], []>} : vector<64x3xf32>, vector<3x256xf32>, vector<64x256xf32> -> vector<64x256xf32>
    %c0_9 = arith.constant 0 : index
    %c0_10 = arith.constant 0 : index
    %7 = vector.load %arg5[%c0_9, %c0_10] : memref<64x32xf32, #tpu.memory_space<vmem>>, vector<64x32xf32>
    %cst_11 = arith.constant dense<0.000000e+00> : vector<64x256xf32>
    %8 = tpu.matmul %7, %4, %cst_11 {dimension_numbers = #tpu.dot_dimension_numbers<[1], [1], [0], [0], [0, 0, 1, 0], [], []>} : vector<64x32xf32>, vector<256x32xf32>, vector<64x256xf32> -> vector<64x256xf32>
    %9 = arith.addf %6, %8 : vector<64x256xf32>
    %c0_12 = arith.constant 0 : index
    %c0_13 = arith.constant 0 : index
    %10 = vector.load %arg6[%c0_12, %c0_13] : memref<64x1xf32, #tpu.memory_space<vmem>>, vector<64x1xf32>
    %11 = vector.broadcast %10 : vector<64x1xf32> to vector<64x256xf32>
    %12 = arith.addf %9, %11 : vector<64x256xf32>
    %cst_14 = arith.constant 0.000000e+00 : f32
    %13 = vector.broadcast %cst_14 : f32 to vector<64x256xf32>
    %14 = arith.maximumf %12, %13 : vector<64x256xf32>
    %15 = math.absf %12 : vector<64x256xf32>
    %cst_15 = arith.constant 0.000000e+00 : f32
    %16 = vector.broadcast %cst_15 : f32 to vector<64x256xf32>
    %17 = arith.subf %16, %15 : vector<64x256xf32>
    %18 = math.exp %17 : vector<64x256xf32>
    %cst_16 = arith.constant 1.000000e+00 : f32
    %19 = vector.broadcast %cst_16 : f32 to vector<64x256xf32>
    %20 = arith.addf %19, %18 : vector<64x256xf32>
    %21 = math.log %20 : vector<64x256xf32>
    %22 = arith.addf %14, %21 : vector<64x256xf32>
    %c0_17 = arith.constant 0 : index
    %c0_18 = arith.constant 0 : index
    %23 = vector.load %arg7[%c0_17, %c0_18] : memref<33x64xf32, #tpu.memory_space<vmem>>, vector<33x64xf32>
    %cst_19 = arith.constant dense<0.000000e+00> : vector<33x256xf32>
    %24 = tpu.matmul %23, %22, %cst_19 {dimension_numbers = #tpu.dot_dimension_numbers<[1], [0], [0], [1], [0, 0, 1, 1], [], []>} : vector<33x64xf32>, vector<64x256xf32>, vector<33x256xf32> -> vector<33x256xf32>
    %c0_20 = arith.constant 0 : index
    %c0_21 = arith.constant 0 : index
    %25 = vector.load %arg8[%c0_20, %c0_21] : memref<33x1xf32, #tpu.memory_space<vmem>>, vector<33x1xf32>
    %26 = vector.broadcast %25 : vector<33x1xf32> to vector<33x256xf32>
    %27 = arith.addf %24, %26 : vector<33x256xf32>
    %cst_22 = arith.constant 0.000000e+00 : f32
    %28 = vector.broadcast %cst_22 : f32 to vector<33x256xf32>
    %29 = arith.subf %28, %27 : vector<33x256xf32>
    %30 = math.exp %29 : vector<33x256xf32>
    %cst_23 = arith.constant 1.000000e+00 : f32
    %31 = vector.broadcast %cst_23 : f32 to vector<33x256xf32>
    %32 = arith.addf %31, %30 : vector<33x256xf32>
    %33 = tpu.reciprocal %32 {approx = true} : vector<33x256xf32> -> vector<33x256xf32>
    %cst_24 = arith.constant 1.002000e+00 : f32
    %34 = vector.broadcast %cst_24 : f32 to vector<33x256xf32>
    %35 = arith.mulf %33, %34 : vector<33x256xf32>
    %cst_25 = arith.constant 1.000000e-03 : f32
    %36 = vector.broadcast %cst_25 : f32 to vector<33x256xf32>
    %37 = arith.subf %35, %36 : vector<33x256xf32>
    %38 = tpu.iota {dimensions = array<i32: 0>} : vector<33x256xi32>
    %c0_i32 = arith.constant 0 : i32
    %39 = vector.broadcast %c0_i32 : i32 to vector<33x256xi32>
    %40 = arith.cmpi eq, %38, %39 : vector<33x256xi32>
    %41 = arith.select %40, %27, %37 : vector<33x256xi1>, vector<33x256xf32>
    %42 = vector.extract_strided_slice %1 {offsets = [0, 0], sizes = [1, 256], strides = [1, 1]} : vector<3x256xf32> to vector<1x256xf32>
    %43 = vector.extract_strided_slice %1 {offsets = [1, 0], sizes = [1, 256], strides = [1, 1]} : vector<3x256xf32> to vector<1x256xf32>
    %44 = vector.extract_strided_slice %1 {offsets = [2, 0], sizes = [1, 256], strides = [1, 1]} : vector<3x256xf32> to vector<1x256xf32>
    %cst_26 = arith.constant 1.000000e+00 : f32
    %45 = vector.broadcast %cst_26 : f32 to vector<1x256xf32>
    %46 = arith.addf %42, %45 : vector<1x256xf32>
    %cst_27 = arith.constant 3.500000e+00 : f32
    %47 = vector.broadcast %cst_27 : f32 to vector<1x256xf32>
    %48 = arith.mulf %46, %47 : vector<1x256xf32>
    %cst_28 = arith.constant 0.000000e+00 : f32
    %cst_29 = arith.constant 7.000000e+00 : f32
    %49 = vector.broadcast %cst_28 : f32 to vector<1x256xf32>
    %50 = arith.maximumf %49, %48 : vector<1x256xf32>
    %51 = vector.broadcast %cst_29 : f32 to vector<1x256xf32>
    %52 = arith.minimumf %51, %50 : vector<1x256xf32>
    %cst_30 = arith.constant 1.000000e+00 : f32
    %53 = vector.broadcast %cst_30 : f32 to vector<1x256xf32>
    %54 = arith.addf %43, %53 : vector<1x256xf32>
    %cst_31 = arith.constant 3.500000e+00 : f32
    %55 = vector.broadcast %cst_31 : f32 to vector<1x256xf32>
    %56 = arith.mulf %54, %55 : vector<1x256xf32>
    %cst_32 = arith.constant 0.000000e+00 : f32
    %cst_33 = arith.constant 7.000000e+00 : f32
    %57 = vector.broadcast %cst_32 : f32 to vector<1x256xf32>
    %58 = arith.maximumf %57, %56 : vector<1x256xf32>
    %59 = vector.broadcast %cst_33 : f32 to vector<1x256xf32>
    %60 = arith.minimumf %59, %58 : vector<1x256xf32>
    %cst_34 = arith.constant 1.000000e+00 : f32
    %61 = vector.broadcast %cst_34 : f32 to vector<1x256xf32>
    %62 = arith.addf %44, %61 : vector<1x256xf32>
    %cst_35 = arith.constant 3.500000e+00 : f32
    %63 = vector.broadcast %cst_35 : f32 to vector<1x256xf32>
    %64 = arith.mulf %62, %63 : vector<1x256xf32>
    %cst_36 = arith.constant 0.000000e+00 : f32
    %cst_37 = arith.constant 7.000000e+00 : f32
    %65 = vector.broadcast %cst_36 : f32 to vector<1x256xf32>
    %66 = arith.maximumf %65, %64 : vector<1x256xf32>
    %67 = vector.broadcast %cst_37 : f32 to vector<1x256xf32>
    %68 = arith.minimumf %67, %66 : vector<1x256xf32>
    %69 = math.floor %52 : vector<1x256xf32>
    %70 = math.floor %60 : vector<1x256xf32>
    %71 = math.floor %68 : vector<1x256xf32>
    %72 = arith.subf %52, %69 : vector<1x256xf32>
    %73 = arith.subf %60, %70 : vector<1x256xf32>
    %74 = arith.subf %68, %71 : vector<1x256xf32>
    %75 = arith.fptosi %69 : vector<1x256xf32> to vector<1x256xi32>
    %c1_i32 = arith.constant 1 : i32
    %76 = vector.broadcast %c1_i32 : i32 to vector<1x256xi32>
    %77 = arith.addi %75, %76 : vector<1x256xi32>
    %c7_i32 = arith.constant 7 : i32
    %78 = vector.broadcast %c7_i32 : i32 to vector<1x256xi32>
    %79 = arith.minsi %77, %78 : vector<1x256xi32>
    %80 = arith.fptosi %70 : vector<1x256xf32> to vector<1x256xi32>
    %c1_i32_38 = arith.constant 1 : i32
    %81 = vector.broadcast %c1_i32_38 : i32 to vector<1x256xi32>
    %82 = arith.addi %80, %81 : vector<1x256xi32>
    %c7_i32_39 = arith.constant 7 : i32
    %83 = vector.broadcast %c7_i32_39 : i32 to vector<1x256xi32>
    %84 = arith.minsi %82, %83 : vector<1x256xi32>
    %85 = arith.fptosi %71 : vector<1x256xf32> to vector<1x256xi32>
    %c1_i32_40 = arith.constant 1 : i32
    %86 = vector.broadcast %c1_i32_40 : i32 to vector<1x256xi32>
    %87 = arith.addi %85, %86 : vector<1x256xi32>
    %c7_i32_41 = arith.constant 7 : i32
    %88 = vector.broadcast %c7_i32_41 : i32 to vector<1x256xi32>
    %89 = arith.minsi %87, %88 : vector<1x256xi32>
    %cst_42 = arith.constant 1.000000e+00 : f32
    %90 = vector.broadcast %cst_42 : f32 to vector<1x256xf32>
    %91 = arith.subf %90, %74 : vector<1x256xf32>
    %cst_43 = arith.constant 1.000000e+00 : f32
    %92 = vector.broadcast %cst_43 : f32 to vector<1x256xf32>
    %93 = arith.subf %92, %73 : vector<1x256xf32>
    %c8_i32 = arith.constant 8 : i32
    %94 = vector.broadcast %c8_i32 : i32 to vector<1x256xi32>
    %95 = arith.muli %85, %94 : vector<1x256xi32>
    %96 = arith.addi %95, %80 : vector<1x256xi32>
    %c8_i32_44 = arith.constant 8 : i32
    %97 = vector.broadcast %c8_i32_44 : i32 to vector<1x256xi32>
    %98 = arith.muli %96, %97 : vector<1x256xi32>
    %99 = arith.mulf %91, %93 : vector<1x256xf32>
    %cst_45 = arith.constant 1.000000e+00 : f32
    %100 = vector.broadcast %cst_45 : f32 to vector<1x256xf32>
    %101 = arith.subf %100, %72 : vector<1x256xf32>
    %102 = arith.addi %98, %75 : vector<1x256xi32>
    %103 = arith.mulf %99, %101 : vector<1x256xf32>
    %104 = arith.addi %98, %79 : vector<1x256xi32>
    %105 = arith.mulf %99, %72 : vector<1x256xf32>
    %c8_i32_46 = arith.constant 8 : i32
    %106 = vector.broadcast %c8_i32_46 : i32 to vector<1x256xi32>
    %107 = arith.muli %85, %106 : vector<1x256xi32>
    %108 = arith.addi %107, %84 : vector<1x256xi32>
    %c8_i32_47 = arith.constant 8 : i32
    %109 = vector.broadcast %c8_i32_47 : i32 to vector<1x256xi32>
    %110 = arith.muli %108, %109 : vector<1x256xi32>
    %111 = arith.mulf %91, %73 : vector<1x256xf32>
    %cst_48 = arith.constant 1.000000e+00 : f32
    %112 = vector.broadcast %cst_48 : f32 to vector<1x256xf32>
    %113 = arith.subf %112, %72 : vector<1x256xf32>
    %114 = arith.addi %110, %75 : vector<1x256xi32>
    %115 = arith.mulf %111, %113 : vector<1x256xf32>
    %116 = arith.addi %110, %79 : vector<1x256xi32>
    %117 = arith.mulf %111, %72 : vector<1x256xf32>
    %cst_49 = arith.constant 1.000000e+00 : f32
    %118 = vector.broadcast %cst_49 : f32 to vector<1x256xf32>
    %119 = arith.subf %118, %73 : vector<1x256xf32>
    %c8_i32_50 = arith.constant 8 : i32
    %120 = vector.broadcast %c8_i32_50 : i32 to vector<1x256xi32>
    %121 = arith.muli %89, %120 : vector<1x256xi32>
    %122 = arith.addi %121, %80 : vector<1x256xi32>
    %c8_i32_51 = arith.constant 8 : i32
    %123 = vector.broadcast %c8_i32_51 : i32 to vector<1x256xi32>
    %124 = arith.muli %122, %123 : vector<1x256xi32>
    %125 = arith.mulf %74, %119 : vector<1x256xf32>
    %cst_52 = arith.constant 1.000000e+00 : f32
    %126 = vector.broadcast %cst_52 : f32 to vector<1x256xf32>
    %127 = arith.subf %126, %72 : vector<1x256xf32>
    %128 = arith.addi %124, %75 : vector<1x256xi32>
    %129 = arith.mulf %125, %127 : vector<1x256xf32>
    %130 = arith.addi %124, %79 : vector<1x256xi32>
    %131 = arith.mulf %125, %72 : vector<1x256xf32>
    %c8_i32_53 = arith.constant 8 : i32
    %132 = vector.broadcast %c8_i32_53 : i32 to vector<1x256xi32>
    %133 = arith.muli %89, %132 : vector<1x256xi32>
    %134 = arith.addi %133, %84 : vector<1x256xi32>
    %c8_i32_54 = arith.constant 8 : i32
    %135 = vector.broadcast %c8_i32_54 : i32 to vector<1x256xi32>
    %136 = arith.muli %134, %135 : vector<1x256xi32>
    %137 = arith.mulf %74, %73 : vector<1x256xf32>
    %cst_55 = arith.constant 1.000000e+00 : f32
    %138 = vector.broadcast %cst_55 : f32 to vector<1x256xf32>
    %139 = arith.subf %138, %72 : vector<1x256xf32>
    %140 = arith.addi %136, %75 : vector<1x256xi32>
    %141 = arith.mulf %137, %139 : vector<1x256xf32>
    %142 = arith.addi %136, %79 : vector<1x256xi32>
    %143 = arith.mulf %137, %72 : vector<1x256xf32>
    %144 = tpu.iota {dimensions = array<i32: 0>} : vector<512x256xi32>
    %c0_i32_56 = arith.constant 0 : i32
    %145 = vector.broadcast %c0_i32_56 : i32 to vector<512x256xi32>
    %146 = arith.addi %144, %145 : vector<512x256xi32>
    %cst_57 = arith.constant 0.000000e+00 : f32
    %147 = vector.broadcast %cst_57 : f32 to vector<512x256xf32>
    %148 = vector.broadcast %102 : vector<1x256xi32> to vector<512x256xi32>
    %149 = arith.cmpi eq, %146, %148 : vector<512x256xi32>
    %cst_58 = arith.constant 0.000000e+00 : f32
    %150 = vector.shape_cast %103 : vector<1x256xf32> to vector<1x256xf32>
    %151 = vector.broadcast %150 : vector<1x256xf32> to vector<512x256xf32>
    %152 = vector.broadcast %cst_58 : f32 to vector<512x256xf32>
    %153 = arith.select %149, %151, %152 : vector<512x256xi1>, vector<512x256xf32>
    %154 = arith.addf %147, %153 : vector<512x256xf32>
    %155 = vector.broadcast %104 : vector<1x256xi32> to vector<512x256xi32>
    %156 = arith.cmpi eq, %146, %155 : vector<512x256xi32>
    %cst_59 = arith.constant 0.000000e+00 : f32
    %157 = vector.shape_cast %105 : vector<1x256xf32> to vector<1x256xf32>
    %158 = vector.broadcast %157 : vector<1x256xf32> to vector<512x256xf32>
    %159 = vector.broadcast %cst_59 : f32 to vector<512x256xf32>
    %160 = arith.select %156, %158, %159 : vector<512x256xi1>, vector<512x256xf32>
    %161 = arith.addf %154, %160 : vector<512x256xf32>
    %162 = vector.broadcast %114 : vector<1x256xi32> to vector<512x256xi32>
    %163 = arith.cmpi eq, %146, %162 : vector<512x256xi32>
    %cst_60 = arith.constant 0.000000e+00 : f32
    %164 = vector.shape_cast %115 : vector<1x256xf32> to vector<1x256xf32>
    %165 = vector.broadcast %164 : vector<1x256xf32> to vector<512x256xf32>
    %166 = vector.broadcast %cst_60 : f32 to vector<512x256xf32>
    %167 = arith.select %163, %165, %166 : vector<512x256xi1>, vector<512x256xf32>
    %168 = arith.addf %161, %167 : vector<512x256xf32>
    %169 = vector.broadcast %116 : vector<1x256xi32> to vector<512x256xi32>
    %170 = arith.cmpi eq, %146, %169 : vector<512x256xi32>
    %cst_61 = arith.constant 0.000000e+00 : f32
    %171 = vector.shape_cast %117 : vector<1x256xf32> to vector<1x256xf32>
    %172 = vector.broadcast %171 : vector<1x256xf32> to vector<512x256xf32>
    %173 = vector.broadcast %cst_61 : f32 to vector<512x256xf32>
    %174 = arith.select %170, %172, %173 : vector<512x256xi1>, vector<512x256xf32>
    %175 = arith.addf %168, %174 : vector<512x256xf32>
    %176 = vector.broadcast %128 : vector<1x256xi32> to vector<512x256xi32>
    %177 = arith.cmpi eq, %146, %176 : vector<512x256xi32>
    %cst_62 = arith.constant 0.000000e+00 : f32
    %178 = vector.shape_cast %129 : vector<1x256xf32> to vector<1x256xf32>
    %179 = vector.broadcast %178 : vector<1x256xf32> to vector<512x256xf32>
    %180 = vector.broadcast %cst_62 : f32 to vector<512x256xf32>
    %181 = arith.select %177, %179, %180 : vector<512x256xi1>, vector<512x256xf32>
    %182 = arith.addf %175, %181 : vector<512x256xf32>
    %183 = vector.broadcast %130 : vector<1x256xi32> to vector<512x256xi32>
    %184 = arith.cmpi eq, %146, %183 : vector<512x256xi32>
    %cst_63 = arith.constant 0.000000e+00 : f32
    %185 = vector.shape_cast %131 : vector<1x256xf32> to vector<1x256xf32>
    %186 = vector.broadcast %185 : vector<1x256xf32> to vector<512x256xf32>
    %187 = vector.broadcast %cst_63 : f32 to vector<512x256xf32>
    %188 = arith.select %184, %186, %187 : vector<512x256xi1>, vector<512x256xf32>
    %189 = arith.addf %182, %188 : vector<512x256xf32>
    %190 = vector.broadcast %140 : vector<1x256xi32> to vector<512x256xi32>
    %191 = arith.cmpi eq, %146, %190 : vector<512x256xi32>
    %cst_64 = arith.constant 0.000000e+00 : f32
    %192 = vector.shape_cast %141 : vector<1x256xf32> to vector<1x256xf32>
    %193 = vector.broadcast %192 : vector<1x256xf32> to vector<512x256xf32>
    %194 = vector.broadcast %cst_64 : f32 to vector<512x256xf32>
    %195 = arith.select %191, %193, %194 : vector<512x256xi1>, vector<512x256xf32>
    %196 = arith.addf %189, %195 : vector<512x256xf32>
    %197 = vector.broadcast %142 : vector<1x256xi32> to vector<512x256xi32>
    %198 = arith.cmpi eq, %146, %197 : vector<512x256xi32>
    %cst_65 = arith.constant 0.000000e+00 : f32
    %199 = vector.shape_cast %143 : vector<1x256xf32> to vector<1x256xf32>
    %200 = vector.broadcast %199 : vector<1x256xf32> to vector<512x256xf32>
    %201 = vector.broadcast %cst_65 : f32 to vector<512x256xf32>
    %202 = arith.select %198, %200, %201 : vector<512x256xi1>, vector<512x256xf32>
    %203 = arith.addf %196, %202 : vector<512x256xf32>
    %c0_66 = arith.constant 0 : index
    %c0_67 = arith.constant 0 : index
    %204 = vector.load %arg9[%c0_66, %c0_67] : memref<1x512xf32, #tpu.memory_space<vmem>>, vector<1x512xf32>
    %cst_68 = arith.constant dense<0.000000e+00> : vector<1x256xf32>
    %205 = tpu.matmul %204, %203, %cst_68 {dimension_numbers = #tpu.dot_dimension_numbers<[1], [0], [0], [1], [0, 0, 1, 1], [], []>} : vector<1x512xf32>, vector<512x256xf32>, vector<1x256xf32> -> vector<1x256xf32>
    %c0_69 = arith.constant 0 : index
    %206 = memref.load %arg10[%c0_69] : memref<1xf32, #tpu.memory_space<smem>>
    %207 = vector.broadcast %206 : f32 to vector<1x256xf32>
    %208 = arith.mulf %205, %207 : vector<1x256xf32>
    %209 = math.exp %208 : vector<1x256xf32>
    %cst_70 = arith.constant 1.000000e+00 : f32
    %210 = vector.broadcast %cst_70 : f32 to vector<1x256xf32>
    %211 = arith.addf %210, %209 : vector<1x256xf32>
    %212 = tpu.reciprocal %211 {approx = true} : vector<1x256xf32> -> vector<1x256xf32>
    %213 = vector.broadcast %206 : f32 to vector<1x256xf32>
    %214 = arith.mulf %212, %213 : vector<1x256xf32>
    %c0_71 = arith.constant 0 : index
    %c0_72 = arith.constant 0 : index
    %c0_73 = arith.constant 0 : index
    %215 = vector.load %arg11[%c0_71, %c0_72, %c0_73] : memref<1x34x256xf32, #tpu.memory_space<vmem>>, vector<1x33x256xf32>
    %216 = vector.shape_cast %215 : vector<1x33x256xf32> to vector<33x256xf32>
    %217 = vector.shape_cast %41 : vector<33x256xf32> to vector<1x33x256xf32>
    tpu.vector_store %arg11[%c0_71, %c0_72, %c0_73], %217 {strides = array<i32>} : memref<1x34x256xf32, #tpu.memory_space<vmem>>, vector<1x33x256xf32>,
    %c0_74 = arith.constant 0 : index
    %c33 = arith.constant 33 : index
    %c0_75 = arith.constant 0 : index
    %218 = vector.load %arg11[%c0_74, %c33, %c0_75] : memref<1x34x256xf32, #tpu.memory_space<vmem>>, vector<1x1x256xf32>
    %219 = vector.shape_cast %218 : vector<1x1x256xf32> to vector<1x256xf32>
    %220 = vector.shape_cast %214 : vector<1x256xf32> to vector<1x1x256xf32>
    tpu.vector_store %arg11[%c0_74, %c33, %c0_75], %220 {strides = array<i32>} : memref<1x34x256xf32, #tpu.memory_space<vmem>>, vector<1x1x256xf32>,
    return
  }
  func.func @transform_0(%arg0: i32, %arg1: i32) -> (i32, i32, i32) {
    %c0_i32 = arith.constant 0 : i32
    %c0_i32_0 = arith.constant 0 : i32
    return %arg0, %c0_i32, %arg1 : i32, i32, i32
  }
  func.func @transform_1(%arg0: i32, %arg1: i32) -> (i32, i32, i32, i32) {
    %c0_i32 = arith.constant 0 : i32
    %c0_i32_0 = arith.constant 0 : i32
    %c0_i32_1 = arith.constant 0 : i32
    return %arg0, %c0_i32, %arg1, %c0_i32_0 : i32, i32, i32, i32
  }
  func.func @transform_2(%arg0: i32, %arg1: i32) -> (i32, i32) {
    %c0_i32 = arith.constant 0 : i32
    %c0_i32_0 = arith.constant 0 : i32
    %c0_i32_1 = arith.constant 0 : i32
    return %c0_i32, %c0_i32_0 : i32, i32
  }
  func.func @transform_3(%arg0: i32, %arg1: i32) -> (i32, i32) {
    %c0_i32 = arith.constant 0 : i32
    %c0_i32_0 = arith.constant 0 : i32
    %c0_i32_1 = arith.constant 0 : i32
    return %c0_i32, %c0_i32_0 : i32, i32
  }
  func.func @transform_4(%arg0: i32, %arg1: i32) -> (i32, i32) {
    %c0_i32 = arith.constant 0 : i32
    %c0_i32_0 = arith.constant 0 : i32
    %c0_i32_1 = arith.constant 0 : i32
    return %c0_i32, %c0_i32_0 : i32, i32
  }
  func.func @transform_5(%arg0: i32, %arg1: i32) -> (i32, i32) {
    %c0_i32 = arith.constant 0 : i32
    %c0_i32_0 = arith.constant 0 : i32
    %c0_i32_1 = arith.constant 0 : i32
    return %c0_i32, %c0_i32_0 : i32, i32
  }
  func.func @transform_6(%arg0: i32, %arg1: i32) -> (i32, i32) {
    %c0_i32 = arith.constant 0 : i32
    %c0_i32_0 = arith.constant 0 : i32
    %c0_i32_1 = arith.constant 0 : i32
    return %c0_i32, %c0_i32_0 : i32, i32
  }
  func.func @transform_7(%arg0: i32, %arg1: i32) -> (i32, i32) {
    %c0_i32 = arith.constant 0 : i32
    %c0_i32_0 = arith.constant 0 : i32
    %c0_i32_1 = arith.constant 0 : i32
    return %c0_i32, %c0_i32_0 : i32, i32
  }
  func.func @transform_8(%arg0: i32, %arg1: i32) -> i32 {
    %c0_i32 = arith.constant 0 : i32
    %c0_i32_0 = arith.constant 0 : i32
    return %c0_i32 : i32
  }
  func.func @transform_9(%arg0: i32, %arg1: i32) -> (i32, i32, i32) {
    %c0_i32 = arith.constant 0 : i32
    %c0_i32_0 = arith.constant 0 : i32
    return %arg0, %c0_i32, %arg1 : i32, i32, i32
  }
}

</mosaic_0001>

<llo_original>
// kernel: tpu_custom_call.1
$region0: #{tpu_custom_call.1}
  #allocation0 [shape = 'u32[]', space=smem, size = 0x4, offset = 0x4, fixed_abs, tag = 'smem constant byte address 0x4 - core index']
  #allocation1 [shape = 'u32[144,128]{1,0:T(1,128)}', space=vmem, size = 0x12000, scoped, tag = 'internal scratch']
  #allocation2 [shape = 'f32[1]{0:T(128)S(6)}', space=smem, size = 0x200, scoped, tag = 'scoped memory for tpu_custom_call.1']
  %s0 = inlined_call_operand.vmem [shape: f32[2,3,256], index: 0, kind: input, shape index: {}]
  %s1 = inlined_call_operand.vmem [shape: f32[2,3,256,32], index: 1, kind: input, shape index: {}]
  %s2 = inlined_call_operand.vmem [shape: f32[64,3], index: 2, kind: input, shape index: {}]
  %s3 = inlined_call_operand.vmem [shape: f32[64,32], index: 3, kind: input, shape index: {}]
  %s4 = inlined_call_operand.vmem [shape: f32[64,1], index: 4, kind: input, shape index: {}]
  %s5 = inlined_call_operand.vmem [shape: f32[33,64], index: 5, kind: input, shape index: {}]
  %s6 = inlined_call_operand.vmem [shape: f32[33,1], index: 6, kind: input, shape index: {}]
  %s7 = inlined_call_operand.vmem [shape: f32[1,512], index: 7, kind: input, shape index: {}]
  %s8 = inlined_call_operand.<no memory space> [shape: f32[1], index: 8, kind: input, shape index: {}]
  %s9 = inlined_call_operand.vmem [shape: f32[2,34,256], index: 9, kind: output, shape index: {}]
  %s10 = sld [smem:[#allocation0]]
  $region69: #{tpu_custom_call.1} parent=0
    _
  %s12 = ssub.s32 1, %s10
  %s13 = scalar_select 0, %s12, %s10
  %14 = sst [smem:[#allocation2]] %s8
  loop: start=0, step=1, limit=4
  $region2: #{tpu_custom_call.1} parent=0 // loop_pre_header
    _
  $region3: #{tpu_custom_call.1} parent=0 // loop_header
    %s16 = sphi 0, %s20
    %p17 = scmp.ge.s32.totalorder %s16, 4
    %s23 = sphi 0, %s35
    %s24 = sphi 0, %s31
    %s25 = sphi 0, %s23
    %s26 = sphi 0, %s24
    %s27 = sphi 0, %s25
    %s28 = sphi 0, %s26
    %s40 = sphi 0, %s42
    %s43 = sphi 0, %s40
    %s44 = sphi 0, %s43
    %s60 = sphi 0, %s44
    %s68 = sphi 0, %s70
    %s71 = sphi 0, %s68
    %s72 = sphi 0, %s71
    %s88 = sphi 0, %s72
    %s92 = sphi 0, %s92
    %s94 = sphi 0, %s92
    %s95 = sphi 0, %s94
    %s109 = sphi 0, %s95
    %s113 = sphi 0, %s113
    %s115 = sphi 0, %s113
    %s116 = sphi 0, %s115
    %s130 = sphi 0, %s116
    %s134 = sphi 0, %s134
    %s136 = sphi 0, %s134
    %s137 = sphi 0, %s136
    %s151 = sphi 0, %s137
    %s155 = sphi 0, %s155
    %s157 = sphi 0, %s155
    %s158 = sphi 0, %s157
    %s172 = sphi 0, %s158
    %s176 = sphi 0, %s176
    %s178 = sphi 0, %s176
    %s179 = sphi 0, %s178
    %s193 = sphi 0, %s179
    %s197 = sphi 0, %s197
    %s199 = sphi 0, %s197
    %s200 = sphi 0, %s199
    %s214 = sphi 0, %s200
    %s218 = sphi 0, %s218
    %s220 = sphi 0, %s218
    %s221 = sphi 0, %s220
    %s235 = sphi 0, %s221
    %s243 = sphi 0, %s245
    %s246 = sphi 0, %s243
    %s247 = sphi 0, %s246
    %s263 = sphi 0, %s247
  $region4: #{tpu_custom_call.1} parent=0 // loop_header_branch
    %19 = sbr.rel (%p17) target = $region8
  $region5: #{tpu_custom_call.1} parent=0 // loop_body
    %s21 = ssub.s32 %s16, 1
    %s22 = ssub.s32 %s16, 2
    %s29 = sadd.s32 1, %s24
    %p30 = scmp.ge.s32.totalorder %s29, 1
    %s31 = scalar_select %p30, 0, %s29
    %s32 = sadd.s32 1, %s23
    %s33 = scalar_select %p30, %s32, %s23
    %p34 = scmp.ge.s32.totalorder %s33, 2
    %s35 = scalar_select %p34, 0, %s33
    %s36 = ssub.s32 %s23, %s35
    %s37 = ssub.s32 %s24, %s31
    %s38 = sor.u32 %s36, %s37
    %p39 = scmp.eq.s32.totalorder %s38, 0
    %s41 = sadd.s32 %s40, 1
    %s42 = scalar_select %p39, %s40, %s41
    %p45 = pneg %p39
    %p46 = scmp.eq.s32.totalorder %s16, 1
    %p47 = por %p45, %p46
    %p48 = scmp.ne.s32.totalorder %s40, %s43
    %p49 = scmp.eq.s32.totalorder %s16, 0
    %p50 = por %p48, %p49
    %p51 = scmp.ne.s32.totalorder %s40, %s43
    %p52 = scmp.eq.s32.totalorder %s21, 1
    %p53 = por %p51, %p52
    %p54 = scmp.ne.s32.totalorder %s43, %s44
    %p55 = scmp.eq.s32.totalorder %s21, 0
    %p56 = por %p54, %p55
    %p57 = scmp.ne.s32.totalorder %s43, %s44
    %p58 = scmp.eq.s32.totalorder %s22, 1
    %p59 = por %p57, %p58
    %p61 = scmp.ne.s32.totalorder %s44, %s60
    %p62 = scmp.eq.s32.totalorder %s22, 0
    %p63 = por %p61, %p62
    %s64 = ssub.s32 %s23, %s35
    %s65 = ssub.s32 %s24, %s31
    %s66 = sor.u32 %s64, %s65
    %p67 = scmp.eq.s32.totalorder %s66, 0
    %s69 = sadd.s32 %s68, 1
    %s70 = scalar_select %p67, %s68, %s69
    %p73 = pneg %p67
    %p74 = scmp.eq.s32.totalorder %s16, 1
    %p75 = por %p73, %p74
    %p76 = scmp.ne.s32.totalorder %s68, %s71
    %p77 = scmp.eq.s32.totalorder %s16, 0
    %p78 = por %p76, %p77
    %p79 = scmp.ne.s32.totalorder %s68, %s71
    %p80 = scmp.eq.s32.totalorder %s21, 1
    %p81 = por %p79, %p80
    %p82 = scmp.ne.s32.totalorder %s71, %s72
    %p83 = scmp.eq.s32.totalorder %s21, 0
    %p84 = por %p82, %p83
    %p85 = scmp.ne.s32.totalorder %s71, %s72
    %p86 = scmp.eq.s32.totalorder %s22, 1
    %p87 = por %p85, %p86
    %p89 = scmp.ne.s32.totalorder %s72, %s88
    %p90 = scmp.eq.s32.totalorder %s22, 0
    %p91 = por %p89, %p90
    %s93 = sadd.s32 %s92, 1
    %p96 = scmp.eq.s32.totalorder %s16, 1
    %p97 = scmp.ne.s32.totalorder %s92, %s94
    %p98 = scmp.eq.s32.totalorder %s16, 0
    %p99 = por %p97, %p98
    %p100 = scmp.ne.s32.totalorder %s92, %s94
    %p101 = scmp.eq.s32.totalorder %s21, 1
    %p102 = por %p100, %p101
    %p103 = scmp.ne.s32.totalorder %s94, %s95
    %p104 = scmp.eq.s32.totalorder %s21, 0
    %p105 = por %p103, %p104
    %p106 = scmp.ne.s32.totalorder %s94, %s95
    %p107 = scmp.eq.s32.totalorder %s22, 1
    %p108 = por %p106, %p107
    %p110 = scmp.ne.s32.totalorder %s95, %s109
    %p111 = scmp.eq.s32.totalorder %s22, 0
    %p112 = por %p110, %p111
    %s114 = sadd.s32 %s113, 1
    %p117 = scmp.eq.s32.totalorder %s16, 1
    %p118 = scmp.ne.s32.totalorder %s113, %s115
    %p119 = scmp.eq.s32.totalorder %s16, 0
    %p120 = por %p118, %p119
    %p121 = scmp.ne.s32.totalorder %s113, %s115
    %p122 = scmp.eq.s32.totalorder %s21, 1
    %p123 = por %p121, %p122
    %p124 = scmp.ne.s32.totalorder %s115, %s116
    %p125 = scmp.eq.s32.totalorder %s21, 0
    %p126 = por %p124, %p125
    %p127 = scmp.ne.s32.totalorder %s115, %s116
    %p128 = scmp.eq.s32.totalorder %s22, 1
    %p129 = por %p127, %p128
    %p131 = scmp.ne.s32.totalorder %s116, %s130
    %p132 = scmp.eq.s32.totalorder %s22, 0
    %p133 = por %p131, %p132
    %s135 = sadd.s32 %s134, 1
    %p138 = scmp.eq.s32.totalorder %s16, 1
    %p139 = scmp.ne.s32.totalorder %s134, %s136
    %p140 = scmp.eq.s32.totalorder %s16, 0
    %p141 = por %p139, %p140
    %p142 = scmp.ne.s32.totalorder %s134, %s136
    %p143 = scmp.eq.s32.totalorder %s21, 1
    %p144 = por %p142, %p143
    %p145 = scmp.ne.s32.totalorder %s136, %s137
    %p146 = scmp.eq.s32.totalorder %s21, 0
    %p147 = por %p145, %p146
    %p148 = scmp.ne.s32.totalorder %s136, %s137
    %p149 = scmp.eq.s32.totalorder %s22, 1
    %p150 = por %p148, %p149
    %p152 = scmp.ne.s32.totalorder %s137, %s151
    %p153 = scmp.eq.s32.totalorder %s22, 0
    %p154 = por %p152, %p153
    %s156 = sadd.s32 %s155, 1
    %p159 = scmp.eq.s32.totalorder %s16, 1
    %p160 = scmp.ne.s32.totalorder %s155, %s157
    %p161 = scmp.eq.s32.totalorder %s16, 0
    %p162 = por %p160, %p161
    %p163 = scmp.ne.s32.totalorder %s155, %s157
    %p164 = scmp.eq.s32.totalorder %s21, 1
    %p165 = por %p163, %p164
    %p166 = scmp.ne.s32.totalorder %s157, %s158
    %p167 = scmp.eq.s32.totalorder %s21, 0
    %p168 = por %p166, %p167
    %p169 = scmp.ne.s32.totalorder %s157, %s158
    %p170 = scmp.eq.s32.totalorder %s22, 1
    %p171 = por %p169, %p170
    %p173 = scmp.ne.s32.totalorder %s158, %s172
    %p174 = scmp.eq.s32.totalorder %s22, 0
    %p175 = por %p173, %p174
    %s177 = sadd.s32 %s176, 1
    %p180 = scmp.eq.s32.totalorder %s16, 1
    %p181 = scmp.ne.s32.totalorder %s176, %s178
    %p182 = scmp.eq.s32.totalorder %s16, 0
    %p183 = por %p181, %p182
    %p184 = scmp.ne.s32.totalorder %s176, %s178
    %p185 = scmp.eq.s32.totalorder %s21, 1
    %p186 = por %p184, %p185
    %p187 = scmp.ne.s32.totalorder %s178, %s179
    %p188 = scmp.eq.s32.totalorder %s21, 0
    %p189 = por %p187, %p188
    %p190 = scmp.ne.s32.totalorder %s178, %s179
    %p191 = scmp.eq.s32.totalorder %s22, 1
    %p192 = por %p190, %p191
    %p194 = scmp.ne.s32.totalorder %s179, %s193
    %p195 = scmp.eq.s32.totalorder %s22, 0
    %p196 = por %p194, %p195
    %s198 = sadd.s32 %s197, 1
    %p201 = scmp.eq.s32.totalorder %s16, 1
    %p202 = scmp.ne.s32.totalorder %s197, %s199
    %p203 = scmp.eq.s32.totalorder %s16, 0
    %p204 = por %p202, %p203
    %p205 = scmp.ne.s32.totalorder %s197, %s199
    %p206 = scmp.eq.s32.totalorder %s21, 1
    %p207 = por %p205, %p206
    %p208 = scmp.ne.s32.totalorder %s199, %s200
    %p209 = scmp.eq.s32.totalorder %s21, 0
    %p210 = por %p208, %p209
    %p211 = scmp.ne.s32.totalorder %s199, %s200
    %p212 = scmp.eq.s32.totalorder %s22, 1
    %p213 = por %p211, %p212
    %p215 = scmp.ne.s32.totalorder %s200, %s214
    %p216 = scmp.eq.s32.totalorder %s22, 0
    %p217 = por %p215, %p216
    %s219 = sadd.s32 %s218, 1
    %p222 = scmp.eq.s32.totalorder %s16, 1
    %p223 = scmp.ne.s32.totalorder %s218, %s220
    %p224 = scmp.eq.s32.totalorder %s16, 0
    %p225 = por %p223, %p224
    %p226 = scmp.ne.s32.totalorder %s218, %s220
    %p227 = scmp.eq.s32.totalorder %s21, 1
    %p228 = por %p226, %p227
    %p229 = scmp.ne.s32.totalorder %s220, %s221
    %p230 = scmp.eq.s32.totalorder %s21, 0
    %p231 = por %p229, %p230
    %p232 = scmp.ne.s32.totalorder %s220, %s221
    %p233 = scmp.eq.s32.totalorder %s22, 1
    %p234 = por %p232, %p233
    %p236 = scmp.ne.s32.totalorder %s221, %s235
    %p237 = scmp.eq.s32.totalorder %s22, 0
    %p238 = por %p236, %p237
    %s239 = ssub.s32 %s23, %s35
    %s240 = ssub.s32 %s24, %s31
    %s241 = sor.u32 %s239, %s240
    %p242 = scmp.eq.s32.totalorder %s241, 0
    %s244 = sadd.s32 %s243, 1
    %s245 = scalar_select %p242, %s243, %s244
    %p248 = pneg %p242
    %p249 = scmp.eq.s32.totalorder %s16, 1
    %p250 = por %p248, %p249
    %p251 = scmp.ne.s32.totalorder %s243, %s246
    %p252 = scmp.eq.s32.totalorder %s16, 0
    %p253 = por %p251, %p252
    %p254 = scmp.ne.s32.totalorder %s243, %s246
    %p255 = scmp.eq.s32.totalorder %s21, 1
    %p256 = por %p254, %p255
    %p257 = scmp.ne.s32.totalorder %s246, %s247
    %p258 = scmp.eq.s32.totalorder %s21, 0
    %p259 = por %p257, %p258
    %p260 = scmp.ne.s32.totalorder %s246, %s247
    %p261 = scmp.eq.s32.totalorder %s22, 1
    %p262 = por %p260, %p261
    %p264 = scmp.ne.s32.totalorder %s247, %s263
    %p265 = scmp.eq.s32.totalorder %s22, 0
    %p266 = por %p264, %p265
    %p267 = scmp.le.s32.totalorder 1, %s16
    %p268 = scmp.lt.s32.totalorder %s16, 3
    %p269 = pnand %p267, %p268
    %p270 = pneg %p269
    // Predicated region
    $region9: #{tpu_custom_call.1} parent=5 // pred_check
      _
    $region10: #{tpu_custom_call.1} parent=5 // pred_check_branch
      %272 = sbr.rel (%p269) target = $region12
    $region11: #{tpu_custom_call.1} parent=5 // pred_region
      %s273 = ssub.s32 %s16, 1
      // Predicated region
      $region13: #{tpu_custom_call.1} parent=11 // pred_check
        %p274 = pneg %p105
      $region14: #{tpu_custom_call.1} parent=11 // pred_check_branch
        %276 = sbr.rel (%p274) target = $region16
      $region15: #{tpu_custom_call.1} parent=11 // pred_region
        _
      $region16: #{tpu_custom_call.1} parent=11 // pred_fallthru
        _
      // Predicated region
      $region17: #{tpu_custom_call.1} parent=11 // pred_check
        %p277 = pneg %p126
      $region18: #{tpu_custom_call.1} parent=11 // pred_check_branch
        %279 = sbr.rel (%p277) target = $region20
      $region19: #{tpu_custom_call.1} parent=11 // pred_region
        _
      $region20: #{tpu_custom_call.1} parent=11 // pred_fallthru
        _
      // Predicated region
      $region21: #{tpu_custom_call.1} parent=11 // pred_check
        %p280 = pneg %p147
      $region22: #{tpu_custom_call.1} parent=11 // pred_check_branch
        %282 = sbr.rel (%p280) target = $region24
      $region23: #{tpu_custom_call.1} parent=11 // pred_region
        _
      $region24: #{tpu_custom_call.1} parent=11 // pred_fallthru
        _
      // Predicated region
      $region25: #{tpu_custom_call.1} parent=11 // pred_check
        %p283 = pneg %p168
      $region26: #{tpu_custom_call.1} parent=11 // pred_check_branch
        %285 = sbr.rel (%p283) target = $region28
      $region27: #{tpu_custom_call.1} parent=11 // pred_region
        _
      $region28: #{tpu_custom_call.1} parent=11 // pred_fallthru
        _
      // Predicated region
      $region29: #{tpu_custom_call.1} parent=11 // pred_check
        %p286 = pneg %p189
      $region30: #{tpu_custom_call.1} parent=11 // pred_check_branch
        %288 = sbr.rel (%p286) target = $region32
      $region31: #{tpu_custom_call.1} parent=11 // pred_region
        _
      $region32: #{tpu_custom_call.1} parent=11 // pred_fallthru
        _
      // Predicated region
      $region33: #{tpu_custom_call.1} parent=11 // pred_check
        %p289 = pneg %p210
      $region34: #{tpu_custom_call.1} parent=11 // pred_check_branch
        %291 = sbr.rel (%p289) target = $region36
      $region35: #{tpu_custom_call.1} parent=11 // pred_region
        _
      $region36: #{tpu_custom_call.1} parent=11 // pred_fallthru
        _
      // Predicated region
      $region37: #{tpu_custom_call.1} parent=11 // pred_check
        %p292 = pneg %p231
      $region38: #{tpu_custom_call.1} parent=11 // pred_check_branch
        %294 = sbr.rel (%p292) target = $region40
      $region39: #{tpu_custom_call.1} parent=11 // pred_region
        _
      $region40: #{tpu_custom_call.1} parent=11 // pred_fallthru
        _
    $region12: #{tpu_custom_call.1} parent=5 // pred_fallthru
      _
    %p295 = scmp.lt.s32.totalorder %s16, 2
    // Predicated region
    $region41: #{tpu_custom_call.1} parent=5 // pred_check
      %p296 = pneg %p295
    $region42: #{tpu_custom_call.1} parent=5 // pred_check_branch
      %298 = sbr.rel (%p296) target = $region44
    $region43: #{tpu_custom_call.1} parent=5 // pred_region
      // Predicated region
      $region45: #{tpu_custom_call.1} parent=43 // pred_check
        %p299 = pneg %p50
      $region46: #{tpu_custom_call.1} parent=43 // pred_check_branch
        %301 = sbr.rel (%p299) target = $region48
      $region47: #{tpu_custom_call.1} parent=43 // pred_region
        %s302 = smul.u32 2, %s24
        %p303 = scmp.lt.s32.totalorder %s23, 1
        %s304 = scalar_select %p303, %s23, 1
        %p305 = scmp.lt.s32.totalorder %s302, 1
        %s306 = scalar_select %p305, %s302, 1
        %s307 = smul.addr %s304, 2
        %s308 = sadd.s32 %s306, %s307
        %s309 = smul.addr %s308, 4
        %s310 = scalar_lea.vmem %s0, %s309
        %s311 = smul.u32 2, %s24
      $region48: #{tpu_custom_call.1} parent=43 // pred_fallthru
        _
      // Predicated region
      $region49: #{tpu_custom_call.1} parent=43 // pred_check
        %p312 = pneg %p78
      $region50: #{tpu_custom_call.1} parent=43 // pred_check_branch
        %314 = sbr.rel (%p312) target = $region52
      $region51: #{tpu_custom_call.1} parent=43 // pred_region
        %s315 = smul.u32 32, %s24
        %p316 = scmp.lt.s32.totalorder %s23, 1
        %s317 = scalar_select %p316, %s23, 1
        %p318 = scmp.lt.s32.totalorder %s315, 31
        %s319 = scalar_select %p318, %s315, 31
        %s320 = smul.addr %s317, 96
        %s321 = sadd.s32 %s319, %s320
        %s322 = smul.addr %s321, 8
        %s323 = scalar_lea.vmem %s1, %s322
        %s324 = smul.u32 32, %s24
      $region52: #{tpu_custom_call.1} parent=43 // pred_fallthru
        _
    $region44: #{tpu_custom_call.1} parent=5 // pred_fallthru
      _
    %p325 = scmp.le.s32.totalorder 1, %s16
    %p326 = scmp.lt.s32.totalorder %s16, 3
    %p327 = pnand %p325, %p326
    %p328 = pneg %p327
    // Predicated region
    $region53: #{tpu_custom_call.1} parent=5 // pred_check
      _
    $region54: #{tpu_custom_call.1} parent=5 // pred_check_branch
      %330 = sbr.rel (%p327) target = $region56
    $region55: #{tpu_custom_call.1} parent=5 // pred_region
      %s331 = ssub.s32 %s16, 1
      %s332 = smul.u32 2, %s26
      %p333 = scmp.lt.s32.totalorder %s25, 1
      %s334 = scalar_select %p333, %s25, 1
      %p335 = scmp.lt.s32.totalorder %s332, 1
      %s336 = scalar_select %p335, %s332, 1
      %s337 = smul.addr %s334, 2
      %s338 = sadd.s32 %s336, %s337
      %s339 = smul.addr %s338, 4
      %s340 = scalar_lea.vmem %s0, %s339
      %p341 = pneg %p56
      %p342 = pneg %p53
      %s343 = smul.u32 32, %s26
      %p344 = scmp.lt.s32.totalorder %s25, 1
      %s345 = scalar_select %p344, %s25, 1
      %p346 = scmp.lt.s32.totalorder %s343, 31
      %s347 = scalar_select %p346, %s343, 31
      %s348 = smul.addr %s345, 96
      %s349 = sadd.s32 %s347, %s348
      %s350 = smul.addr %s349, 8
      %s351 = scalar_lea.vmem %s1, %s350
      %p352 = pneg %p84
      %p353 = pneg %p81
      %p354 = pneg %p105
      %p355 = pneg %p102
      %p356 = pneg %p126
      %p357 = pneg %p123
      %p358 = pneg %p147
      %p359 = pneg %p144
      %p360 = pneg %p168
      %p361 = pneg %p165
      %p362 = pneg %p189
      %p363 = pneg %p186
      %p364 = pneg %p210
      %p365 = pneg %p207
      %p366 = pneg %p231
      %p367 = pneg %p228
      %p368 = pneg %p259
      %p369 = pneg %p256
      %s370 = smul.u32 2, %s26
      %p371 = scmp.lt.s32.totalorder %s25, 1
      %s372 = scalar_select %p371, %s25, 1
      %p373 = scmp.lt.s32.totalorder %s370, 1
      %s374 = scalar_select %p373, %s370, 1
      %s375 = smul.addr %s372, 10
      %s376 = sadd.s32 %s374, %s375
      %s377 = smul.addr %s376, 8
      %s378 = scalar_lea.vmem %s9, %s377
      %s379 = smul.u32 2, %s26
      %p380 = scmp.lt.s32.totalorder %s25, 1
      %s381 = scalar_select %p380, %s25, 1
      %p382 = scmp.lt.s32.totalorder %s379, 1
      %s383 = scalar_select %p382, %s379, 1
      %s384 = smul.addr %s381, 2
      %s385 = sadd.s32 %s383, %s384
      %s386 = smul.addr %s385, 4
      %s387 = scalar_lea.vmem %s0, %s386
      %s388 = smul.u32 2, %s26
      %s389 = smul.u32 32, %s26
      %p390 = scmp.lt.s32.totalorder %s25, 1
      %s391 = scalar_select %p390, %s25, 1
      %p392 = scmp.lt.s32.totalorder %s389, 31
      %s393 = scalar_select %p392, %s389, 31
      %s394 = smul.addr %s391, 96
      %s395 = sadd.s32 %s393, %s394
      %s396 = smul.addr %s395, 8
      %s397 = scalar_lea.vmem %s1, %s396
      %s398 = smul.u32 32, %s26
      %s399 = smul.u32 2, %s26
      %p400 = scmp.lt.s32.totalorder %s25, 1
      %s401 = scalar_select %p400, %s25, 1
      %p402 = scmp.lt.s32.totalorder %s399, 1
      %s403 = scalar_select %p402, %s399, 1
      %s404 = smul.addr %s401, 10
      %s405 = sadd.s32 %s403, %s404
      %s406 = smul.addr %s405, 8
      %s407 = scalar_lea.vmem %s9, %s406
      %s408 = smul.u32 2, %s26
      %v409 = vld [vmem:[%s387] sm:$0x77]
      %v410 = vld [vmem:[%s397] sm:$0xff]
      %v411 = vld [vmem:[%s397 + $0x8] sm:$0xff]
      %v412 = vld [vmem:[%s397 + $0x10] sm:$0xff]
      %v413 = vld [vmem:[%s397 + $0x18] sm:$0xff]
      %v414 = vld [vmem:[%s397 + $0x20] sm:$0xff]
      %v415 = vld [vmem:[%s397 + $0x28] sm:$0xff]
      %v416 = vld [vmem:[%s397 + $0x30] sm:$0xff]
      %v417 = vld [vmem:[%s397 + $0x38] sm:$0xff]
      %v418 = vld [vmem:[%s397 + $0x40] sm:$0xff]
      %v419 = vld [vmem:[%s397 + $0x48] sm:$0xff]
      %v420 = vld [vmem:[%s397 + $0x50] sm:$0xff]
      %v421 = vld [vmem:[%s397 + $0x58] sm:$0xff]
      %v422 = vld [vmem:[%s397 + $0x60] sm:$0xff]
      %v423 = vld [vmem:[%s397 + $0x68] sm:$0xff]
      %v424 = vld [vmem:[%s397 + $0x70] sm:$0xff]
      %v425 = vld [vmem:[%s397 + $0x78] sm:$0xff]
      %v426 = vld [vmem:[%s397 + $0x80] sm:$0xff]
      %v427 = vld [vmem:[%s397 + $0x88] sm:$0xff]
      %v428 = vld [vmem:[%s397 + $0x90] sm:$0xff]
      %v429 = vld [vmem:[%s397 + $0x98] sm:$0xff]
      %v430 = vld [vmem:[%s397 + $0xa0] sm:$0xff]
      %v431 = vld [vmem:[%s397 + $0xa8] sm:$0xff]
      %v432 = vld [vmem:[%s397 + $0xb0] sm:$0xff]
      %v433 = vld [vmem:[%s397 + $0xb8] sm:$0xff]
      %v434 = vld [vmem:[%s397 + $0xc0] sm:$0xff]
      %v435 = vld [vmem:[%s397 + $0xc8] sm:$0xff]
      %v436 = vld [vmem:[%s397 + $0xd0] sm:$0xff]
      %v437 = vld [vmem:[%s397 + $0xd8] sm:$0xff]
      %v438 = vld [vmem:[%s397 + $0xe0] sm:$0xff]
      %v439 = vld [vmem:[%s397 + $0xe8] sm:$0xff]
      %v440 = vld [vmem:[%s397 + $0xf0] sm:$0xff]
      %v441 = vld [vmem:[%s397 + $0xf8] sm:$0xff]
      %v442 = vld [vmem:[%s397 + $0x100] sm:$0xff]
      %v443 = vld [vmem:[%s397 + $0x108] sm:$0xff]
      %v444 = vld [vmem:[%s397 + $0x110] sm:$0xff]
      %v445 = vld [vmem:[%s397 + $0x118] sm:$0xff]
      %v446 = vld [vmem:[%s397 + $0x120] sm:$0xff]
      %v447 = vld [vmem:[%s397 + $0x128] sm:$0xff]
      %v448 = vld [vmem:[%s397 + $0x130] sm:$0xff]
      %v449 = vld [vmem:[%s397 + $0x138] sm:$0xff]
      %v450 = vld [vmem:[%s397 + $0x140] sm:$0xff]
      %v451 = vld [vmem:[%s397 + $0x148] sm:$0xff]
      %v452 = vld [vmem:[%s397 + $0x150] sm:$0xff]
      %v453 = vld [vmem:[%s397 + $0x158] sm:$0xff]
      %v454 = vld [vmem:[%s397 + $0x160] sm:$0xff]
      %v455 = vld [vmem:[%s397 + $0x168] sm:$0xff]
      %v456 = vld [vmem:[%s397 + $0x170] sm:$0xff]
      %v457 = vld [vmem:[%s397 + $0x178] sm:$0xff]
      %v458 = vld [vmem:[%s397 + $0x180] sm:$0xff]
      %v459 = vld [vmem:[%s397 + $0x188] sm:$0xff]
      %v460 = vld [vmem:[%s397 + $0x190] sm:$0xff]
      %v461 = vld [vmem:[%s397 + $0x198] sm:$0xff]
      %v462 = vld [vmem:[%s397 + $0x1a0] sm:$0xff]
      %v463 = vld [vmem:[%s397 + $0x1a8] sm:$0xff]
      %v464 = vld [vmem:[%s397 + $0x1b0] sm:$0xff]
      %v465 = vld [vmem:[%s397 + $0x1b8] sm:$0xff]
      %v466 = vld [vmem:[%s397 + $0x1c0] sm:$0xff]
      %v467 = vld [vmem:[%s397 + $0x1c8] sm:$0xff]
      %v468 = vld [vmem:[%s397 + $0x1d0] sm:$0xff]
      %v469 = vld [vmem:[%s397 + $0x1d8] sm:$0xff]
      %v470 = vld [vmem:[%s397 + $0x1e0] sm:$0xff]
      %v471 = vld [vmem:[%s397 + $0x1e8] sm:$0xff]
      %v472 = vld [vmem:[%s397 + $0x1f0] sm:$0xff]
      %v473 = vld [vmem:[%s397 + $0x1f8] sm:$0xff]
      %v474 = vld [vmem:[%s397 + $0x200] sm:$0xff]
      %v475 = vld [vmem:[%s397 + $0x208] sm:$0xff]
      %v476 = vld [vmem:[%s397 + $0x210] sm:$0xff]
      %v477 = vld [vmem:[%s397 + $0x218] sm:$0xff]
      %v478 = vld [vmem:[%s397 + $0x220] sm:$0xff]
      %v479 = vld [vmem:[%s397 + $0x228] sm:$0xff]
      %v480 = vld [vmem:[%s397 + $0x230] sm:$0xff]
      %v481 = vld [vmem:[%s397 + $0x238] sm:$0xff]
      %v482 = vld [vmem:[%s397 + $0x240] sm:$0xff]
      %v483 = vld [vmem:[%s397 + $0x248] sm:$0xff]
      %v484 = vld [vmem:[%s397 + $0x250] sm:$0xff]
      %v485 = vld [vmem:[%s397 + $0x258] sm:$0xff]
      %v486 = vld [vmem:[%s397 + $0x260] sm:$0xff]
      %v487 = vld [vmem:[%s397 + $0x268] sm:$0xff]
      %v488 = vld [vmem:[%s397 + $0x270] sm:$0xff]
      %v489 = vld [vmem:[%s397 + $0x278] sm:$0xff]
      %v490 = vld [vmem:[%s397 + $0x280] sm:$0xff]
      %v491 = vld [vmem:[%s397 + $0x288] sm:$0xff]
      %v492 = vld [vmem:[%s397 + $0x290] sm:$0xff]
      %v493 = vld [vmem:[%s397 + $0x298] sm:$0xff]
      %v494 = vld [vmem:[%s397 + $0x2a0] sm:$0xff]
      %v495 = vld [vmem:[%s397 + $0x2a8] sm:$0xff]
      %v496 = vld [vmem:[%s397 + $0x2b0] sm:$0xff]
      %v497 = vld [vmem:[%s397 + $0x2b8] sm:$0xff]
      %v498 = vld [vmem:[%s397 + $0x2c0] sm:$0xff]
      %v499 = vld [vmem:[%s397 + $0x2c8] sm:$0xff]
      %v500 = vld [vmem:[%s397 + $0x2d0] sm:$0xff]
      %v501 = vld [vmem:[%s397 + $0x2d8] sm:$0xff]
      %v502 = vld [vmem:[%s397 + $0x2e0] sm:$0xff]
      %v503 = vld [vmem:[%s397 + $0x2e8] sm:$0xff]
      %v504 = vld [vmem:[%s397 + $0x2f0] sm:$0xff]
      %v505 = vld [vmem:[%s397 + $0x2f8] sm:$0xff]
      %vm506 = vcmask 261120
      %v507 = vsel %vm506, %v410, 0.0
      %v508 = vsel %vm506, %v442, 0.0
      %v509 = vadd.f32 %v507, %v508
      %v510 = vsel %vm506, %v474, 0.0
      %v511 = vadd.f32 %v509, %v510
      %v512 = vsel %vm506, %v411, 0.0
      %v513 = vsel %vm506, %v443, 0.0
      %v514 = vadd.f32 %v512, %v513
      %v515 = vsel %vm506, %v475, 0.0
      %v516 = vadd.f32 %v514, %v515
      %v517 = vsel %vm506, %v412, 0.0
      %v518 = vsel %vm506, %v444, 0.0
      %v519 = vadd.f32 %v517, %v518
      %v520 = vsel %vm506, %v476, 0.0
      %v521 = vadd.f32 %v519, %v520
      %v522 = vsel %vm506, %v413, 0.0
      %v523 = vsel %vm506, %v445, 0.0
      %v524 = vadd.f32 %v522, %v523
      %v525 = vsel %vm506, %v477, 0.0
      %v526 = vadd.f32 %v524, %v525
      %v527 = vsel %vm506, %v414, 0.0
      %v528 = vsel %vm506, %v446, 0.0
      %v529 = vadd.f32 %v527, %v528
      %v530 = vsel %vm506, %v478, 0.0
      %v531 = vadd.f32 %v529, %v530
      %v532 = vsel %vm506, %v415, 0.0
      %v533 = vsel %vm506, %v447, 0.0
      %v534 = vadd.f32 %v532, %v533
      %v535 = vsel %vm506, %v479, 0.0
      %v536 = vadd.f32 %v534, %v535
      %v537 = vsel %vm506, %v416, 0.0
      %v538 = vsel %vm506, %v448, 0.0
      %v539 = vadd.f32 %v537, %v538
      %v540 = vsel %vm506, %v480, 0.0
      %v541 = vadd.f32 %v539, %v540
      %v542 = vsel %vm506, %v417, 0.0
      %v543 = vsel %vm506, %v449, 0.0
      %v544 = vadd.f32 %v542, %v543
      %v545 = vsel %vm506, %v481, 0.0
      %v546 = vadd.f32 %v544, %v545
      %v547 = vsel %vm506, %v418, 0.0
      %v548 = vsel %vm506, %v450, 0.0
      %v549 = vadd.f32 %v547, %v548
      %v550 = vsel %vm506, %v482, 0.0
      %v551 = vadd.f32 %v549, %v550
      %v552 = vsel %vm506, %v419, 0.0
      %v553 = vsel %vm506, %v451, 0.0
      %v554 = vadd.f32 %v552, %v553
      %v555 = vsel %vm506, %v483, 0.0
      %v556 = vadd.f32 %v554, %v555
      %v557 = vsel %vm506, %v420, 0.0
      %v558 = vsel %vm506, %v452, 0.0
      %v559 = vadd.f32 %v557, %v558
      %v560 = vsel %vm506, %v484, 0.0
      %v561 = vadd.f32 %v559, %v560
      %v562 = vsel %vm506, %v421, 0.0
      %v563 = vsel %vm506, %v453, 0.0
      %v564 = vadd.f32 %v562, %v563
      %v565 = vsel %vm506, %v485, 0.0
      %v566 = vadd.f32 %v564, %v565
      %v567 = vsel %vm506, %v422, 0.0
      %v568 = vsel %vm506, %v454, 0.0
      %v569 = vadd.f32 %v567, %v568
      %v570 = vsel %vm506, %v486, 0.0
      %v571 = vadd.f32 %v569, %v570
      %v572 = vsel %vm506, %v423, 0.0
      %v573 = vsel %vm506, %v455, 0.0
      %v574 = vadd.f32 %v572, %v573
      %v575 = vsel %vm506, %v487, 0.0
      %v576 = vadd.f32 %v574, %v575
      %v577 = vsel %vm506, %v424, 0.0
      %v578 = vsel %vm506, %v456, 0.0
      %v579 = vadd.f32 %v577, %v578
      %v580 = vsel %vm506, %v488, 0.0
      %v581 = vadd.f32 %v579, %v580
      %v582 = vsel %vm506, %v425, 0.0
      %v583 = vsel %vm506, %v457, 0.0
      %v584 = vadd.f32 %v582, %v583
      %v585 = vsel %vm506, %v489, 0.0
      %v586 = vadd.f32 %v584, %v585
      %v587 = vsel %vm506, %v426, 0.0
      %v588 = vsel %vm506, %v458, 0.0
      %v589 = vadd.f32 %v587, %v588
      %v590 = vsel %vm506, %v490, 0.0
      %v591 = vadd.f32 %v589, %v590
      %v592 = vsel %vm506, %v427, 0.0
      %v593 = vsel %vm506, %v459, 0.0
      %v594 = vadd.f32 %v592, %v593
      %v595 = vsel %vm506, %v491, 0.0
      %v596 = vadd.f32 %v594, %v595
      %v597 = vsel %vm506, %v428, 0.0
      %v598 = vsel %vm506, %v460, 0.0
      %v599 = vadd.f32 %v597, %v598
      %v600 = vsel %vm506, %v492, 0.0
      %v601 = vadd.f32 %v599, %v600
      %v602 = vsel %vm506, %v429, 0.0
      %v603 = vsel %vm506, %v461, 0.0
      %v604 = vadd.f32 %v602, %v603
      %v605 = vsel %vm506, %v493, 0.0
      %v606 = vadd.f32 %v604, %v605
      %v607 = vsel %vm506, %v430, 0.0
      %v608 = vsel %vm506, %v462, 0.0
      %v609 = vadd.f32 %v607, %v608
      %v610 = vsel %vm506, %v494, 0.0
      %v611 = vadd.f32 %v609, %v610
      %v612 = vsel %vm506, %v431, 0.0
      %v613 = vsel %vm506, %v463, 0.0
      %v614 = vadd.f32 %v612, %v613
      %v615 = vsel %vm506, %v495, 0.0
      %v616 = vadd.f32 %v614, %v615
      %v617 = vsel %vm506, %v432, 0.0
      %v618 = vsel %vm506, %v464, 0.0
      %v619 = vadd.f32 %v617, %v618
      %v620 = vsel %vm506, %v496, 0.0
      %v621 = vadd.f32 %v619, %v620
      %v622 = vsel %vm506, %v433, 0.0
      %v623 = vsel %vm506, %v465, 0.0
      %v624 = vadd.f32 %v622, %v623
      %v625 = vsel %vm506, %v497, 0.0
      %v626 = vadd.f32 %v624, %v625
      %v627 = vsel %vm506, %v434, 0.0
      %v628 = vsel %vm506, %v466, 0.0
      %v629 = vadd.f32 %v627, %v628
      %v630 = vsel %vm506, %v498, 0.0
      %v631 = vadd.f32 %v629, %v630
      %v632 = vsel %vm506, %v435, 0.0
      %v633 = vsel %vm506, %v467, 0.0
      %v634 = vadd.f32 %v632, %v633
      %v635 = vsel %vm506, %v499, 0.0
      %v636 = vadd.f32 %v634, %v635
      %v637 = vsel %vm506, %v436, 0.0
      %v638 = vsel %vm506, %v468, 0.0
      %v639 = vadd.f32 %v637, %v638
      %v640 = vsel %vm506, %v500, 0.0
      %v641 = vadd.f32 %v639, %v640
      %v642 = vsel %vm506, %v437, 0.0
      %v643 = vsel %vm506, %v469, 0.0
      %v644 = vadd.f32 %v642, %v643
      %v645 = vsel %vm506, %v501, 0.0
      %v646 = vadd.f32 %v644, %v645
      %v647 = vsel %vm506, %v438, 0.0
      %v648 = vsel %vm506, %v470, 0.0
      %v649 = vadd.f32 %v647, %v648
      %v650 = vsel %vm506, %v502, 0.0
      %v651 = vadd.f32 %v649, %v650
      %v652 = vsel %vm506, %v439, 0.0
      %v653 = vsel %vm506, %v471, 0.0
      %v654 = vadd.f32 %v652, %v653
      %v655 = vsel %vm506, %v503, 0.0
      %v656 = vadd.f32 %v654, %v655
      %v657 = vsel %vm506, %v440, 0.0
      %v658 = vsel %vm506, %v472, 0.0
      %v659 = vadd.f32 %v657, %v658
      %v660 = vsel %vm506, %v504, 0.0
      %v661 = vadd.f32 %v659, %v660
      %v662 = vsel %vm506, %v441, 0.0
      %v663 = vsel %vm506, %v473, 0.0
      %v664 = vadd.f32 %v662, %v663
      %v665 = vsel %vm506, %v505, 0.0
      %v666 = vadd.f32 %v664, %v665
      %v667 = vld [vmem:[%s2] sm:$0xff]
      %v668 = vld [vmem:[%s2 + $0x8] sm:$0xff]
      %v669 = vld [vmem:[%s2 + $0x10] sm:$0xff]
      %v670 = vld [vmem:[%s2 + $0x18] sm:$0xff]
      %v671 = vld [vmem:[%s2 + $0x20] sm:$0xff]
      %v672 = vld [vmem:[%s2 + $0x28] sm:$0xff]
      %v673 = vld [vmem:[%s2 + $0x30] sm:$0xff]
      %v674 = vld [vmem:[%s2 + $0x38] sm:$0xff]
      %v675 = vld [vmem:[%s3] sm:$0xff]
      %v676 = vld [vmem:[%s3 + $0x8] sm:$0xff]
      %v677 = vld [vmem:[%s3 + $0x10] sm:$0xff]
      %v678 = vld [vmem:[%s3 + $0x18] sm:$0xff]
      %v679 = vld [vmem:[%s3 + $0x20] sm:$0xff]
      %v680 = vld [vmem:[%s3 + $0x28] sm:$0xff]
      %v681 = vld [vmem:[%s3 + $0x30] sm:$0xff]
      %v682 = vld [vmem:[%s3 + $0x38] sm:$0xff]
      %v684 = vsel %vm506, %v675, 0
      %v687 = vsel %vm506, %v676, 0
      %v690 = vsel %vm506, %v677, 0
      %v693 = vsel %vm506, %v678, 0
      %v696 = vsel %vm506, %v679, 0
      %v699 = vsel %vm506, %v680, 0
      %v702 = vsel %vm506, %v681, 0
      %v705 = vsel %vm506, %v682, 0
      %v708 = vsel %vm506, %v511, 0
      %v711 = vsel %vm506, %v516, 0
      %v714 = vsel %vm506, %v521, 0
      %v717 = vsel %vm506, %v526, 0
      %v720 = vsel %vm506, %v531, 0
      %v723 = vsel %vm506, %v536, 0
      %v726 = vsel %vm506, %v541, 0
      %v729 = vsel %vm506, %v546, 0
      %v732 = vsel %vm506, %v551, 0
      %v735 = vsel %vm506, %v556, 0
      %v738 = vsel %vm506, %v561, 0
      %v741 = vsel %vm506, %v566, 0
      %v744 = vsel %vm506, %v571, 0
      %v747 = vsel %vm506, %v576, 0
      %v750 = vsel %vm506, %v581, 0
      %v753 = vsel %vm506, %v586, 0
      %v756 = vsel %vm506, %v591, 0
      %v759 = vsel %vm506, %v596, 0
      %v762 = vsel %vm506, %v601, 0
      %v765 = vsel %vm506, %v606, 0
      %v768 = vsel %vm506, %v611, 0
      %v771 = vsel %vm506, %v616, 0
      %v774 = vsel %vm506, %v621, 0
      %v777 = vsel %vm506, %v626, 0
      %v780 = vsel %vm506, %v631, 0
      %v783 = vsel %vm506, %v636, 0
      %v786 = vsel %vm506, %v641, 0
      %v789 = vsel %vm506, %v646, 0
      %v792 = vsel %vm506, %v651, 0
      %v795 = vsel %vm506, %v656, 0
      %v798 = vsel %vm506, %v661, 0
      %v801 = vsel %vm506, %v666, 0
      %803 = vmatprep.subr.mxu0 0.0
      %804 = vmatpush1.xpose.msra.mxu0 %v753
      %805 = vmatprep.subr.mxu0 0.0
      %806 = vmatpush1.xpose.msra.mxu0 %v750
      %807 = vmatprep.subr.mxu0 0.0
      %808 = vmatpush1.xpose.msra.mxu0 %v747
      %809 = vmatprep.subr.mxu0 0.0
      %810 = vmatpush1.xpose.msra.mxu0 %v744
      %811 = vmatprep.subr.mxu0 0.0
      %812 = vmatpush1.xpose.msra.mxu0 %v741
      %813 = vmatprep.subr.mxu0 0.0
      %814 = vmatpush1.xpose.msra.mxu0 %v738
      %815 = vmatprep.subr.mxu0 0.0
      %816 = vmatpush1.xpose.msra.mxu0 %v735
      %817 = vmatprep.subr.mxu0 0.0
      %818 = vmatpush1.xpose.msra.mxu0 %v732
      %819 = vmatprep.subr.mxu0 0.0
      %820 = vmatpush1.xpose.msra.mxu0 %v729
      %821 = vmatprep.subr.mxu0 0.0
      %822 = vmatpush1.xpose.msra.mxu0 %v726
      %823 = vmatprep.subr.mxu0 0.0
      %824 = vmatpush1.xpose.msra.mxu0 %v723
      %825 = vmatprep.subr.mxu0 0.0
      %826 = vmatpush1.xpose.msra.mxu0 %v720
      %827 = vmatprep.subr.mxu0 0.0
      %828 = vmatpush1.xpose.msra.mxu0 %v717
      %829 = vmatprep.subr.mxu0 0.0
      %830 = vmatpush1.xpose.msra.mxu0 %v714
      %831 = vmatprep.subr.mxu0 0.0
      %832 = vmatpush1.xpose.msra.mxu0 %v711
      %833 = vmatprep.subr.mxu0 0.0
      %834 = vmatpush1.xpose.msra.mxu0 %v708
      %835 = vmatprep.subr.mxu0 0.0
      %836 = vmatpush2.xpose.msra.mxu0 %v801
      %837 = vmatprep.subr.mxu0 0.0
      %838 = vmatpush2.xpose.msra.mxu0 %v798
      %839 = vmatprep.subr.mxu0 0.0
      %840 = vmatpush2.xpose.msra.mxu0 %v795
      %841 = vmatprep.subr.mxu0 0.0
      %842 = vmatpush2.xpose.msra.mxu0 %v792
      %843 = vmatprep.subr.mxu0 0.0
      %844 = vmatpush2.xpose.msra.mxu0 %v789
      %845 = vmatprep.subr.mxu0 0.0
      %846 = vmatpush2.xpose.msra.mxu0 %v786
      %847 = vmatprep.subr.mxu0 0.0
      %848 = vmatpush2.xpose.msra.mxu0 %v783
      %849 = vmatprep.subr.mxu0 0.0
      %850 = vmatpush2.xpose.msra.mxu0 %v780
      %851 = vmatprep.subr.mxu0 0.0
      %852 = vmatpush2.xpose.msra.mxu0 %v777
      %853 = vmatprep.subr.mxu0 0.0
      %854 = vmatpush2.xpose.msra.mxu0 %v774
      %855 = vmatprep.subr.mxu0 0.0
      %856 = vmatpush2.xpose.msra.mxu0 %v771
      %857 = vmatprep.subr.mxu0 0.0
      %858 = vmatpush2.xpose.msra.mxu0 %v768
      %859 = vmatprep.subr.mxu0 0.0
      %860 = vmatpush2.xpose.msra.mxu0 %v765
      %861 = vmatprep.subr.mxu0 0.0
      %862 = vmatpush2.xpose.msra.mxu0 %v762
      %863 = vmatprep.subr.mxu0 0.0
      %864 = vmatpush2.xpose.msra.mxu0 %v759
      %865 = vmatprep.subr.mxu0 0.0
      %866 = vmatpush2.xpose.msra.mxu0 %v756
      %867 = vmatprep.mubr.f32.mxu0 0.0
      %868 = vmatmul.mubr.f32.gmra.mxu0 %v684
      %v869 = vpop.f32.mrf.mxu0
      %v870 = vadd.f32 0.0, %v869
      %v871 = vpop.f32.mrf.mxu0
      %v872 = vadd.f32 0.0, %v871
      %873 = vmatprep.mubr.f32.mxu0 0.0
      %874 = vmatmul.mubr.f32.gmra.mxu0 %v687
      %v875 = vpop.f32.mrf.mxu0
      %v876 = vadd.f32 0.0, %v875
      %v877 = vpop.f32.mrf.mxu0
      %v878 = vadd.f32 0.0, %v877
      %879 = vmatprep.mubr.f32.mxu0 0.0
      %880 = vmatmul.mubr.f32.gmra.mxu0 %v690
      %v881 = vpop.f32.mrf.mxu0
      %v882 = vadd.f32 0.0, %v881
      %v883 = vpop.f32.mrf.mxu0
      %v884 = vadd.f32 0.0, %v883
      %885 = vmatprep.mubr.f32.mxu0 0.0
      %886 = vmatmul.mubr.f32.gmra.mxu0 %v693
      %v887 = vpop.f32.mrf.mxu0
      %v888 = vadd.f32 0.0, %v887
      %v889 = vpop.f32.mrf.mxu0
      %v890 = vadd.f32 0.0, %v889
      %891 = vmatprep.mubr.f32.mxu0 0.0
      %892 = vmatmul.mubr.f32.gmra.mxu0 %v696
      %v893 = vpop.f32.mrf.mxu0
      %v894 = vadd.f32 0.0, %v893
      %v895 = vpop.f32.mrf.mxu0
      %v896 = vadd.f32 0.0, %v895
      %897 = vmatprep.mubr.f32.mxu0 0.0
      %898 = vmatmul.mubr.f32.gmra.mxu0 %v699
      %v899 = vpop.f32.mrf.mxu0
      %v900 = vadd.f32 0.0, %v899
      %v901 = vpop.f32.mrf.mxu0
      %v902 = vadd.f32 0.0, %v901
      %903 = vmatprep.mubr.f32.mxu0 0.0
      %904 = vmatmul.mubr.f32.gmra.mxu0 %v702
      %v905 = vpop.f32.mrf.mxu0
      %v906 = vadd.f32 0.0, %v905
      %v907 = vpop.f32.mrf.mxu0
      %v908 = vadd.f32 0.0, %v907
      %909 = vmatprep.mubr.f32.mxu0 0.0
      %910 = vmatmul.mubr.f32.gmra.mxu0 %v705
      %v911 = vpop.f32.mrf.mxu0
      %v912 = vadd.f32 0.0, %v911
      %v913 = vpop.f32.mrf.mxu0
      %v914 = vadd.f32 0.0, %v913
      %915 = vdwg.mxu0
      %v917 = vcombine.high %v409, %v409
      %vm918 = vcmask 23552
      %v920 = vsel %vm918, %v667, 0
      %v923 = vsel %vm918, %v668, 0
      %v926 = vsel %vm918, %v669, 0
      %v929 = vsel %vm918, %v670, 0
      %v932 = vsel %vm918, %v671, 0
      %v935 = vsel %vm918, %v672, 0
      %v938 = vsel %vm918, %v673, 0
      %v941 = vsel %vm918, %v674, 0
      %vm943 = vcmask 1042432
      %v944 = vsel %vm943, %v409, 0
      %v946 = vsel %vm943, %v917, 0
      %948 = vmatprep.subr.mxu0 0.0
      %949 = vmatpush1.msra.mxu0 0.0
      %950 = vmatprep.subr.mxu0 0.0
      %951 = vmatpush1.msra.mxu0 0.0
      %952 = vmatprep.subr.mxu0 0.0
      %953 = vmatpush1.msra.mxu0 0.0
      %954 = vmatprep.subr.mxu0 0.0
      %955 = vmatpush1.msra.mxu0 0.0
      %956 = vmatprep.subr.mxu0 0.0
      %957 = vmatpush1.msra.mxu0 0.0
      %958 = vmatprep.subr.mxu0 0.0
      %959 = vmatpush1.msra.mxu0 0.0
      %960 = vmatprep.subr.mxu0 0.0
      %961 = vmatpush1.msra.mxu0 0.0
      %962 = vmatprep.subr.mxu0 0.0
      %963 = vmatpush1.msra.mxu0 0.0
      %964 = vmatprep.subr.mxu0 0.0
      %965 = vmatpush1.msra.mxu0 0.0
      %966 = vmatprep.subr.mxu0 0.0
      %967 = vmatpush1.msra.mxu0 0.0
      %968 = vmatprep.subr.mxu0 0.0
      %969 = vmatpush1.msra.mxu0 0.0
      %970 = vmatprep.subr.mxu0 0.0
      %971 = vmatpush1.msra.mxu0 0.0
      %972 = vmatprep.subr.mxu0 0.0
      %973 = vmatpush1.msra.mxu0 0.0
      %974 = vmatprep.subr.mxu0 0.0
      %975 = vmatpush1.msra.mxu0 0.0
      %976 = vmatprep.subr.mxu0 0.0
      %977 = vmatpush1.msra.mxu0 0.0
      %978 = vmatprep.subr.mxu0 %v946
      %979 = vmatpush1.msra.mxu0 %v944
      %980 = vmatprep.subr.mxu0 0.0
      %981 = vmatpush2.msra.mxu0 0.0
      %982 = vmatprep.subr.mxu0 0.0
      %983 = vmatpush2.msra.mxu0 0.0
      %984 = vmatprep.subr.mxu0 0.0
      %985 = vmatpush2.msra.mxu0 0.0
      %986 = vmatprep.subr.mxu0 0.0
      %987 = vmatpush2.msra.mxu0 0.0
      %988 = vmatprep.subr.mxu0 0.0
      %989 = vmatpush2.msra.mxu0 0.0
      %990 = vmatprep.subr.mxu0 0.0
      %991 = vmatpush2.msra.mxu0 0.0
      %992 = vmatprep.subr.mxu0 0.0
      %993 = vmatpush2.msra.mxu0 0.0
      %994 = vmatprep.subr.mxu0 0.0
      %995 = vmatpush2.msra.mxu0 0.0
      %996 = vmatprep.subr.mxu0 0.0
      %997 = vmatpush2.msra.mxu0 0.0
      %998 = vmatprep.subr.mxu0 0.0
      %999 = vmatpush2.msra.mxu0 0.0
      %1000 = vmatprep.subr.mxu0 0.0
      %1001 = vmatpush2.msra.mxu0 0.0
      %1002 = vmatprep.subr.mxu0 0.0
      %1003 = vmatpush2.msra.mxu0 0.0
      %1004 = vmatprep.subr.mxu0 0.0
      %1005 = vmatpush2.msra.mxu0 0.0
      %1006 = vmatprep.subr.mxu0 0.0
      %1007 = vmatpush2.msra.mxu0 0.0
      %1008 = vmatprep.subr.mxu0 0.0
      %1009 = vmatpush2.msra.mxu0 0.0
      %1010 = vmatprep.subr.mxu0 0.0
      %1011 = vmatpush2.msra.mxu0 0.0
      %1012 = vmatprep.mubr.f32.mxu0 0.0
      %1013 = vmatmul.mubr.f32.gmra.mxu0 %v920
      %v1014 = vpop.f32.mrf.mxu0
      %v1015 = vadd.f32 %v870, %v1014
      %v1016 = vpop.f32.mrf.mxu0
      %v1017 = vadd.f32 %v872, %v1016
      %1018 = vmatprep.mubr.f32.mxu0 0.0
      %1019 = vmatmul.mubr.f32.gmra.mxu0 %v923
      %v1020 = vpop.f32.mrf.mxu0
      %v1021 = vadd.f32 %v876, %v1020
      %v1022 = vpop.f32.mrf.mxu0
      %v1023 = vadd.f32 %v878, %v1022
      %1024 = vmatprep.mubr.f32.mxu0 0.0
      %1025 = vmatmul.mubr.f32.gmra.mxu0 %v926
      %v1026 = vpop.f32.mrf.mxu0
      %v1027 = vadd.f32 %v882, %v1026
      %v1028 = vpop.f32.mrf.mxu0
      %v1029 = vadd.f32 %v884, %v1028
      %1030 = vmatprep.mubr.f32.mxu0 0.0
      %1031 = vmatmul.mubr.f32.gmra.mxu0 %v929
      %v1032 = vpop.f32.mrf.mxu0
      %v1033 = vadd.f32 %v888, %v1032
      %v1034 = vpop.f32.mrf.mxu0
      %v1035 = vadd.f32 %v890, %v1034
      %1036 = vmatprep.mubr.f32.mxu0 0.0
      %1037 = vmatmul.mubr.f32.gmra.mxu0 %v932
      %v1038 = vpop.f32.mrf.mxu0
      %v1039 = vadd.f32 %v894, %v1038
      %v1040 = vpop.f32.mrf.mxu0
      %v1041 = vadd.f32 %v896, %v1040
      %1042 = vmatprep.mubr.f32.mxu0 0.0
      %1043 = vmatmul.mubr.f32.gmra.mxu0 %v935
      %v1044 = vpop.f32.mrf.mxu0
      %v1045 = vadd.f32 %v900, %v1044
      %v1046 = vpop.f32.mrf.mxu0
      %v1047 = vadd.f32 %v902, %v1046
      %1048 = vmatprep.mubr.f32.mxu0 0.0
      %1049 = vmatmul.mubr.f32.gmra.mxu0 %v938
      %v1050 = vpop.f32.mrf.mxu0
      %v1051 = vadd.f32 %v906, %v1050
      %v1052 = vpop.f32.mrf.mxu0
      %v1053 = vadd.f32 %v908, %v1052
      %1054 = vmatprep.mubr.f32.mxu0 0.0
      %1055 = vmatmul.mubr.f32.gmra.mxu0 %v941
      %v1056 = vpop.f32.mrf.mxu0
      %v1057 = vadd.f32 %v912, %v1056
      %v1058 = vpop.f32.mrf.mxu0
      %v1059 = vadd.f32 %v914, %v1058
      %1060 = vdwg.mxu0
      %v1061 = vld [vmem:[%s4] sm:$0xff]
      %v1062 = vld [vmem:[%s4 + $0x8] sm:$0xff]
      %v1063 = vld [vmem:[%s4 + $0x10] sm:$0xff]
      %v1064 = vld [vmem:[%s4 + $0x18] sm:$0xff]
      %v1065 = vld [vmem:[%s4 + $0x20] sm:$0xff]
      %v1066 = vld [vmem:[%s4 + $0x28] sm:$0xff]
      %v1067 = vld [vmem:[%s4 + $0x30] sm:$0xff]
      %v1068 = vld [vmem:[%s4 + $0x38] sm:$0xff]
      %1070 = vset.pattern.permute.xlu0 0
      %1071 = vperm.xlu0 %1070, %v1061
      %v1072 = vpop.permute.xlu0 %1071
      %1075 = vset.pattern.permute.xlu0 0
      %1076 = vperm.xlu0 %1075, %v1062
      %v1077 = vpop.permute.xlu0 %1076
      %1080 = vset.pattern.permute.xlu0 0
      %1081 = vperm.xlu0 %1080, %v1063
      %v1082 = vpop.permute.xlu0 %1081
      %1085 = vset.pattern.permute.xlu0 0
      %1086 = vperm.xlu0 %1085, %v1064
      %v1087 = vpop.permute.xlu0 %1086
      %1090 = vset.pattern.permute.xlu0 0
      %1091 = vperm.xlu0 %1090, %v1065
      %v1092 = vpop.permute.xlu0 %1091
      %1095 = vset.pattern.permute.xlu0 0
      %1096 = vperm.xlu0 %1095, %v1066
      %v1097 = vpop.permute.xlu0 %1096
      %1100 = vset.pattern.permute.xlu0 0
      %1101 = vperm.xlu0 %1100, %v1067
      %v1102 = vpop.permute.xlu0 %1101
      %1105 = vset.pattern.permute.xlu0 0
      %1106 = vperm.xlu0 %1105, %v1068
      %v1107 = vpop.permute.xlu0 %1106
      %v1109 = vadd.f32 %v1015, %v1072
      %v1110 = vadd.f32 %v1017, %v1072
      %v1111 = vadd.f32 %v1021, %v1077
      %v1112 = vadd.f32 %v1023, %v1077
      %v1113 = vadd.f32 %v1027, %v1082
      %v1114 = vadd.f32 %v1029, %v1082
      %v1115 = vadd.f32 %v1033, %v1087
      %v1116 = vadd.f32 %v1035, %v1087
      %v1117 = vadd.f32 %v1039, %v1092
      %v1118 = vadd.f32 %v1041, %v1092
      %v1119 = vadd.f32 %v1045, %v1097
      %v1120 = vadd.f32 %v1047, %v1097
      %v1121 = vadd.f32 %v1051, %v1102
      %v1122 = vadd.f32 %v1053, %v1102
      %v1123 = vadd.f32 %v1057, %v1107
      %v1124 = vadd.f32 %v1059, %v1107
      %v1125 = vmax.f32 %v1109, 0.0
      %v1126 = vmax.f32 %v1110, 0.0
      %v1127 = vmax.f32 %v1111, 0.0
      %v1128 = vmax.f32 %v1112, 0.0
      %v1129 = vmax.f32 %v1113, 0.0
      %v1130 = vmax.f32 %v1114, 0.0
      %v1131 = vmax.f32 %v1115, 0.0
      %v1132 = vmax.f32 %v1116, 0.0
      %v1133 = vmax.f32 %v1117, 0.0
      %v1134 = vmax.f32 %v1118, 0.0
      %v1135 = vmax.f32 %v1119, 0.0
      %v1136 = vmax.f32 %v1120, 0.0
      %v1137 = vmax.f32 %v1121, 0.0
      %v1138 = vmax.f32 %v1122, 0.0
      %v1139 = vmax.f32 %v1123, 0.0
      %v1140 = vmax.f32 %v1124, 0.0
      %v1141 = vand.u32 2147483647, %v1109
      %v1142 = vand.u32 2147483647, %v1110
      %v1143 = vand.u32 2147483647, %v1111
      %v1144 = vand.u32 2147483647, %v1112
      %v1145 = vand.u32 2147483647, %v1113
      %v1146 = vand.u32 2147483647, %v1114
      %v1147 = vand.u32 2147483647, %v1115
      %v1148 = vand.u32 2147483647, %v1116
      %v1149 = vand.u32 2147483647, %v1117
      %v1150 = vand.u32 2147483647, %v1118
      %v1151 = vand.u32 2147483647, %v1119
      %v1152 = vand.u32 2147483647, %v1120
      %v1153 = vand.u32 2147483647, %v1121
      %v1154 = vand.u32 2147483647, %v1122
      %v1155 = vand.u32 2147483647, %v1123
      %v1156 = vand.u32 2147483647, %v1124
      %v1157 = vsub.f32 0.0, %v1141
      %v1158 = vsub.f32 0.0, %v1142
      %v1159 = vsub.f32 0.0, %v1143
      %v1160 = vsub.f32 0.0, %v1144
      %v1161 = vsub.f32 0.0, %v1145
      %v1162 = vsub.f32 0.0, %v1146
      %v1163 = vsub.f32 0.0, %v1147
      %v1164 = vsub.f32 0.0, %v1148
      %v1165 = vsub.f32 0.0, %v1149
      %v1166 = vsub.f32 0.0, %v1150
      %v1167 = vsub.f32 0.0, %v1151
      %v1168 = vsub.f32 0.0, %v1152
      %v1169 = vsub.f32 0.0, %v1153
      %v1170 = vsub.f32 0.0, %v1154
      %v1171 = vsub.f32 0.0, %v1155
      %v1172 = vsub.f32 0.0, %v1156
      %v1173 = vmul.f32 %v1157, 1.442695
      %v1174 = vpow.pop %v1173
      %v1175 = vmul.f32 %v1158, 1.442695
      %v1176 = vpow.pop %v1175
      %v1177 = vmul.f32 %v1159, 1.442695
      %v1178 = vpow.pop %v1177
      %v1179 = vmul.f32 %v1160, 1.442695
      %v1180 = vpow.pop %v1179
      %v1181 = vmul.f32 %v1161, 1.442695
      %v1182 = vpow.pop %v1181
      %v1183 = vmul.f32 %v1162, 1.442695
      %v1184 = vpow.pop %v1183
      %v1185 = vmul.f32 %v1163, 1.442695
      %v1186 = vpow.pop %v1185
      %v1187 = vmul.f32 %v1164, 1.442695
      %v1188 = vpow.pop %v1187
      %v1189 = vmul.f32 %v1165, 1.442695
      %v1190 = vpow.pop %v1189
      %v1191 = vmul.f32 %v1166, 1.442695
      %v1192 = vpow.pop %v1191
      %v1193 = vmul.f32 %v1167, 1.442695
      %v1194 = vpow.pop %v1193
      %v1195 = vmul.f32 %v1168, 1.442695
      %v1196 = vpow.pop %v1195
      %v1197 = vmul.f32 %v1169, 1.442695
      %v1198 = vpow.pop %v1197
      %v1199 = vmul.f32 %v1170, 1.442695
      %v1200 = vpow.pop %v1199
      %v1201 = vmul.f32 %v1171, 1.442695
      %v1202 = vpow.pop %v1201
      %v1203 = vmul.f32 %v1172, 1.442695
      %v1204 = vpow.pop %v1203
      %v1205 = vadd.f32 %v1174, 1.0
      %v1206 = vadd.f32 %v1176, 1.0
      %v1207 = vadd.f32 %v1178, 1.0
      %v1208 = vadd.f32 %v1180, 1.0
      %v1209 = vadd.f32 %v1182, 1.0
      %v1210 = vadd.f32 %v1184, 1.0
      %v1211 = vadd.f32 %v1186, 1.0
      %v1212 = vadd.f32 %v1188, 1.0
      %v1213 = vadd.f32 %v1190, 1.0
      %v1214 = vadd.f32 %v1192, 1.0
      %v1215 = vadd.f32 %v1194, 1.0
      %v1216 = vadd.f32 %v1196, 1.0
      %v1217 = vadd.f32 %v1198, 1.0
      %v1218 = vadd.f32 %v1200, 1.0
      %v1219 = vadd.f32 %v1202, 1.0
      %v1220 = vadd.f32 %v1204, 1.0
      %v1221 = vlog2.pop %v1205
      %v1222 = vmul.f32 %v1221, 0.6931472
      %v1223 = vlog2.pop %v1206
      %v1224 = vmul.f32 %v1223, 0.6931472
      %v1225 = vlog2.pop %v1207
      %v1226 = vmul.f32 %v1225, 0.6931472
      %v1227 = vlog2.pop %v1208
      %v1228 = vmul.f32 %v1227, 0.6931472
      %v1229 = vlog2.pop %v1209
      %v1230 = vmul.f32 %v1229, 0.6931472
      %v1231 = vlog2.pop %v1210
      %v1232 = vmul.f32 %v1231, 0.6931472
      %v1233 = vlog2.pop %v1211
      %v1234 = vmul.f32 %v1233, 0.6931472
      %v1235 = vlog2.pop %v1212
      %v1236 = vmul.f32 %v1235, 0.6931472
      %v1237 = vlog2.pop %v1213
      %v1238 = vmul.f32 %v1237, 0.6931472
      %v1239 = vlog2.pop %v1214
      %v1240 = vmul.f32 %v1239, 0.6931472
      %v1241 = vlog2.pop %v1215
      %v1242 = vmul.f32 %v1241, 0.6931472
      %v1243 = vlog2.pop %v1216
      %v1244 = vmul.f32 %v1243, 0.6931472
      %v1245 = vlog2.pop %v1217
      %v1246 = vmul.f32 %v1245, 0.6931472
      %v1247 = vlog2.pop %v1218
      %v1248 = vmul.f32 %v1247, 0.6931472
      %v1249 = vlog2.pop %v1219
      %v1250 = vmul.f32 %v1249, 0.6931472
      %v1251 = vlog2.pop %v1220
      %v1252 = vmul.f32 %v1251, 0.6931472
      %v1253 = vadd.f32 %v1125, %v1222
      %v1254 = vadd.f32 %v1126, %v1224
      %v1255 = vadd.f32 %v1127, %v1226
      %v1256 = vadd.f32 %v1128, %v1228
      %v1257 = vadd.f32 %v1129, %v1230
      %v1258 = vadd.f32 %v1130, %v1232
      %v1259 = vadd.f32 %v1131, %v1234
      %v1260 = vadd.f32 %v1132, %v1236
      %v1261 = vadd.f32 %v1133, %v1238
      %v1262 = vadd.f32 %v1134, %v1240
      %v1263 = vadd.f32 %v1135, %v1242
      %v1264 = vadd.f32 %v1136, %v1244
      %v1265 = vadd.f32 %v1137, %v1246
      %v1266 = vadd.f32 %v1138, %v1248
      %v1267 = vadd.f32 %v1139, %v1250
      %v1268 = vadd.f32 %v1140, %v1252
      %v1269 = vld [vmem:[%s5] sm:$0xff]
      %v1270 = vld [vmem:[%s5 + $0x8] sm:$0xff]
      %v1271 = vld [vmem:[%s5 + $0x10] sm:$0xff]
      %v1272 = vld [vmem:[%s5 + $0x18] sm:$0xff]
      %v1273 = vld [vmem:[%s5 + $0x20] sm:$0x1]
      %v1274 = vld [vmem:[%s6] sm:$0xff]
      %v1275 = vld [vmem:[%s6 + $0x8] sm:$0xff]
      %v1276 = vld [vmem:[%s6 + $0x10] sm:$0xff]
      %v1277 = vld [vmem:[%s6 + $0x18] sm:$0xff]
      %v1278 = vld [vmem:[%s6 + $0x20] sm:$0x1]
      %1280 = vset.pattern.permute.xlu0 0
      %1281 = vperm.xlu0 %1280, %v1274
      %v1282 = vpop.permute.xlu0 %1281
      %1285 = vset.pattern.permute.xlu0 0
      %1286 = vperm.xlu0 %1285, %v1275
      %v1287 = vpop.permute.xlu0 %1286
      %1290 = vset.pattern.permute.xlu0 0
      %1291 = vperm.xlu0 %1290, %v1276
      %v1292 = vpop.permute.xlu0 %1291
      %1295 = vset.pattern.permute.xlu0 0
      %1296 = vperm.xlu0 %1295, %v1277
      %v1297 = vpop.permute.xlu0 %1296
      %1300 = vset.pattern.permute.xlu0 0
      %1301 = vperm.xlu0 %1300, %v1278
      %v1302 = vpop.permute.xlu0 %1301
      %vm1304 = vcmask 523264
      %v1306 = vsel %vm1304, %v1269, 0
      %v1309 = vsel %vm1304, %v1270, 0
      %v1312 = vsel %vm1304, %v1271, 0
      %v1315 = vsel %vm1304, %v1272, 0
      %v1318 = vsel %vm1304, %v1273, 0
      %1320 = vmatprep.subr.mxu0 0.0
      %1321 = vmatpush1.msra.mxu0 0.0
      %1322 = vmatprep.subr.mxu0 0.0
      %1323 = vmatpush1.msra.mxu0 0.0
      %1324 = vmatprep.subr.mxu0 0.0
      %1325 = vmatpush1.msra.mxu0 0.0
      %1326 = vmatprep.subr.mxu0 0.0
      %1327 = vmatpush1.msra.mxu0 0.0
      %1328 = vmatprep.subr.mxu0 0.0
      %1329 = vmatpush1.msra.mxu0 0.0
      %1330 = vmatprep.subr.mxu0 0.0
      %1331 = vmatpush1.msra.mxu0 0.0
      %1332 = vmatprep.subr.mxu0 0.0
      %1333 = vmatpush1.msra.mxu0 0.0
      %1334 = vmatprep.subr.mxu0 0.0
      %1335 = vmatpush1.msra.mxu0 0.0
      %1336 = vmatprep.subr.mxu0 %v1268
      %1337 = vmatpush1.msra.mxu0 %v1267
      %1338 = vmatprep.subr.mxu0 %v1266
      %1339 = vmatpush1.msra.mxu0 %v1265
      %1340 = vmatprep.subr.mxu0 %v1264
      %1341 = vmatpush1.msra.mxu0 %v1263
      %1342 = vmatprep.subr.mxu0 %v1262
      %1343 = vmatpush1.msra.mxu0 %v1261
      %1344 = vmatprep.subr.mxu0 %v1260
      %1345 = vmatpush1.msra.mxu0 %v1259
      %1346 = vmatprep.subr.mxu0 %v1258
      %1347 = vmatpush1.msra.mxu0 %v1257
      %1348 = vmatprep.subr.mxu0 %v1256
      %1349 = vmatpush1.msra.mxu0 %v1255
      %1350 = vmatprep.subr.mxu0 %v1254
      %1351 = vmatpush1.msra.mxu0 %v1253
      %1352 = vmatprep.subr.mxu0 0.0
      %1353 = vmatpush2.msra.mxu0 0.0
      %1354 = vmatprep.subr.mxu0 0.0
      %1355 = vmatpush2.msra.mxu0 0.0
      %1356 = vmatprep.subr.mxu0 0.0
      %1357 = vmatpush2.msra.mxu0 0.0
      %1358 = vmatprep.subr.mxu0 0.0
      %1359 = vmatpush2.msra.mxu0 0.0
      %1360 = vmatprep.subr.mxu0 0.0
      %1361 = vmatpush2.msra.mxu0 0.0
      %1362 = vmatprep.subr.mxu0 0.0
      %1363 = vmatpush2.msra.mxu0 0.0
      %1364 = vmatprep.subr.mxu0 0.0
      %1365 = vmatpush2.msra.mxu0 0.0
      %1366 = vmatprep.subr.mxu0 0.0
      %1367 = vmatpush2.msra.mxu0 0.0
      %1368 = vmatprep.subr.mxu0 0.0
      %1369 = vmatpush2.msra.mxu0 0.0
      %1370 = vmatprep.subr.mxu0 0.0
      %1371 = vmatpush2.msra.mxu0 0.0
      %1372 = vmatprep.subr.mxu0 0.0
      %1373 = vmatpush2.msra.mxu0 0.0
      %1374 = vmatprep.subr.mxu0 0.0
      %1375 = vmatpush2.msra.mxu0 0.0
      %1376 = vmatprep.subr.mxu0 0.0
      %1377 = vmatpush2.msra.mxu0 0.0
      %1378 = vmatprep.subr.mxu0 0.0
      %1379 = vmatpush2.msra.mxu0 0.0
      %1380 = vmatprep.subr.mxu0 0.0
      %1381 = vmatpush2.msra.mxu0 0.0
      %1382 = vmatprep.subr.mxu0 0.0
      %1383 = vmatpush2.msra.mxu0 0.0
      %1384 = vmatprep.mubr.f32.mxu0 0.0
      %1385 = vmatmul.mubr.f32.gmra.mxu0 %v1306
      %v1386 = vpop.f32.mrf.mxu0
      %v1387 = vadd.f32 %v1282, %v1386
      %v1388 = vpop.f32.mrf.mxu0
      %v1389 = vadd.f32 %v1282, %v1388
      %1390 = vmatprep.mubr.f32.mxu0 0.0
      %1391 = vmatmul.mubr.f32.gmra.mxu0 %v1309
      %v1392 = vpop.f32.mrf.mxu0
      %v1393 = vadd.f32 %v1287, %v1392
      %v1394 = vpop.f32.mrf.mxu0
      %v1395 = vadd.f32 %v1287, %v1394
      %1396 = vmatprep.mubr.f32.mxu0 0.0
      %1397 = vmatmul.mubr.f32.gmra.mxu0 %v1312
      %v1398 = vpop.f32.mrf.mxu0
      %v1399 = vadd.f32 %v1292, %v1398
      %v1400 = vpop.f32.mrf.mxu0
      %v1401 = vadd.f32 %v1292, %v1400
      %1402 = vmatprep.mubr.f32.mxu0 0.0
      %1403 = vmatmul.mubr.f32.gmra.mxu0 %v1315
      %v1404 = vpop.f32.mrf.mxu0
      %v1405 = vadd.f32 %v1297, %v1404
      %v1406 = vpop.f32.mrf.mxu0
      %v1407 = vadd.f32 %v1297, %v1406
      %1408 = vmatprep.mubr.f32.mxu0 0.0
      %1409 = vmatmul.mubr.f32.gmra.mxu0 %v1318
      %v1410 = vpop.f32.mrf.mxu0
      %v1411 = vadd.f32 %v1302, %v1410
      %v1412 = vpop.f32.mrf.mxu0
      %v1413 = vadd.f32 %v1302, %v1412
      %1414 = vdwg.mxu0
      %v1415 = vsub.f32 0.0, %v1387
      %v1416 = vsub.f32 0.0, %v1389
      %v1417 = vsub.f32 0.0, %v1393
      %v1418 = vsub.f32 0.0, %v1395
      %v1419 = vsub.f32 0.0, %v1399
      %v1420 = vsub.f32 0.0, %v1401
      %v1421 = vsub.f32 0.0, %v1405
      %v1422 = vsub.f32 0.0, %v1407
      %v1423 = vsub.f32 0.0, %v1411
      %v1424 = vsub.f32 0.0, %v1413
      %v1425 = vmul.f32 %v1415, 1.442695
      %v1426 = vpow.pop %v1425
      %v1427 = vmul.f32 %v1416, 1.442695
      %v1428 = vpow.pop %v1427
      %v1429 = vmul.f32 %v1417, 1.442695
      %v1430 = vpow.pop %v1429
      %v1431 = vmul.f32 %v1418, 1.442695
      %v1432 = vpow.pop %v1431
      %v1433 = vmul.f32 %v1419, 1.442695
      %v1434 = vpow.pop %v1433
      %v1435 = vmul.f32 %v1420, 1.442695
      %v1436 = vpow.pop %v1435
      %v1437 = vmul.f32 %v1421, 1.442695
      %v1438 = vpow.pop %v1437
      %v1439 = vmul.f32 %v1422, 1.442695
      %v1440 = vpow.pop %v1439
      %v1441 = vmul.f32 %v1423, 1.442695
      %v1442 = vpow.pop %v1441
      %v1443 = vmul.f32 %v1424, 1.442695
      %v1444 = vpow.pop %v1443
      %v1445 = vadd.f32 %v1426, 1.0
      %v1446 = vadd.f32 %v1428, 1.0
      %v1447 = vadd.f32 %v1430, 1.0
      %v1448 = vadd.f32 %v1432, 1.0
      %v1449 = vadd.f32 %v1434, 1.0
      %v1450 = vadd.f32 %v1436, 1.0
      %v1451 = vadd.f32 %v1438, 1.0
      %v1452 = vadd.f32 %v1440, 1.0
      %v1453 = vadd.f32 %v1442, 1.0
      %v1454 = vadd.f32 %v1444, 1.0
      %v1455 = vrcp.pop %v1445
      %v1456 = vrcp.pop %v1446
      %v1457 = vrcp.pop %v1447
      %v1458 = vrcp.pop %v1448
      %v1459 = vrcp.pop %v1449
      %v1460 = vrcp.pop %v1450
      %v1461 = vrcp.pop %v1451
      %v1462 = vrcp.pop %v1452
      %v1463 = vrcp.pop %v1453
      %v1464 = vrcp.pop %v1454
      %v1465 = vmul.f32 %v1455, 1.002
      %v1466 = vmul.f32 %v1456, 1.002
      %v1467 = vmul.f32 %v1457, 1.002
      %v1468 = vmul.f32 %v1458, 1.002
      %v1469 = vmul.f32 %v1459, 1.002
      %v1470 = vmul.f32 %v1460, 1.002
      %v1471 = vmul.f32 %v1461, 1.002
      %v1472 = vmul.f32 %v1462, 1.002
      %v1473 = vmul.f32 %v1463, 1.002
      %v1474 = vmul.f32 %v1464, 1.002
      %v1475 = vsub.f32 %v1465, 0.001
      %v1476 = vsub.f32 %v1466, 0.001
      %v1477 = vsub.f32 %v1467, 0.001
      %v1478 = vsub.f32 %v1468, 0.001
      %v1479 = vsub.f32 %v1469, 0.001
      %v1480 = vsub.f32 %v1470, 0.001
      %v1481 = vsub.f32 %v1471, 0.001
      %v1482 = vsub.f32 %v1472, 0.001
      %v1483 = vsub.f32 %v1473, 0.001
      %v1484 = vsub.f32 %v1474, 0.001
      %v1485 = vlaneseq
      %v1486 = vshrl.u32 %v1485, 7
      %v1487 = vadd.s32 %v1486, 8
      %v1488 = vadd.s32 %v1486, 16
      %v1489 = vadd.s32 %v1486, 24
      %v1490 = vadd.s32 %v1486, 32
      %vm1491 = vcmp.eq.s32.totalorder %v1486, 0
      %vm1492 = vcmp.eq.s32.totalorder %v1487, 0
      %vm1493 = vcmp.eq.s32.totalorder %v1488, 0
      %vm1494 = vcmp.eq.s32.totalorder %v1489, 0
      %vm1495 = vcmp.eq.s32.totalorder %v1490, 0
      %v1496 = vsel %vm1491, %v1387, %v1475
      %v1497 = vsel %vm1491, %v1389, %v1476
      %v1498 = vsel %vm1492, %v1393, %v1477
      %v1499 = vsel %vm1492, %v1395, %v1478
      %v1500 = vsel %vm1493, %v1399, %v1479
      %v1501 = vsel %vm1493, %v1401, %v1480
      %v1502 = vsel %vm1494, %v1405, %v1481
      %v1503 = vsel %vm1494, %v1407, %v1482
      %v1504 = vsel %vm1495, %v1411, %v1483
      %v1505 = vsel %vm1495, %v1413, %v1484
      %v1506 = vadd.f32 %v409, 1.0
      %v1507 = vmul.f32 %v1506, 3.5
      %v1508 = vmax.f32 %v1507, 0.0
      %v1509 = vmin.f32 %v1508, 7.0
      %v1510 = vfloor.f32 %v1509
      %v1511 = vsub.f32 %v1509, %v1510
      %v1512 = vcvt.f32.s32.to.zero.pseudo %v1510
      %v1513 = vadd.s32 %v1512, 1
      %vm1514 = vcmp.lt.s32.totalorder %v1513, 7
      %v1515 = vsel %vm1514, %v1513, 7
      %v1516 = vsub.f32 1.0, %v1511
      %v1517 = vmul.u32 %v1512, 8
      %v1518 = vrot.slane %v1512, 7
      %v1519 = vadd.s32 %v1517, %v1518
      %v1520 = vmul.u32 %v1519, 8
      %v1522 = vrot.slane %v1516, 7
      %v1524 = vmul.f32 %v1516, %v1522
      %v1525 = vrot.slane %v1512, 6
      %v1526 = vadd.s32 %v1520, %v1525
      %v1527 = vrot.slane %v1516, 6
      %v1529 = vmul.f32 %v1524, %v1527
      %v1530 = vrot.slane %v1515, 6
      %v1531 = vadd.s32 %v1520, %v1530
      %v1533 = vrot.slane %v1511, 6
      %v1535 = vmul.f32 %v1524, %v1533
      %v1536 = vrot.slane %v1515, 7
      %v1537 = vadd.s32 %v1517, %v1536
      %v1538 = vmul.u32 %v1537, 8
      %v1539 = vrot.slane %v1511, 7
      %v1541 = vmul.f32 %v1516, %v1539
      %v1542 = vadd.s32 %v1538, %v1525
      %v1543 = vmul.f32 %v1541, %v1527
      %v1544 = vadd.s32 %v1538, %v1530
      %v1545 = vmul.f32 %v1541, %v1533
      %v1546 = vmul.u32 %v1515, 8
      %v1547 = vadd.s32 %v1546, %v1518
      %v1548 = vmul.u32 %v1547, 8
      %v1549 = vmul.f32 %v1511, %v1522
      %v1550 = vadd.s32 %v1548, %v1525
      %v1551 = vmul.f32 %v1549, %v1527
      %v1552 = vadd.s32 %v1548, %v1530
      %v1553 = vmul.f32 %v1549, %v1533
      %v1554 = vadd.s32 %v1546, %v1536
      %v1555 = vmul.u32 %v1554, 8
      %v1556 = vmul.f32 %v1511, %v1539
      %v1557 = vadd.s32 %v1555, %v1525
      %v1558 = vmul.f32 %v1556, %v1527
      %v1559 = vadd.s32 %v1555, %v1530
      %v1560 = vmul.f32 %v1556, %v1533
      %v1561 = vadd.s32 %v1486, 40
      %v1562 = vadd.s32 %v1486, 48
      %v1563 = vadd.s32 %v1486, 56
      %v1564 = vadd.s32 %v1486, 64
      %v1565 = vadd.s32 %v1486, 72
      %v1566 = vadd.s32 %v1486, 80
      %v1567 = vadd.s32 %v1486, 88
      %v1568 = vadd.s32 %v1486, 96
      %v1569 = vadd.s32 %v1486, 104
      %v1570 = vadd.s32 %v1486, 112
      %v1571 = vadd.s32 %v1486, 120
      %v1572 = vadd.s32 %v1486, 128
      %v1573 = vadd.s32 %v1486, 136
      %v1574 = vadd.s32 %v1486, 144
      %v1575 = vadd.s32 %v1486, 152
      %v1576 = vadd.s32 %v1486, 160
      %v1577 = vadd.s32 %v1486, 168
      %v1578 = vadd.s32 %v1486, 176
      %v1579 = vadd.s32 %v1486, 184
      %v1580 = vadd.s32 %v1486, 192
      %v1581 = vadd.s32 %v1486, 200
      %v1582 = vadd.s32 %v1486, 208
      %v1583 = vadd.s32 %v1486, 216
      %v1584 = vadd.s32 %v1486, 224
      %v1585 = vadd.s32 %v1486, 232
      %v1586 = vadd.s32 %v1486, 240
      %v1587 = vadd.s32 %v1486, 248
      %v1588 = vadd.s32 %v1486, 256
      %v1589 = vadd.s32 %v1486, 264
      %v1590 = vadd.s32 %v1486, 272
      %v1591 = vadd.s32 %v1486, 280
      %v1592 = vadd.s32 %v1486, 288
      %v1593 = vadd.s32 %v1486, 296
      %v1594 = vadd.s32 %v1486, 304
      %v1595 = vadd.s32 %v1486, 312
      %v1596 = vadd.s32 %v1486, 320
      %v1597 = vadd.s32 %v1486, 328
      %v1598 = vadd.s32 %v1486, 336
      %v1599 = vadd.s32 %v1486, 344
      %v1600 = vadd.s32 %v1486, 352
      %v1601 = vadd.s32 %v1486, 360
      %v1602 = vadd.s32 %v1486, 368
      %v1603 = vadd.s32 %v1486, 376
      %v1604 = vadd.s32 %v1486, 384
      %v1605 = vadd.s32 %v1486, 392
      %v1606 = vadd.s32 %v1486, 400
      %v1607 = vadd.s32 %v1486, 408
      %v1608 = vadd.s32 %v1486, 416
      %v1609 = vadd.s32 %v1486, 424
      %v1610 = vadd.s32 %v1486, 432
      %v1611 = vadd.s32 %v1486, 440
      %v1612 = vadd.s32 %v1486, 448
      %v1613 = vadd.s32 %v1486, 456
      %v1614 = vadd.s32 %v1486, 464
      %v1615 = vadd.s32 %v1486, 472
      %v1616 = vadd.s32 %v1486, 480
      %v1617 = vadd.s32 %v1486, 488
      %v1618 = vadd.s32 %v1486, 496
      %v1619 = vadd.s32 %v1486, 504
      %v1620 = vlaneseq
      %v1621 = vshrl.u32 %v1620, 7
      %v1622 = vsub.s32 2, %v1621
      %v1623 = vrot.slane %v1526, %v1622
      %v1624 = vlaneseq
      %v1625 = vshrl.u32 %v1624, 7
      %v1626 = vsub.s32 6, %v1625
      %v1627 = vrot.slane %v1526, %v1626
      %v1628 = vlaneseq
      %v1629 = vshrl.u32 %v1628, 7
      %v1630 = vsub.s32 2, %v1629
      %v1631 = vrot.slane %v1623, %v1630
      %v1632 = vlaneseq
      %v1633 = vshrl.u32 %v1632, 7
      %v1634 = vsub.s32 2, %v1633
      %v1635 = vrot.slane %v1627, %v1634
      %vm1636 = vcmp.eq.s32.totalorder %v1486, %v1631
      %vm1637 = vcmp.eq.s32.totalorder %v1486, %v1635
      %vm1638 = vcmp.eq.s32.totalorder %v1487, %v1631
      %vm1639 = vcmp.eq.s32.totalorder %v1487, %v1635
      %vm1640 = vcmp.eq.s32.totalorder %v1488, %v1631
      %vm1641 = vcmp.eq.s32.totalorder %v1488, %v1635
      %vm1642 = vcmp.eq.s32.totalorder %v1489, %v1631
      %vm1643 = vcmp.eq.s32.totalorder %v1489, %v1635
      %vm1644 = vcmp.eq.s32.totalorder %v1490, %v1631
      %vm1645 = vcmp.eq.s32.totalorder %v1490, %v1635
      %vm1646 = vcmp.eq.s32.totalorder %v1561, %v1631
      %vm1647 = vcmp.eq.s32.totalorder %v1561, %v1635
      %vm1648 = vcmp.eq.s32.totalorder %v1562, %v1631
      %vm1649 = vcmp.eq.s32.totalorder %v1562, %v1635
      %vm1650 = vcmp.eq.s32.totalorder %v1563, %v1631
      %vm1651 = vcmp.eq.s32.totalorder %v1563, %v1635
      %vm1652 = vcmp.eq.s32.totalorder %v1564, %v1631
      %vm1653 = vcmp.eq.s32.totalorder %v1564, %v1635
      %vm1654 = vcmp.eq.s32.totalorder %v1565, %v1631
      %vm1655 = vcmp.eq.s32.totalorder %v1565, %v1635
      %vm1656 = vcmp.eq.s32.totalorder %v1566, %v1631
      %vm1657 = vcmp.eq.s32.totalorder %v1566, %v1635
      %vm1658 = vcmp.eq.s32.totalorder %v1567, %v1631
      %vm1659 = vcmp.eq.s32.totalorder %v1567, %v1635
      %vm1660 = vcmp.eq.s32.totalorder %v1568, %v1631
      %vm1661 = vcmp.eq.s32.totalorder %v1568, %v1635
      %vm1662 = vcmp.eq.s32.totalorder %v1569, %v1631
      %vm1663 = vcmp.eq.s32.totalorder %v1569, %v1635
      %vm1664 = vcmp.eq.s32.totalorder %v1570, %v1631
      %vm1665 = vcmp.eq.s32.totalorder %v1570, %v1635
      %vm1666 = vcmp.eq.s32.totalorder %v1571, %v1631
      %vm1667 = vcmp.eq.s32.totalorder %v1571, %v1635
      %vm1668 = vcmp.eq.s32.totalorder %v1572, %v1631
      %vm1669 = vcmp.eq.s32.totalorder %v1572, %v1635
      %vm1670 = vcmp.eq.s32.totalorder %v1573, %v1631
      %vm1671 = vcmp.eq.s32.totalorder %v1573, %v1635
      %vm1672 = vcmp.eq.s32.totalorder %v1574, %v1631
      %vm1673 = vcmp.eq.s32.totalorder %v1574, %v1635
      %vm1674 = vcmp.eq.s32.totalorder %v1575, %v1631
      %vm1675 = vcmp.eq.s32.totalorder %v1575, %v1635
      %vm1676 = vcmp.eq.s32.totalorder %v1576, %v1631
      %vm1677 = vcmp.eq.s32.totalorder %v1576, %v1635
      %vm1678 = vcmp.eq.s32.totalorder %v1577, %v1631
      %vm1679 = vcmp.eq.s32.totalorder %v1577, %v1635
      %vm1680 = vcmp.eq.s32.totalorder %v1578, %v1631
      %vm1681 = vcmp.eq.s32.totalorder %v1578, %v1635
      %vm1682 = vcmp.eq.s32.totalorder %v1579, %v1631
      %vm1683 = vcmp.eq.s32.totalorder %v1579, %v1635
      %vm1684 = vcmp.eq.s32.totalorder %v1580, %v1631
      %vm1685 = vcmp.eq.s32.totalorder %v1580, %v1635
      %vm1686 = vcmp.eq.s32.totalorder %v1581, %v1631
      %vm1687 = vcmp.eq.s32.totalorder %v1581, %v1635
      %vm1688 = vcmp.eq.s32.totalorder %v1582, %v1631
      %vm1689 = vcmp.eq.s32.totalorder %v1582, %v1635
      %vm1690 = vcmp.eq.s32.totalorder %v1583, %v1631
      %vm1691 = vcmp.eq.s32.totalorder %v1583, %v1635
      %vm1692 = vcmp.eq.s32.totalorder %v1584, %v1631
      %vm1693 = vcmp.eq.s32.totalorder %v1584, %v1635
      %vm1694 = vcmp.eq.s32.totalorder %v1585, %v1631
      %vm1695 = vcmp.eq.s32.totalorder %v1585, %v1635
      %vm1696 = vcmp.eq.s32.totalorder %v1586, %v1631
      %vm1697 = vcmp.eq.s32.totalorder %v1586, %v1635
      %vm1698 = vcmp.eq.s32.totalorder %v1587, %v1631
      %vm1699 = vcmp.eq.s32.totalorder %v1587, %v1635
      %vm1700 = vcmp.eq.s32.totalorder %v1588, %v1631
      %vm1701 = vcmp.eq.s32.totalorder %v1588, %v1635
      %vm1702 = vcmp.eq.s32.totalorder %v1589, %v1631
      %vm1703 = vcmp.eq.s32.totalorder %v1589, %v1635
      %vm1704 = vcmp.eq.s32.totalorder %v1590, %v1631
      %vm1705 = vcmp.eq.s32.totalorder %v1590, %v1635
      %vm1706 = vcmp.eq.s32.totalorder %v1591, %v1631
      %vm1707 = vcmp.eq.s32.totalorder %v1591, %v1635
      %vm1708 = vcmp.eq.s32.totalorder %v1592, %v1631
      %vm1709 = vcmp.eq.s32.totalorder %v1592, %v1635
      %vm1710 = vcmp.eq.s32.totalorder %v1593, %v1631
      %vm1711 = vcmp.eq.s32.totalorder %v1593, %v1635
      %vm1712 = vcmp.eq.s32.totalorder %v1594, %v1631
      %vm1713 = vcmp.eq.s32.totalorder %v1594, %v1635
      %vm1714 = vcmp.eq.s32.totalorder %v1595, %v1631
      %vm1715 = vcmp.eq.s32.totalorder %v1595, %v1635
      %vm1716 = vcmp.eq.s32.totalorder %v1596, %v1631
      %vm1717 = vcmp.eq.s32.totalorder %v1596, %v1635
      %vm1718 = vcmp.eq.s32.totalorder %v1597, %v1631
      %vm1719 = vcmp.eq.s32.totalorder %v1597, %v1635
      %vm1720 = vcmp.eq.s32.totalorder %v1598, %v1631
      %vm1721 = vcmp.eq.s32.totalorder %v1598, %v1635
      %vm1722 = vcmp.eq.s32.totalorder %v1599, %v1631
      %vm1723 = vcmp.eq.s32.totalorder %v1599, %v1635
      %vm1724 = vcmp.eq.s32.totalorder %v1600, %v1631
      %vm1725 = vcmp.eq.s32.totalorder %v1600, %v1635
      %vm1726 = vcmp.eq.s32.totalorder %v1601, %v1631
      %vm1727 = vcmp.eq.s32.totalorder %v1601, %v1635
      %vm1728 = vcmp.eq.s32.totalorder %v1602, %v1631
      %vm1729 = vcmp.eq.s32.totalorder %v1602, %v1635
      %vm1730 = vcmp.eq.s32.totalorder %v1603, %v1631
      %vm1731 = vcmp.eq.s32.totalorder %v1603, %v1635
      %vm1732 = vcmp.eq.s32.totalorder %v1604, %v1631
      %vm1733 = vcmp.eq.s32.totalorder %v1604, %v1635
      %vm1734 = vcmp.eq.s32.totalorder %v1605, %v1631
      %vm1735 = vcmp.eq.s32.totalorder %v1605, %v1635
      %vm1736 = vcmp.eq.s32.totalorder %v1606, %v1631
      %vm1737 = vcmp.eq.s32.totalorder %v1606, %v1635
      %vm1738 = vcmp.eq.s32.totalorder %v1607, %v1631
      %vm1739 = vcmp.eq.s32.totalorder %v1607, %v1635
      %vm1740 = vcmp.eq.s32.totalorder %v1608, %v1631
      %vm1741 = vcmp.eq.s32.totalorder %v1608, %v1635
      %vm1742 = vcmp.eq.s32.totalorder %v1609, %v1631
      %vm1743 = vcmp.eq.s32.totalorder %v1609, %v1635
      %vm1744 = vcmp.eq.s32.totalorder %v1610, %v1631
      %vm1745 = vcmp.eq.s32.totalorder %v1610, %v1635
      %vm1746 = vcmp.eq.s32.totalorder %v1611, %v1631
      %vm1747 = vcmp.eq.s32.totalorder %v1611, %v1635
      %vm1748 = vcmp.eq.s32.totalorder %v1612, %v1631
      %vm1749 = vcmp.eq.s32.totalorder %v1612, %v1635
      %vm1750 = vcmp.eq.s32.totalorder %v1613, %v1631
      %vm1751 = vcmp.eq.s32.totalorder %v1613, %v1635
      %vm1752 = vcmp.eq.s32.totalorder %v1614, %v1631
      %vm1753 = vcmp.eq.s32.totalorder %v1614, %v1635
      %vm1754 = vcmp.eq.s32.totalorder %v1615, %v1631
      %vm1755 = vcmp.eq.s32.totalorder %v1615, %v1635
      %vm1756 = vcmp.eq.s32.totalorder %v1616, %v1631
      %vm1757 = vcmp.eq.s32.totalorder %v1616, %v1635
      %vm1758 = vcmp.eq.s32.totalorder %v1617, %v1631
      %vm1759 = vcmp.eq.s32.totalorder %v1617, %v1635
      %vm1760 = vcmp.eq.s32.totalorder %v1618, %v1631
      %vm1761 = vcmp.eq.s32.totalorder %v1618, %v1635
      %vm1762 = vcmp.eq.s32.totalorder %v1619, %v1631
      %vm1763 = vcmp.eq.s32.totalorder %v1619, %v1635
      %v1765 = vlaneseq
      %v1766 = vshrl.u32 %v1765, 7
      %v1767 = vsub.s32 2, %v1766
      %v1768 = vrot.slane %v1529, %v1767
      %v1769 = vlaneseq
      %v1770 = vshrl.u32 %v1769, 7
      %v1771 = vsub.s32 6, %v1770
      %v1772 = vrot.slane %v1529, %v1771
      %v1775 = vlaneseq
      %v1776 = vshrl.u32 %v1775, 7
      %v1777 = vsub.s32 2, %v1776
      %v1778 = vrot.slane %v1768, %v1777
      %v1779 = vlaneseq
      %v1780 = vshrl.u32 %v1779, 7
      %v1781 = vsub.s32 2, %v1780
      %v1782 = vrot.slane %v1772, %v1781
      %v1783 = vsel %vm1636, %v1778, 0.0
      %v1784 = vsel %vm1637, %v1782, 0.0
      %v1785 = vsel %vm1638, %v1778, 0.0
      %v1786 = vsel %vm1639, %v1782, 0.0
      %v1787 = vsel %vm1640, %v1778, 0.0
      %v1788 = vsel %vm1641, %v1782, 0.0
      %v1789 = vsel %vm1642, %v1778, 0.0
      %v1790 = vsel %vm1643, %v1782, 0.0
      %v1791 = vsel %vm1644, %v1778, 0.0
      %v1792 = vsel %vm1645, %v1782, 0.0
      %v1793 = vsel %vm1646, %v1778, 0.0
      %v1794 = vsel %vm1647, %v1782, 0.0
      %v1795 = vsel %vm1648, %v1778, 0.0
      %v1796 = vsel %vm1649, %v1782, 0.0
      %v1797 = vsel %vm1650, %v1778, 0.0
      %v1798 = vsel %vm1651, %v1782, 0.0
      %v1799 = vsel %vm1652, %v1778, 0.0
      %v1800 = vsel %vm1653, %v1782, 0.0
      %v1801 = vsel %vm1654, %v1778, 0.0
      %v1802 = vsel %vm1655, %v1782, 0.0
      %v1803 = vsel %vm1656, %v1778, 0.0
      %v1804 = vsel %vm1657, %v1782, 0.0
      %v1805 = vsel %vm1658, %v1778, 0.0
      %v1806 = vsel %vm1659, %v1782, 0.0
      %v1807 = vsel %vm1660, %v1778, 0.0
      %v1808 = vsel %vm1661, %v1782, 0.0
      %v1809 = vsel %vm1662, %v1778, 0.0
      %v1810 = vsel %vm1663, %v1782, 0.0
      %v1811 = vsel %vm1664, %v1778, 0.0
      %v1812 = vsel %vm1665, %v1782, 0.0
      %v1813 = vsel %vm1666, %v1778, 0.0
      %v1814 = vsel %vm1667, %v1782, 0.0
      %v1815 = vsel %vm1668, %v1778, 0.0
      %v1816 = vsel %vm1669, %v1782, 0.0
      %v1817 = vsel %vm1670, %v1778, 0.0
      %v1818 = vsel %vm1671, %v1782, 0.0
      %v1819 = vsel %vm1672, %v1778, 0.0
      %v1820 = vsel %vm1673, %v1782, 0.0
      %v1821 = vsel %vm1674, %v1778, 0.0
      %v1822 = vsel %vm1675, %v1782, 0.0
      %v1823 = vsel %vm1676, %v1778, 0.0
      %v1824 = vsel %vm1677, %v1782, 0.0
      %v1825 = vsel %vm1678, %v1778, 0.0
      %v1826 = vsel %vm1679, %v1782, 0.0
      %v1827 = vsel %vm1680, %v1778, 0.0
      %v1828 = vsel %vm1681, %v1782, 0.0
      %v1829 = vsel %vm1682, %v1778, 0.0
      %v1830 = vsel %vm1683, %v1782, 0.0
      %v1831 = vsel %vm1684, %v1778, 0.0
      %v1832 = vsel %vm1685, %v1782, 0.0
      %v1833 = vsel %vm1686, %v1778, 0.0
      %v1834 = vsel %vm1687, %v1782, 0.0
      %v1835 = vsel %vm1688, %v1778, 0.0
      %v1836 = vsel %vm1689, %v1782, 0.0
      %v1837 = vsel %vm1690, %v1778, 0.0
      %v1838 = vsel %vm1691, %v1782, 0.0
      %v1839 = vsel %vm1692, %v1778, 0.0
      %v1840 = vsel %vm1693, %v1782, 0.0
      %v1841 = vsel %vm1694, %v1778, 0.0
      %v1842 = vsel %vm1695, %v1782, 0.0
      %v1843 = vsel %vm1696, %v1778, 0.0
      %v1844 = vsel %vm1697, %v1782, 0.0
      %v1845 = vsel %vm1698, %v1778, 0.0
      %v1846 = vsel %vm1699, %v1782, 0.0
      %v1847 = vsel %vm1700, %v1778, 0.0
      %v1848 = vsel %vm1701, %v1782, 0.0
      %v1849 = vsel %vm1702, %v1778, 0.0
      %v1850 = vsel %vm1703, %v1782, 0.0
      %v1851 = vsel %vm1704, %v1778, 0.0
      %v1852 = vsel %vm1705, %v1782, 0.0
      %v1853 = vsel %vm1706, %v1778, 0.0
      %v1854 = vsel %vm1707, %v1782, 0.0
      %v1855 = vsel %vm1708, %v1778, 0.0
      %v1856 = vsel %vm1709, %v1782, 0.0
      %v1857 = vsel %vm1710, %v1778, 0.0
      %v1858 = vsel %vm1711, %v1782, 0.0
      %v1859 = vsel %vm1712, %v1778, 0.0
      %v1860 = vsel %vm1713, %v1782, 0.0
      %v1861 = vsel %vm1714, %v1778, 0.0
      %v1862 = vsel %vm1715, %v1782, 0.0
      %v1863 = vsel %vm1716, %v1778, 0.0
      %v1864 = vsel %vm1717, %v1782, 0.0
      %v1865 = vsel %vm1718, %v1778, 0.0
      %v1866 = vsel %vm1719, %v1782, 0.0
      %v1867 = vsel %vm1720, %v1778, 0.0
      %v1868 = vsel %vm1721, %v1782, 0.0
      %v1869 = vsel %vm1722, %v1778, 0.0
      %v1870 = vsel %vm1723, %v1782, 0.0
      %v1871 = vsel %vm1724, %v1778, 0.0
      %v1872 = vsel %vm1725, %v1782, 0.0
      %v1873 = vsel %vm1726, %v1778, 0.0
      %v1874 = vsel %vm1727, %v1782, 0.0
      %v1875 = vsel %vm1728, %v1778, 0.0
      %v1876 = vsel %vm1729, %v1782, 0.0
      %v1877 = vsel %vm1730, %v1778, 0.0
      %v1878 = vsel %vm1731, %v1782, 0.0
      %v1879 = vsel %vm1732, %v1778, 0.0
      %v1880 = vsel %vm1733, %v1782, 0.0
      %v1881 = vsel %vm1734, %v1778, 0.0
      %v1882 = vsel %vm1735, %v1782, 0.0
      %v1883 = vsel %vm1736, %v1778, 0.0
      %v1884 = vsel %vm1737, %v1782, 0.0
      %v1885 = vsel %vm1738, %v1778, 0.0
      %v1886 = vsel %vm1739, %v1782, 0.0
      %v1887 = vsel %vm1740, %v1778, 0.0
      %v1888 = vsel %vm1741, %v1782, 0.0
      %v1889 = vsel %vm1742, %v1778, 0.0
      %v1890 = vsel %vm1743, %v1782, 0.0
      %v1891 = vsel %vm1744, %v1778, 0.0
      %v1892 = vsel %vm1745, %v1782, 0.0
      %v1893 = vsel %vm1746, %v1778, 0.0
      %v1894 = vsel %vm1747, %v1782, 0.0
      %v1895 = vsel %vm1748, %v1778, 0.0
      %v1896 = vsel %vm1749, %v1782, 0.0
      %v1897 = vsel %vm1750, %v1778, 0.0
      %v1898 = vsel %vm1751, %v1782, 0.0
      %v1899 = vsel %vm1752, %v1778, 0.0
      %v1900 = vsel %vm1753, %v1782, 0.0
      %v1901 = vsel %vm1754, %v1778, 0.0
      %v1902 = vsel %vm1755, %v1782, 0.0
      %v1903 = vsel %vm1756, %v1778, 0.0
      %v1904 = vsel %vm1757, %v1782, 0.0
      %v1905 = vsel %vm1758, %v1778, 0.0
      %v1906 = vsel %vm1759, %v1782, 0.0
      %v1907 = vsel %vm1760, %v1778, 0.0
      %v1908 = vsel %vm1761, %v1782, 0.0
      %v1909 = vsel %vm1762, %v1778, 0.0
      %v1910 = vsel %vm1763, %v1782, 0.0
      %v1911 = vadd.f32 %v1783, 0.0
      %v1912 = vadd.f32 %v1784, 0.0
      %v1913 = vadd.f32 %v1785, 0.0
      %v1914 = vadd.f32 %v1786, 0.0
      %v1915 = vadd.f32 %v1787, 0.0
      %v1916 = vadd.f32 %v1788, 0.0
      %v1917 = vadd.f32 %v1789, 0.0
      %v1918 = vadd.f32 %v1790, 0.0
      %v1919 = vadd.f32 %v1791, 0.0
      %v1920 = vadd.f32 %v1792, 0.0
      %v1921 = vadd.f32 %v1793, 0.0
      %v1922 = vadd.f32 %v1794, 0.0
      %v1923 = vadd.f32 %v1795, 0.0
      %v1924 = vadd.f32 %v1796, 0.0
      %v1925 = vadd.f32 %v1797, 0.0
      %v1926 = vadd.f32 %v1798, 0.0
      %v1927 = vadd.f32 %v1799, 0.0
      %v1928 = vadd.f32 %v1800, 0.0
      %v1929 = vadd.f32 %v1801, 0.0
      %v1930 = vadd.f32 %v1802, 0.0
      %v1931 = vadd.f32 %v1803, 0.0
      %v1932 = vadd.f32 %v1804, 0.0
      %v1933 = vadd.f32 %v1805, 0.0
      %v1934 = vadd.f32 %v1806, 0.0
      %v1935 = vadd.f32 %v1807, 0.0
      %v1936 = vadd.f32 %v1808, 0.0
      %v1937 = vadd.f32 %v1809, 0.0
      %v1938 = vadd.f32 %v1810, 0.0
      %v1939 = vadd.f32 %v1811, 0.0
      %v1940 = vadd.f32 %v1812, 0.0
      %v1941 = vadd.f32 %v1813, 0.0
      %v1942 = vadd.f32 %v1814, 0.0
      %v1943 = vadd.f32 %v1815, 0.0
      %v1944 = vadd.f32 %v1816, 0.0
      %v1945 = vadd.f32 %v1817, 0.0
      %v1946 = vadd.f32 %v1818, 0.0
      %v1947 = vadd.f32 %v1819, 0.0
      %v1948 = vadd.f32 %v1820, 0.0
      %v1949 = vadd.f32 %v1821, 0.0
      %v1950 = vadd.f32 %v1822, 0.0
      %v1951 = vadd.f32 %v1823, 0.0
      %v1952 = vadd.f32 %v1824, 0.0
      %v1953 = vadd.f32 %v1825, 0.0
      %v1954 = vadd.f32 %v1826, 0.0
      %v1955 = vadd.f32 %v1827, 0.0
      %v1956 = vadd.f32 %v1828, 0.0
      %v1957 = vadd.f32 %v1829, 0.0
      %v1958 = vadd.f32 %v1830, 0.0
      %v1959 = vadd.f32 %v1831, 0.0
      %v1960 = vadd.f32 %v1832, 0.0
      %v1961 = vadd.f32 %v1833, 0.0
      %v1962 = vadd.f32 %v1834, 0.0
      %v1963 = vadd.f32 %v1835, 0.0
      %v1964 = vadd.f32 %v1836, 0.0
      %v1965 = vadd.f32 %v1837, 0.0
      %v1966 = vadd.f32 %v1838, 0.0
      %v1967 = vadd.f32 %v1839, 0.0
      %v1968 = vadd.f32 %v1840, 0.0
      %v1969 = vadd.f32 %v1841, 0.0
      %v1970 = vadd.f32 %v1842, 0.0
      %v1971 = vadd.f32 %v1843, 0.0
      %v1972 = vadd.f32 %v1844, 0.0
      %v1973 = vadd.f32 %v1845, 0.0
      %v1974 = vadd.f32 %v1846, 0.0
      %v1975 = vadd.f32 %v1847, 0.0
      %v1976 = vadd.f32 %v1848, 0.0
      %v1977 = vadd.f32 %v1849, 0.0
      %v1978 = vadd.f32 %v1850, 0.0
      %v1979 = vadd.f32 %v1851, 0.0
      %v1980 = vadd.f32 %v1852, 0.0
      %v1981 = vadd.f32 %v1853, 0.0
      %v1982 = vadd.f32 %v1854, 0.0
      %v1983 = vadd.f32 %v1855, 0.0
      %v1984 = vadd.f32 %v1856, 0.0
      %v1985 = vadd.f32 %v1857, 0.0
      %v1986 = vadd.f32 %v1858, 0.0
      %v1987 = vadd.f32 %v1859, 0.0
      %v1988 = vadd.f32 %v1860, 0.0
      %v1989 = vadd.f32 %v1861, 0.0
      %v1990 = vadd.f32 %v1862, 0.0
      %v1991 = vadd.f32 %v1863, 0.0
      %v1992 = vadd.f32 %v1864, 0.0
      %v1993 = vadd.f32 %v1865, 0.0
      %v1994 = vadd.f32 %v1866, 0.0
      %v1995 = vadd.f32 %v1867, 0.0
      %v1996 = vadd.f32 %v1868, 0.0
      %v1997 = vadd.f32 %v1869, 0.0
      %v1998 = vadd.f32 %v1870, 0.0
      %v1999 = vadd.f32 %v1871, 0.0
      %v2000 = vadd.f32 %v1872, 0.0
      %v2001 = vadd.f32 %v1873, 0.0
      %v2002 = vadd.f32 %v1874, 0.0
      %v2003 = vadd.f32 %v1875, 0.0
      %v2004 = vadd.f32 %v1876, 0.0
      %v2005 = vadd.f32 %v1877, 0.0
      %v2006 = vadd.f32 %v1878, 0.0
      %v2007 = vadd.f32 %v1879, 0.0
      %v2008 = vadd.f32 %v1880, 0.0
      %v2009 = vadd.f32 %v1881, 0.0
      %v2010 = vadd.f32 %v1882, 0.0
      %v2011 = vadd.f32 %v1883, 0.0
      %v2012 = vadd.f32 %v1884, 0.0
      %v2013 = vadd.f32 %v1885, 0.0
      %v2014 = vadd.f32 %v1886, 0.0
      %v2015 = vadd.f32 %v1887, 0.0
      %v2016 = vadd.f32 %v1888, 0.0
      %v2017 = vadd.f32 %v1889, 0.0
      %v2018 = vadd.f32 %v1890, 0.0
      %v2019 = vadd.f32 %v1891, 0.0
      %v2020 = vadd.f32 %v1892, 0.0
      %v2021 = vadd.f32 %v1893, 0.0
      %v2022 = vadd.f32 %v1894, 0.0
      %v2023 = vadd.f32 %v1895, 0.0
      %v2024 = vadd.f32 %v1896, 0.0
      %v2025 = vadd.f32 %v1897, 0.0
      %v2026 = vadd.f32 %v1898, 0.0
      %v2027 = vadd.f32 %v1899, 0.0
      %v2028 = vadd.f32 %v1900, 0.0
      %v2029 = vadd.f32 %v1901, 0.0
      %v2030 = vadd.f32 %v1902, 0.0
      %v2031 = vadd.f32 %v1903, 0.0
      %v2032 = vadd.f32 %v1904, 0.0
      %v2033 = vadd.f32 %v1905, 0.0
      %v2034 = vadd.f32 %v1906, 0.0
      %v2035 = vadd.f32 %v1907, 0.0
      %v2036 = vadd.f32 %v1908, 0.0
      %v2037 = vadd.f32 %v1909, 0.0
      %v2038 = vadd.f32 %v1910, 0.0
      %v2039 = vlaneseq
      %v2040 = vshrl.u32 %v2039, 7
      %v2041 = vsub.s32 2, %v2040
      %v2042 = vrot.slane %v1531, %v2041
      %v2043 = vlaneseq
      %v2044 = vshrl.u32 %v2043, 7
      %v2045 = vsub.s32 6, %v2044
      %v2046 = vrot.slane %v1531, %v2045
      %v2047 = vlaneseq
      %v2048 = vshrl.u32 %v2047, 7
      %v2049 = vsub.s32 2, %v2048
      %v2050 = vrot.slane %v2042, %v2049
      %v2051 = vlaneseq
      %v2052 = vshrl.u32 %v2051, 7
      %v2053 = vsub.s32 2, %v2052
      %v2054 = vrot.slane %v2046, %v2053
      %vm2055 = vcmp.eq.s32.totalorder %v1486, %v2050
      %vm2056 = vcmp.eq.s32.totalorder %v1486, %v2054
      %vm2057 = vcmp.eq.s32.totalorder %v1487, %v2050
      %vm2058 = vcmp.eq.s32.totalorder %v1487, %v2054
      %vm2059 = vcmp.eq.s32.totalorder %v1488, %v2050
      %vm2060 = vcmp.eq.s32.totalorder %v1488, %v2054
      %vm2061 = vcmp.eq.s32.totalorder %v1489, %v2050
      %vm2062 = vcmp.eq.s32.totalorder %v1489, %v2054
      %vm2063 = vcmp.eq.s32.totalorder %v1490, %v2050
      %vm2064 = vcmp.eq.s32.totalorder %v1490, %v2054
      %vm2065 = vcmp.eq.s32.totalorder %v1561, %v2050
      %vm2066 = vcmp.eq.s32.totalorder %v1561, %v2054
      %vm2067 = vcmp.eq.s32.totalorder %v1562, %v2050
      %vm2068 = vcmp.eq.s32.totalorder %v1562, %v2054
      %vm2069 = vcmp.eq.s32.totalorder %v1563, %v2050
      %vm2070 = vcmp.eq.s32.totalorder %v1563, %v2054
      %vm2071 = vcmp.eq.s32.totalorder %v1564, %v2050
      %vm2072 = vcmp.eq.s32.totalorder %v1564, %v2054
      %vm2073 = vcmp.eq.s32.totalorder %v1565, %v2050
      %vm2074 = vcmp.eq.s32.totalorder %v1565, %v2054
      %vm2075 = vcmp.eq.s32.totalorder %v1566, %v2050
      %vm2076 = vcmp.eq.s32.totalorder %v1566, %v2054
      %vm2077 = vcmp.eq.s32.totalorder %v1567, %v2050
      %vm2078 = vcmp.eq.s32.totalorder %v1567, %v2054
      %vm2079 = vcmp.eq.s32.totalorder %v1568, %v2050
      %vm2080 = vcmp.eq.s32.totalorder %v1568, %v2054
      %vm2081 = vcmp.eq.s32.totalorder %v1569, %v2050
      %vm2082 = vcmp.eq.s32.totalorder %v1569, %v2054
      %vm2083 = vcmp.eq.s32.totalorder %v1570, %v2050
      %vm2084 = vcmp.eq.s32.totalorder %v1570, %v2054
      %vm2085 = vcmp.eq.s32.totalorder %v1571, %v2050
      %vm2086 = vcmp.eq.s32.totalorder %v1571, %v2054
      %vm2087 = vcmp.eq.s32.totalorder %v1572, %v2050
      %vm2088 = vcmp.eq.s32.totalorder %v1572, %v2054
      %vm2089 = vcmp.eq.s32.totalorder %v1573, %v2050
      %vm2090 = vcmp.eq.s32.totalorder %v1573, %v2054
      %vm2091 = vcmp.eq.s32.totalorder %v1574, %v2050
      %vm2092 = vcmp.eq.s32.totalorder %v1574, %v2054
      %vm2093 = vcmp.eq.s32.totalorder %v1575, %v2050
      %vm2094 = vcmp.eq.s32.totalorder %v1575, %v2054
      %vm2095 = vcmp.eq.s32.totalorder %v1576, %v2050
      %vm2096 = vcmp.eq.s32.totalorder %v1576, %v2054
      %vm2097 = vcmp.eq.s32.totalorder %v1577, %v2050
      %vm2098 = vcmp.eq.s32.totalorder %v1577, %v2054
      %vm2099 = vcmp.eq.s32.totalorder %v1578, %v2050
      %vm2100 = vcmp.eq.s32.totalorder %v1578, %v2054
      %vm2101 = vcmp.eq.s32.totalorder %v1579, %v2050
      %vm2102 = vcmp.eq.s32.totalorder %v1579, %v2054
      %vm2103 = vcmp.eq.s32.totalorder %v1580, %v2050
      %vm2104 = vcmp.eq.s32.totalorder %v1580, %v2054
      %vm2105 = vcmp.eq.s32.totalorder %v1581, %v2050
      %vm2106 = vcmp.eq.s32.totalorder %v1581, %v2054
      %vm2107 = vcmp.eq.s32.totalorder %v1582, %v2050
      %vm2108 = vcmp.eq.s32.totalorder %v1582, %v2054
      %vm2109 = vcmp.eq.s32.totalorder %v1583, %v2050
      %vm2110 = vcmp.eq.s32.totalorder %v1583, %v2054
      %vm2111 = vcmp.eq.s32.totalorder %v1584, %v2050
      %vm2112 = vcmp.eq.s32.totalorder %v1584, %v2054
      %vm2113 = vcmp.eq.s32.totalorder %v1585, %v2050
      %vm2114 = vcmp.eq.s32.totalorder %v1585, %v2054
      %vm2115 = vcmp.eq.s32.totalorder %v1586, %v2050
      %vm2116 = vcmp.eq.s32.totalorder %v1586, %v2054
      %vm2117 = vcmp.eq.s32.totalorder %v1587, %v2050
      %vm2118 = vcmp.eq.s32.totalorder %v1587, %v2054
      %vm2119 = vcmp.eq.s32.totalorder %v1588, %v2050
      %vm2120 = vcmp.eq.s32.totalorder %v1588, %v2054
      %vm2121 = vcmp.eq.s32.totalorder %v1589, %v2050
      %vm2122 = vcmp.eq.s32.totalorder %v1589, %v2054
      %vm2123 = vcmp.eq.s32.totalorder %v1590, %v2050
      %vm2124 = vcmp.eq.s32.totalorder %v1590, %v2054
      %vm2125 = vcmp.eq.s32.totalorder %v1591, %v2050
      %vm2126 = vcmp.eq.s32.totalorder %v1591, %v2054
      %vm2127 = vcmp.eq.s32.totalorder %v1592, %v2050
      %vm2128 = vcmp.eq.s32.totalorder %v1592, %v2054
      %vm2129 = vcmp.eq.s32.totalorder %v1593, %v2050
      %vm2130 = vcmp.eq.s32.totalorder %v1593, %v2054
      %vm2131 = vcmp.eq.s32.totalorder %v1594, %v2050
      %vm2132 = vcmp.eq.s32.totalorder %v1594, %v2054
      %vm2133 = vcmp.eq.s32.totalorder %v1595, %v2050
      %vm2134 = vcmp.eq.s32.totalorder %v1595, %v2054
      %vm2135 = vcmp.eq.s32.totalorder %v1596, %v2050
      %vm2136 = vcmp.eq.s32.totalorder %v1596, %v2054
      %vm2137 = vcmp.eq.s32.totalorder %v1597, %v2050
      %vm2138 = vcmp.eq.s32.totalorder %v1597, %v2054
      %vm2139 = vcmp.eq.s32.totalorder %v1598, %v2050
      %vm2140 = vcmp.eq.s32.totalorder %v1598, %v2054
      %vm2141 = vcmp.eq.s32.totalorder %v1599, %v2050
      %vm2142 = vcmp.eq.s32.totalorder %v1599, %v2054
      %vm2143 = vcmp.eq.s32.totalorder %v1600, %v2050
      %vm2144 = vcmp.eq.s32.totalorder %v1600, %v2054
      %vm2145 = vcmp.eq.s32.totalorder %v1601, %v2050
      %vm2146 = vcmp.eq.s32.totalorder %v1601, %v2054
      %vm2147 = vcmp.eq.s32.totalorder %v1602, %v2050
      %vm2148 = vcmp.eq.s32.totalorder %v1602, %v2054
      %vm2149 = vcmp.eq.s32.totalorder %v1603, %v2050
      %vm2150 = vcmp.eq.s32.totalorder %v1603, %v2054
      %vm2151 = vcmp.eq.s32.totalorder %v1604, %v2050
      %vm2152 = vcmp.eq.s32.totalorder %v1604, %v2054
      %vm2153 = vcmp.eq.s32.totalorder %v1605, %v2050
      %vm2154 = vcmp.eq.s32.totalorder %v1605, %v2054
      %vm2155 = vcmp.eq.s32.totalorder %v1606, %v2050
      %vm2156 = vcmp.eq.s32.totalorder %v1606, %v2054
      %vm2157 = vcmp.eq.s32.totalorder %v1607, %v2050
      %vm2158 = vcmp.eq.s32.totalorder %v1607, %v2054
      %vm2159 = vcmp.eq.s32.totalorder %v1608, %v2050
      %vm2160 = vcmp.eq.s32.totalorder %v1608, %v2054
      %vm2161 = vcmp.eq.s32.totalorder %v1609, %v2050
      %vm2162 = vcmp.eq.s32.totalorder %v1609, %v2054
      %vm2163 = vcmp.eq.s32.totalorder %v1610, %v2050
      %vm2164 = vcmp.eq.s32.totalorder %v1610, %v2054
      %vm2165 = vcmp.eq.s32.totalorder %v1611, %v2050
      %vm2166 = vcmp.eq.s32.totalorder %v1611, %v2054
      %vm2167 = vcmp.eq.s32.totalorder %v1612, %v2050
      %vm2168 = vcmp.eq.s32.totalorder %v1612, %v2054
      %vm2169 = vcmp.eq.s32.totalorder %v1613, %v2050
      %vm2170 = vcmp.eq.s32.totalorder %v1613, %v2054
      %vm2171 = vcmp.eq.s32.totalorder %v1614, %v2050
      %vm2172 = vcmp.eq.s32.totalorder %v1614, %v2054
      %vm2173 = vcmp.eq.s32.totalorder %v1615, %v2050
      %vm2174 = vcmp.eq.s32.totalorder %v1615, %v2054
      %vm2175 = vcmp.eq.s32.totalorder %v1616, %v2050
      %vm2176 = vcmp.eq.s32.totalorder %v1616, %v2054
      %vm2177 = vcmp.eq.s32.totalorder %v1617, %v2050
      %vm2178 = vcmp.eq.s32.totalorder %v1617, %v2054
      %vm2179 = vcmp.eq.s32.totalorder %v1618, %v2050
      %vm2180 = vcmp.eq.s32.totalorder %v1618, %v2054
      %vm2181 = vcmp.eq.s32.totalorder %v1619, %v2050
      %vm2182 = vcmp.eq.s32.totalorder %v1619, %v2054
      %v2184 = vlaneseq
      %v2185 = vshrl.u32 %v2184, 7
      %v2186 = vsub.s32 2, %v2185
      %v2187 = vrot.slane %v1535, %v2186
      %v2188 = vlaneseq
      %v2189 = vshrl.u32 %v2188, 7
      %v2190 = vsub.s32 6, %v2189
      %v2191 = vrot.slane %v1535, %v2190
      %v2194 = vlaneseq
      %v2195 = vshrl.u32 %v2194, 7
      %v2196 = vsub.s32 2, %v2195
      %v2197 = vrot.slane %v2187, %v2196
      %v2198 = vlaneseq
      %v2199 = vshrl.u32 %v2198, 7
      %v2200 = vsub.s32 2, %v2199
      %v2201 = vrot.slane %v2191, %v2200
      %v2202 = vsel %vm2055, %v2197, 0.0
      %v2203 = vsel %vm2056, %v2201, 0.0
      %v2204 = vsel %vm2057, %v2197, 0.0
      %v2205 = vsel %vm2058, %v2201, 0.0
      %v2206 = vsel %vm2059, %v2197, 0.0
      %v2207 = vsel %vm2060, %v2201, 0.0
      %v2208 = vsel %vm2061, %v2197, 0.0
      %v2209 = vsel %vm2062, %v2201, 0.0
      %v2210 = vsel %vm2063, %v2197, 0.0
      %v2211 = vsel %vm2064, %v2201, 0.0
      %v2212 = vsel %vm2065, %v2197, 0.0
      %v2213 = vsel %vm2066, %v2201, 0.0
      %v2214 = vsel %vm2067, %v2197, 0.0
      %v2215 = vsel %vm2068, %v2201, 0.0
      %v2216 = vsel %vm2069, %v2197, 0.0
      %v2217 = vsel %vm2070, %v2201, 0.0
      %v2218 = vsel %vm2071, %v2197, 0.0
      %v2219 = vsel %vm2072, %v2201, 0.0
      %v2220 = vsel %vm2073, %v2197, 0.0
      %v2221 = vsel %vm2074, %v2201, 0.0
      %v2222 = vsel %vm2075, %v2197, 0.0
      %v2223 = vsel %vm2076, %v2201, 0.0
      %v2224 = vsel %vm2077, %v2197, 0.0
      %v2225 = vsel %vm2078, %v2201, 0.0
      %v2226 = vsel %vm2079, %v2197, 0.0
      %v2227 = vsel %vm2080, %v2201, 0.0
      %v2228 = vsel %vm2081, %v2197, 0.0
      %v2229 = vsel %vm2082, %v2201, 0.0
      %v2230 = vsel %vm2083, %v2197, 0.0
      %v2231 = vsel %vm2084, %v2201, 0.0
      %v2232 = vsel %vm2085, %v2197, 0.0
      %v2233 = vsel %vm2086, %v2201, 0.0
      %v2234 = vsel %vm2087, %v2197, 0.0
      %v2235 = vsel %vm2088, %v2201, 0.0
      %v2236 = vsel %vm2089, %v2197, 0.0
      %v2237 = vsel %vm2090, %v2201, 0.0
      %v2238 = vsel %vm2091, %v2197, 0.0
      %v2239 = vsel %vm2092, %v2201, 0.0
      %v2240 = vsel %vm2093, %v2197, 0.0
      %v2241 = vsel %vm2094, %v2201, 0.0
      %v2242 = vsel %vm2095, %v2197, 0.0
      %v2243 = vsel %vm2096, %v2201, 0.0
      %v2244 = vsel %vm2097, %v2197, 0.0
      %v2245 = vsel %vm2098, %v2201, 0.0
      %v2246 = vsel %vm2099, %v2197, 0.0
      %v2247 = vsel %vm2100, %v2201, 0.0
      %v2248 = vsel %vm2101, %v2197, 0.0
      %v2249 = vsel %vm2102, %v2201, 0.0
      %v2250 = vsel %vm2103, %v2197, 0.0
      %v2251 = vsel %vm2104, %v2201, 0.0
      %v2252 = vsel %vm2105, %v2197, 0.0
      %v2253 = vsel %vm2106, %v2201, 0.0
      %v2254 = vsel %vm2107, %v2197, 0.0
      %v2255 = vsel %vm2108, %v2201, 0.0
      %v2256 = vsel %vm2109, %v2197, 0.0
      %v2257 = vsel %vm2110, %v2201, 0.0
      %v2258 = vsel %vm2111, %v2197, 0.0
      %v2259 = vsel %vm2112, %v2201, 0.0
      %v2260 = vsel %vm2113, %v2197, 0.0
      %v2261 = vsel %vm2114, %v2201, 0.0
      %v2262 = vsel %vm2115, %v2197, 0.0
      %v2263 = vsel %vm2116, %v2201, 0.0
      %v2264 = vsel %vm2117, %v2197, 0.0
      %v2265 = vsel %vm2118, %v2201, 0.0
      %v2266 = vsel %vm2119, %v2197, 0.0
      %v2267 = vsel %vm2120, %v2201, 0.0
      %v2268 = vsel %vm2121, %v2197, 0.0
      %v2269 = vsel %vm2122, %v2201, 0.0
      %v2270 = vsel %vm2123, %v2197, 0.0
      %v2271 = vsel %vm2124, %v2201, 0.0
      %v2272 = vsel %vm2125, %v2197, 0.0
      %v2273 = vsel %vm2126, %v2201, 0.0
      %v2274 = vsel %vm2127, %v2197, 0.0
      %v2275 = vsel %vm2128, %v2201, 0.0
      %v2276 = vsel %vm2129, %v2197, 0.0
      %v2277 = vsel %vm2130, %v2201, 0.0
      %v2278 = vsel %vm2131, %v2197, 0.0
      %v2279 = vsel %vm2132, %v2201, 0.0
      %v2280 = vsel %vm2133, %v2197, 0.0
      %v2281 = vsel %vm2134, %v2201, 0.0
      %v2282 = vsel %vm2135, %v2197, 0.0
      %v2283 = vsel %vm2136, %v2201, 0.0
      %v2284 = vsel %vm2137, %v2197, 0.0
      %v2285 = vsel %vm2138, %v2201, 0.0
      %v2286 = vsel %vm2139, %v2197, 0.0
      %v2287 = vsel %vm2140, %v2201, 0.0
      %v2288 = vsel %vm2141, %v2197, 0.0
      %v2289 = vsel %vm2142, %v2201, 0.0
      %v2290 = vsel %vm2143, %v2197, 0.0
      %v2291 = vsel %vm2144, %v2201, 0.0
      %v2292 = vsel %vm2145, %v2197, 0.0
      %v2293 = vsel %vm2146, %v2201, 0.0
      %v2294 = vsel %vm2147, %v2197, 0.0
      %v2295 = vsel %vm2148, %v2201, 0.0
      %v2296 = vsel %vm2149, %v2197, 0.0
      %v2297 = vsel %vm2150, %v2201, 0.0
      %v2298 = vsel %vm2151, %v2197, 0.0
      %v2299 = vsel %vm2152, %v2201, 0.0
      %v2300 = vsel %vm2153, %v2197, 0.0
      %v2301 = vsel %vm2154, %v2201, 0.0
      %v2302 = vsel %vm2155, %v2197, 0.0
      %v2303 = vsel %vm2156, %v2201, 0.0
      %v2304 = vsel %vm2157, %v2197, 0.0
      %v2305 = vsel %vm2158, %v2201, 0.0
      %v2306 = vsel %vm2159, %v2197, 0.0
      %v2307 = vsel %vm2160, %v2201, 0.0
      %v2308 = vsel %vm2161, %v2197, 0.0
      %v2309 = vsel %vm2162, %v2201, 0.0
      %v2310 = vsel %vm2163, %v2197, 0.0
      %v2311 = vsel %vm2164, %v2201, 0.0
      %v2312 = vsel %vm2165, %v2197, 0.0
      %v2313 = vsel %vm2166, %v2201, 0.0
      %v2314 = vsel %vm2167, %v2197, 0.0
      %v2315 = vsel %vm2168, %v2201, 0.0
      %v2316 = vsel %vm2169, %v2197, 0.0
      %v2317 = vsel %vm2170, %v2201, 0.0
      %v2318 = vsel %vm2171, %v2197, 0.0
      %v2319 = vsel %vm2172, %v2201, 0.0
      %v2320 = vsel %vm2173, %v2197, 0.0
      %v2321 = vsel %vm2174, %v2201, 0.0
      %v2322 = vsel %vm2175, %v2197, 0.0
      %v2323 = vsel %vm2176, %v2201, 0.0
      %v2324 = vsel %vm2177, %v2197, 0.0
      %v2325 = vsel %vm2178, %v2201, 0.0
      %v2326 = vsel %vm2179, %v2197, 0.0
      %v2327 = vsel %vm2180, %v2201, 0.0
      %v2328 = vsel %vm2181, %v2197, 0.0
      %v2329 = vsel %vm2182, %v2201, 0.0
      %v2330 = vadd.f32 %v1911, %v2202
      %v2331 = vadd.f32 %v1912, %v2203
      %v2332 = vadd.f32 %v1913, %v2204
      %v2333 = vadd.f32 %v1914, %v2205
      %v2334 = vadd.f32 %v1915, %v2206
      %v2335 = vadd.f32 %v1916, %v2207
      %v2336 = vadd.f32 %v1917, %v2208
      %v2337 = vadd.f32 %v1918, %v2209
      %v2338 = vadd.f32 %v1919, %v2210
      %v2339 = vadd.f32 %v1920, %v2211
      %v2340 = vadd.f32 %v1921, %v2212
      %v2341 = vadd.f32 %v1922, %v2213
      %v2342 = vadd.f32 %v1923, %v2214
      %v2343 = vadd.f32 %v1924, %v2215
      %v2344 = vadd.f32 %v1925, %v2216
      %v2345 = vadd.f32 %v1926, %v2217
      %v2346 = vadd.f32 %v1927, %v2218
      %v2347 = vadd.f32 %v1928, %v2219
      %v2348 = vadd.f32 %v1929, %v2220
      %v2349 = vadd.f32 %v1930, %v2221
      %v2350 = vadd.f32 %v1931, %v2222
      %v2351 = vadd.f32 %v1932, %v2223
      %v2352 = vadd.f32 %v1933, %v2224
      %v2353 = vadd.f32 %v1934, %v2225
      %v2354 = vadd.f32 %v1935, %v2226
      %v2355 = vadd.f32 %v1936, %v2227
      %v2356 = vadd.f32 %v1937, %v2228
      %v2357 = vadd.f32 %v1938, %v2229
      %v2358 = vadd.f32 %v1939, %v2230
      %v2359 = vadd.f32 %v1940, %v2231
      %v2360 = vadd.f32 %v1941, %v2232
      %v2361 = vadd.f32 %v1942, %v2233
      %v2362 = vadd.f32 %v1943, %v2234
      %v2363 = vadd.f32 %v1944, %v2235
      %v2364 = vadd.f32 %v1945, %v2236
      %v2365 = vadd.f32 %v1946, %v2237
      %v2366 = vadd.f32 %v1947, %v2238
      %v2367 = vadd.f32 %v1948, %v2239
      %v2368 = vadd.f32 %v1949, %v2240
      %v2369 = vadd.f32 %v1950, %v2241
      %v2370 = vadd.f32 %v1951, %v2242
      %v2371 = vadd.f32 %v1952, %v2243
      %v2372 = vadd.f32 %v1953, %v2244
      %v2373 = vadd.f32 %v1954, %v2245
      %v2374 = vadd.f32 %v1955, %v2246
      %v2375 = vadd.f32 %v1956, %v2247
      %v2376 = vadd.f32 %v1957, %v2248
      %v2377 = vadd.f32 %v1958, %v2249
      %v2378 = vadd.f32 %v1959, %v2250
      %v2379 = vadd.f32 %v1960, %v2251
      %v2380 = vadd.f32 %v1961, %v2252
      %v2381 = vadd.f32 %v1962, %v2253
      %v2382 = vadd.f32 %v1963, %v2254
      %v2383 = vadd.f32 %v1964, %v2255
      %v2384 = vadd.f32 %v1965, %v2256
      %v2385 = vadd.f32 %v1966, %v2257
      %v2386 = vadd.f32 %v1967, %v2258
      %v2387 = vadd.f32 %v1968, %v2259
      %v2388 = vadd.f32 %v1969, %v2260
      %v2389 = vadd.f32 %v1970, %v2261
      %v2390 = vadd.f32 %v1971, %v2262
      %v2391 = vadd.f32 %v1972, %v2263
      %v2392 = vadd.f32 %v1973, %v2264
      %v2393 = vadd.f32 %v1974, %v2265
      %v2394 = vadd.f32 %v1975, %v2266
      %v2395 = vadd.f32 %v1976, %v2267
      %v2396 = vadd.f32 %v1977, %v2268
      %v2397 = vadd.f32 %v1978, %v2269
      %v2398 = vadd.f32 %v1979, %v2270
      %v2399 = vadd.f32 %v1980, %v2271
      %v2400 = vadd.f32 %v1981, %v2272
      %v2401 = vadd.f32 %v1982, %v2273
      %v2402 = vadd.f32 %v1983, %v2274
      %v2403 = vadd.f32 %v1984, %v2275
      %v2404 = vadd.f32 %v1985, %v2276
      %v2405 = vadd.f32 %v1986, %v2277
      %v2406 = vadd.f32 %v1987, %v2278
      %v2407 = vadd.f32 %v1988, %v2279
      %v2408 = vadd.f32 %v1989, %v2280
      %v2409 = vadd.f32 %v1990, %v2281
      %v2410 = vadd.f32 %v1991, %v2282
      %v2411 = vadd.f32 %v1992, %v2283
      %v2412 = vadd.f32 %v1993, %v2284
      %v2413 = vadd.f32 %v1994, %v2285
      %v2414 = vadd.f32 %v1995, %v2286
      %v2415 = vadd.f32 %v1996, %v2287
      %v2416 = vadd.f32 %v1997, %v2288
      %v2417 = vadd.f32 %v1998, %v2289
      %v2418 = vadd.f32 %v1999, %v2290
      %v2419 = vadd.f32 %v2000, %v2291
      %v2420 = vadd.f32 %v2001, %v2292
      %v2421 = vadd.f32 %v2002, %v2293
      %v2422 = vadd.f32 %v2003, %v2294
      %v2423 = vadd.f32 %v2004, %v2295
      %v2424 = vadd.f32 %v2005, %v2296
      %v2425 = vadd.f32 %v2006, %v2297
      %v2426 = vadd.f32 %v2007, %v2298
      %v2427 = vadd.f32 %v2008, %v2299
      %v2428 = vadd.f32 %v2009, %v2300
      %v2429 = vadd.f32 %v2010, %v2301
      %v2430 = vadd.f32 %v2011, %v2302
      %v2431 = vadd.f32 %v2012, %v2303
      %v2432 = vadd.f32 %v2013, %v2304
      %v2433 = vadd.f32 %v2014, %v2305
      %v2434 = vadd.f32 %v2015, %v2306
      %v2435 = vadd.f32 %v2016, %v2307
      %v2436 = vadd.f32 %v2017, %v2308
      %v2437 = vadd.f32 %v2018, %v2309
      %v2438 = vadd.f32 %v2019, %v2310
      %v2439 = vadd.f32 %v2020, %v2311
      %v2440 = vadd.f32 %v2021, %v2312
      %v2441 = vadd.f32 %v2022, %v2313
      %v2442 = vadd.f32 %v2023, %v2314
      %v2443 = vadd.f32 %v2024, %v2315
      %v2444 = vadd.f32 %v2025, %v2316
      %v2445 = vadd.f32 %v2026, %v2317
      %v2446 = vadd.f32 %v2027, %v2318
      %v2447 = vadd.f32 %v2028, %v2319
      %v2448 = vadd.f32 %v2029, %v2320
      %v2449 = vadd.f32 %v2030, %v2321
      %v2450 = vadd.f32 %v2031, %v2322
      %v2451 = vadd.f32 %v2032, %v2323
      %v2452 = vadd.f32 %v2033, %v2324
      %v2453 = vadd.f32 %v2034, %v2325
      %v2454 = vadd.f32 %v2035, %v2326
      %v2455 = vadd.f32 %v2036, %v2327
      %v2456 = vadd.f32 %v2037, %v2328
      %v2457 = vadd.f32 %v2038, %v2329
      %v2458 = vlaneseq
      %v2459 = vshrl.u32 %v2458, 7
      %v2460 = vsub.s32 2, %v2459
      %v2461 = vrot.slane %v1542, %v2460
      %v2462 = vlaneseq
      %v2463 = vshrl.u32 %v2462, 7
      %v2464 = vsub.s32 6, %v2463
      %v2465 = vrot.slane %v1542, %v2464
      %v2466 = vlaneseq
      %v2467 = vshrl.u32 %v2466, 7
      %v2468 = vsub.s32 2, %v2467
      %v2469 = vrot.slane %v2461, %v2468
      %v2470 = vlaneseq
      %v2471 = vshrl.u32 %v2470, 7
      %v2472 = vsub.s32 2, %v2471
      %v2473 = vrot.slane %v2465, %v2472
      %vm2474 = vcmp.eq.s32.totalorder %v1486, %v2469
      %vm2475 = vcmp.eq.s32.totalorder %v1486, %v2473
      %vm2476 = vcmp.eq.s32.totalorder %v1487, %v2469
      %vm2477 = vcmp.eq.s32.totalorder %v1487, %v2473
      %vm2478 = vcmp.eq.s32.totalorder %v1488, %v2469
      %vm2479 = vcmp.eq.s32.totalorder %v1488, %v2473
      %vm2480 = vcmp.eq.s32.totalorder %v1489, %v2469
      %vm2481 = vcmp.eq.s32.totalorder %v1489, %v2473
      %vm2482 = vcmp.eq.s32.totalorder %v1490, %v2469
      %vm2483 = vcmp.eq.s32.totalorder %v1490, %v2473
      %vm2484 = vcmp.eq.s32.totalorder %v1561, %v2469
      %vm2485 = vcmp.eq.s32.totalorder %v1561, %v2473
      %vm2486 = vcmp.eq.s32.totalorder %v1562, %v2469
      %vm2487 = vcmp.eq.s32.totalorder %v1562, %v2473
      %vm2488 = vcmp.eq.s32.totalorder %v1563, %v2469
      %vm2489 = vcmp.eq.s32.totalorder %v1563, %v2473
      %vm2490 = vcmp.eq.s32.totalorder %v1564, %v2469
      %vm2491 = vcmp.eq.s32.totalorder %v1564, %v2473
      %vm2492 = vcmp.eq.s32.totalorder %v1565, %v2469
      %vm2493 = vcmp.eq.s32.totalorder %v1565, %v2473
      %vm2494 = vcmp.eq.s32.totalorder %v1566, %v2469
      %vm2495 = vcmp.eq.s32.totalorder %v1566, %v2473
      %vm2496 = vcmp.eq.s32.totalorder %v1567, %v2469
      %vm2497 = vcmp.eq.s32.totalorder %v1567, %v2473
      %vm2498 = vcmp.eq.s32.totalorder %v1568, %v2469
      %vm2499 = vcmp.eq.s32.totalorder %v1568, %v2473
      %vm2500 = vcmp.eq.s32.totalorder %v1569, %v2469
      %vm2501 = vcmp.eq.s32.totalorder %v1569, %v2473
      %vm2502 = vcmp.eq.s32.totalorder %v1570, %v2469
      %vm2503 = vcmp.eq.s32.totalorder %v1570, %v2473
      %vm2504 = vcmp.eq.s32.totalorder %v1571, %v2469
      %vm2505 = vcmp.eq.s32.totalorder %v1571, %v2473
      %vm2506 = vcmp.eq.s32.totalorder %v1572, %v2469
      %vm2507 = vcmp.eq.s32.totalorder %v1572, %v2473
      %vm2508 = vcmp.eq.s32.totalorder %v1573, %v2469
      %vm2509 = vcmp.eq.s32.totalorder %v1573, %v2473
      %vm2510 = vcmp.eq.s32.totalorder %v1574, %v2469
      %vm2511 = vcmp.eq.s32.totalorder %v1574, %v2473
      %vm2512 = vcmp.eq.s32.totalorder %v1575, %v2469
      %vm2513 = vcmp.eq.s32.totalorder %v1575, %v2473
      %vm2514 = vcmp.eq.s32.totalorder %v1576, %v2469
      %vm2515 = vcmp.eq.s32.totalorder %v1576, %v2473
      %vm2516 = vcmp.eq.s32.totalorder %v1577, %v2469
      %vm2517 = vcmp.eq.s32.totalorder %v1577, %v2473
      %vm2518 = vcmp.eq.s32.totalorder %v1578, %v2469
      %vm2519 = vcmp.eq.s32.totalorder %v1578, %v2473
      %vm2520 = vcmp.eq.s32.totalorder %v1579, %v2469
      %vm2521 = vcmp.eq.s32.totalorder %v1579, %v2473
      %vm2522 = vcmp.eq.s32.totalorder %v1580, %v2469
      %vm2523 = vcmp.eq.s32.totalorder %v1580, %v2473
      %vm2524 = vcmp.eq.s32.totalorder %v1581, %v2469
      %vm2525 = vcmp.eq.s32.totalorder %v1581, %v2473
      %vm2526 = vcmp.eq.s32.totalorder %v1582, %v2469
      %vm2527 = vcmp.eq.s32.totalorder %v1582, %v2473
      %vm2528 = vcmp.eq.s32.totalorder %v1583, %v2469
      %vm2529 = vcmp.eq.s32.totalorder %v1583, %v2473
      %vm2530 = vcmp.eq.s32.totalorder %v1584, %v2469
      %vm2531 = vcmp.eq.s32.totalorder %v1584, %v2473
      %vm2532 = vcmp.eq.s32.totalorder %v1585, %v2469
      %vm2533 = vcmp.eq.s32.totalorder %v1585, %v2473
      %vm2534 = vcmp.eq.s32.totalorder %v1586, %v2469
      %vm2535 = vcmp.eq.s32.totalorder %v1586, %v2473
      %vm2536 = vcmp.eq.s32.totalorder %v1587, %v2469
      %vm2537 = vcmp.eq.s32.totalorder %v1587, %v2473
      %vm2538 = vcmp.eq.s32.totalorder %v1588, %v2469
      %vm2539 = vcmp.eq.s32.totalorder %v1588, %v2473
      %vm2540 = vcmp.eq.s32.totalorder %v1589, %v2469
      %vm2541 = vcmp.eq.s32.totalorder %v1589, %v2473
      %vm2542 = vcmp.eq.s32.totalorder %v1590, %v2469
      %vm2543 = vcmp.eq.s32.totalorder %v1590, %v2473
      %vm2544 = vcmp.eq.s32.totalorder %v1591, %v2469
      %vm2545 = vcmp.eq.s32.totalorder %v1591, %v2473
      %vm2546 = vcmp.eq.s32.totalorder %v1592, %v2469
      %vm2547 = vcmp.eq.s32.totalorder %v1592, %v2473
      %vm2548 = vcmp.eq.s32.totalorder %v1593, %v2469
      %vm2549 = vcmp.eq.s32.totalorder %v1593, %v2473
      %vm2550 = vcmp.eq.s32.totalorder %v1594, %v2469
      %vm2551 = vcmp.eq.s32.totalorder %v1594, %v2473
      %vm2552 = vcmp.eq.s32.totalorder %v1595, %v2469
      %vm2553 = vcmp.eq.s32.totalorder %v1595, %v2473
      %vm2554 = vcmp.eq.s32.totalorder %v1596, %v2469
      %vm2555 = vcmp.eq.s32.totalorder %v1596, %v2473
      %vm2556 = vcmp.eq.s32.totalorder %v1597, %v2469
      %vm2557 = vcmp.eq.s32.totalorder %v1597, %v2473
      %vm2558 = vcmp.eq.s32.totalorder %v1598, %v2469
      %vm2559 = vcmp.eq.s32.totalorder %v1598, %v2473
      %vm2560 = vcmp.eq.s32.totalorder %v1599, %v2469
      %vm2561 = vcmp.eq.s32.totalorder %v1599, %v2473
      %vm2562 = vcmp.eq.s32.totalorder %v1600, %v2469
      %vm2563 = vcmp.eq.s32.totalorder %v1600, %v2473
      %vm2564 = vcmp.eq.s32.totalorder %v1601, %v2469
      %vm2565 = vcmp.eq.s32.totalorder %v1601, %v2473
      %vm2566 = vcmp.eq.s32.totalorder %v1602, %v2469
      %vm2567 = vcmp.eq.s32.totalorder %v1602, %v2473
      %vm2568 = vcmp.eq.s32.totalorder %v1603, %v2469
      %vm2569 = vcmp.eq.s32.totalorder %v1603, %v2473
      %vm2570 = vcmp.eq.s32.totalorder %v1604, %v2469
      %vm2571 = vcmp.eq.s32.totalorder %v1604, %v2473
      %vm2572 = vcmp.eq.s32.totalorder %v1605, %v2469
      %vm2573 = vcmp.eq.s32.totalorder %v1605, %v2473
      %vm2574 = vcmp.eq.s32.totalorder %v1606, %v2469
      %vm2575 = vcmp.eq.s32.totalorder %v1606, %v2473
      %vm2576 = vcmp.eq.s32.totalorder %v1607, %v2469
      %vm2577 = vcmp.eq.s32.totalorder %v1607, %v2473
      %vm2578 = vcmp.eq.s32.totalorder %v1608, %v2469
      %vm2579 = vcmp.eq.s32.totalorder %v1608, %v2473
      %vm2580 = vcmp.eq.s32.totalorder %v1609, %v2469
      %vm2581 = vcmp.eq.s32.totalorder %v1609, %v2473
      %vm2582 = vcmp.eq.s32.totalorder %v1610, %v2469
      %vm2583 = vcmp.eq.s32.totalorder %v1610, %v2473
      %vm2584 = vcmp.eq.s32.totalorder %v1611, %v2469
      %vm2585 = vcmp.eq.s32.totalorder %v1611, %v2473
      %vm2586 = vcmp.eq.s32.totalorder %v1612, %v2469
      %vm2587 = vcmp.eq.s32.totalorder %v1612, %v2473
      %vm2588 = vcmp.eq.s32.totalorder %v1613, %v2469
      %vm2589 = vcmp.eq.s32.totalorder %v1613, %v2473
      %vm2590 = vcmp.eq.s32.totalorder %v1614, %v2469
      %vm2591 = vcmp.eq.s32.totalorder %v1614, %v2473
      %vm2592 = vcmp.eq.s32.totalorder %v1615, %v2469
      %vm2593 = vcmp.eq.s32.totalorder %v1615, %v2473
      %vm2594 = vcmp.eq.s32.totalorder %v1616, %v2469
      %vm2595 = vcmp.eq.s32.totalorder %v1616, %v2473
      %vm2596 = vcmp.eq.s32.totalorder %v1617, %v2469
      %vm2597 = vcmp.eq.s32.totalorder %v1617, %v2473
      %vm2598 = vcmp.eq.s32.totalorder %v1618, %v2469
      %vm2599 = vcmp.eq.s32.totalorder %v1618, %v2473
      %vm2600 = vcmp.eq.s32.totalorder %v1619, %v2469
      %vm2601 = vcmp.eq.s32.totalorder %v1619, %v2473
      %v2603 = vlaneseq
      %v2604 = vshrl.u32 %v2603, 7
      %v2605 = vsub.s32 2, %v2604
      %v2606 = vrot.slane %v1543, %v2605
      %v2607 = vlaneseq
      %v2608 = vshrl.u32 %v2607, 7
      %v2609 = vsub.s32 6, %v2608
      %v2610 = vrot.slane %v1543, %v2609
      %v2613 = vlaneseq
      %v2614 = vshrl.u32 %v2613, 7
      %v2615 = vsub.s32 2, %v2614
      %v2616 = vrot.slane %v2606, %v2615
      %v2617 = vlaneseq
      %v2618 = vshrl.u32 %v2617, 7
      %v2619 = vsub.s32 2, %v2618
      %v2620 = vrot.slane %v2610, %v2619
      %v2621 = vsel %vm2474, %v2616, 0.0
      %v2622 = vsel %vm2475, %v2620, 0.0
      %v2623 = vsel %vm2476, %v2616, 0.0
      %v2624 = vsel %vm2477, %v2620, 0.0
      %v2625 = vsel %vm2478, %v2616, 0.0
      %v2626 = vsel %vm2479, %v2620, 0.0
      %v2627 = vsel %vm2480, %v2616, 0.0
      %v2628 = vsel %vm2481, %v2620, 0.0
      %v2629 = vsel %vm2482, %v2616, 0.0
      %v2630 = vsel %vm2483, %v2620, 0.0
      %v2631 = vsel %vm2484, %v2616, 0.0
      %v2632 = vsel %vm2485, %v2620, 0.0
      %v2633 = vsel %vm2486, %v2616, 0.0
      %v2634 = vsel %vm2487, %v2620, 0.0
      %v2635 = vsel %vm2488, %v2616, 0.0
      %v2636 = vsel %vm2489, %v2620, 0.0
      %v2637 = vsel %vm2490, %v2616, 0.0
      %v2638 = vsel %vm2491, %v2620, 0.0
      %v2639 = vsel %vm2492, %v2616, 0.0
      %v2640 = vsel %vm2493, %v2620, 0.0
      %v2641 = vsel %vm2494, %v2616, 0.0
      %v2642 = vsel %vm2495, %v2620, 0.0
      %v2643 = vsel %vm2496, %v2616, 0.0
      %v2644 = vsel %vm2497, %v2620, 0.0
      %v2645 = vsel %vm2498, %v2616, 0.0
      %v2646 = vsel %vm2499, %v2620, 0.0
      %v2647 = vsel %vm2500, %v2616, 0.0
      %v2648 = vsel %vm2501, %v2620, 0.0
      %v2649 = vsel %vm2502, %v2616, 0.0
      %v2650 = vsel %vm2503, %v2620, 0.0
      %v2651 = vsel %vm2504, %v2616, 0.0
      %v2652 = vsel %vm2505, %v2620, 0.0
      %v2653 = vsel %vm2506, %v2616, 0.0
      %v2654 = vsel %vm2507, %v2620, 0.0
      %v2655 = vsel %vm2508, %v2616, 0.0
      %v2656 = vsel %vm2509, %v2620, 0.0
      %v2657 = vsel %vm2510, %v2616, 0.0
      %v2658 = vsel %vm2511, %v2620, 0.0
      %v2659 = vsel %vm2512, %v2616, 0.0
      %v2660 = vsel %vm2513, %v2620, 0.0
      %v2661 = vsel %vm2514, %v2616, 0.0
      %v2662 = vsel %vm2515, %v2620, 0.0
      %v2663 = vsel %vm2516, %v2616, 0.0
      %v2664 = vsel %vm2517, %v2620, 0.0
      %v2665 = vsel %vm2518, %v2616, 0.0
      %v2666 = vsel %vm2519, %v2620, 0.0
      %v2667 = vsel %vm2520, %v2616, 0.0
      %v2668 = vsel %vm2521, %v2620, 0.0
      %v2669 = vsel %vm2522, %v2616, 0.0
      %v2670 = vsel %vm2523, %v2620, 0.0
      %v2671 = vsel %vm2524, %v2616, 0.0
      %v2672 = vsel %vm2525, %v2620, 0.0
      %v2673 = vsel %vm2526, %v2616, 0.0
      %v2674 = vsel %vm2527, %v2620, 0.0
      %v2675 = vsel %vm2528, %v2616, 0.0
      %v2676 = vsel %vm2529, %v2620, 0.0
      %v2677 = vsel %vm2530, %v2616, 0.0
      %v2678 = vsel %vm2531, %v2620, 0.0
      %v2679 = vsel %vm2532, %v2616, 0.0
      %v2680 = vsel %vm2533, %v2620, 0.0
      %v2681 = vsel %vm2534, %v2616, 0.0
      %v2682 = vsel %vm2535, %v2620, 0.0
      %v2683 = vsel %vm2536, %v2616, 0.0
      %v2684 = vsel %vm2537, %v2620, 0.0
      %v2685 = vsel %vm2538, %v2616, 0.0
      %v2686 = vsel %vm2539, %v2620, 0.0
      %v2687 = vsel %vm2540, %v2616, 0.0
      %v2688 = vsel %vm2541, %v2620, 0.0
      %v2689 = vsel %vm2542, %v2616, 0.0
      %v2690 = vsel %vm2543, %v2620, 0.0
      %v2691 = vsel %vm2544, %v2616, 0.0
      %v2692 = vsel %vm2545, %v2620, 0.0
      %v2693 = vsel %vm2546, %v2616, 0.0
      %v2694 = vsel %vm2547, %v2620, 0.0
      %v2695 = vsel %vm2548, %v2616, 0.0
      %v2696 = vsel %vm2549, %v2620, 0.0
      %v2697 = vsel %vm2550, %v2616, 0.0
      %v2698 = vsel %vm2551, %v2620, 0.0
      %v2699 = vsel %vm2552, %v2616, 0.0
      %v2700 = vsel %vm2553, %v2620, 0.0
      %v2701 = vsel %vm2554, %v2616, 0.0
      %v2702 = vsel %vm2555, %v2620, 0.0
      %v2703 = vsel %vm2556, %v2616, 0.0
      %v2704 = vsel %vm2557, %v2620, 0.0
      %v2705 = vsel %vm2558, %v2616, 0.0
      %v2706 = vsel %vm2559, %v2620, 0.0
      %v2707 = vsel %vm2560, %v2616, 0.0
      %v2708 = vsel %vm2561, %v2620, 0.0
      %v2709 = vsel %vm2562, %v2616, 0.0
      %v2710 = vsel %vm2563, %v2620, 0.0
      %v2711 = vsel %vm2564, %v2616, 0.0
      %v2712 = vsel %vm2565, %v2620, 0.0
      %v2713 = vsel %vm2566, %v2616, 0.0
      %v2714 = vsel %vm2567, %v2620, 0.0
      %v2715 = vsel %vm2568, %v2616, 0.0
      %v2716 = vsel %vm2569, %v2620, 0.0
      %v2717 = vsel %vm2570, %v2616, 0.0
      %v2718 = vsel %vm2571, %v2620, 0.0
      %v2719 = vsel %vm2572, %v2616, 0.0
      %v2720 = vsel %vm2573, %v2620, 0.0
      %v2721 = vsel %vm2574, %v2616, 0.0
      %v2722 = vsel %vm2575, %v2620, 0.0
      %v2723 = vsel %vm2576, %v2616, 0.0
      %v2724 = vsel %vm2577, %v2620, 0.0
      %v2725 = vsel %vm2578, %v2616, 0.0
      %v2726 = vsel %vm2579, %v2620, 0.0
      %v2727 = vsel %vm2580, %v2616, 0.0
      %v2728 = vsel %vm2581, %v2620, 0.0
      %v2729 = vsel %vm2582, %v2616, 0.0
      %v2730 = vsel %vm2583, %v2620, 0.0
      %v2731 = vsel %vm2584, %v2616, 0.0
      %v2732 = vsel %vm2585, %v2620, 0.0
      %v2733 = vsel %vm2586, %v2616, 0.0
      %v2734 = vsel %vm2587, %v2620, 0.0
      %v2735 = vsel %vm2588, %v2616, 0.0
      %v2736 = vsel %vm2589, %v2620, 0.0
      %v2737 = vsel %vm2590, %v2616, 0.0
      %v2738 = vsel %vm2591, %v2620, 0.0
      %v2739 = vsel %vm2592, %v2616, 0.0
      %v2740 = vsel %vm2593, %v2620, 0.0
      %v2741 = vsel %vm2594, %v2616, 0.0
      %v2742 = vsel %vm2595, %v2620, 0.0
      %v2743 = vsel %vm2596, %v2616, 0.0
      %v2744 = vsel %vm2597, %v2620, 0.0
      %v2745 = vsel %vm2598, %v2616, 0.0
      %v2746 = vsel %vm2599, %v2620, 0.0
      %v2747 = vsel %vm2600, %v2616, 0.0
      %v2748 = vsel %vm2601, %v2620, 0.0
      %v2749 = vadd.f32 %v2330, %v2621
      %v2750 = vadd.f32 %v2331, %v2622
      %v2751 = vadd.f32 %v2332, %v2623
      %v2752 = vadd.f32 %v2333, %v2624
      %v2753 = vadd.f32 %v2334, %v2625
      %v2754 = vadd.f32 %v2335, %v2626
      %v2755 = vadd.f32 %v2336, %v2627
      %v2756 = vadd.f32 %v2337, %v2628
      %v2757 = vadd.f32 %v2338, %v2629
      %v2758 = vadd.f32 %v2339, %v2630
      %v2759 = vadd.f32 %v2340, %v2631
      %v2760 = vadd.f32 %v2341, %v2632
      %v2761 = vadd.f32 %v2342, %v2633
      %v2762 = vadd.f32 %v2343, %v2634
      %v2763 = vadd.f32 %v2344, %v2635
      %v2764 = vadd.f32 %v2345, %v2636
      %v2765 = vadd.f32 %v2346, %v2637
      %v2766 = vadd.f32 %v2347, %v2638
      %v2767 = vadd.f32 %v2348, %v2639
      %v2768 = vadd.f32 %v2349, %v2640
      %v2769 = vadd.f32 %v2350, %v2641
      %v2770 = vadd.f32 %v2351, %v2642
      %v2771 = vadd.f32 %v2352, %v2643
      %v2772 = vadd.f32 %v2353, %v2644
      %v2773 = vadd.f32 %v2354, %v2645
      %v2774 = vadd.f32 %v2355, %v2646
      %v2775 = vadd.f32 %v2356, %v2647
      %v2776 = vadd.f32 %v2357, %v2648
      %v2777 = vadd.f32 %v2358, %v2649
      %v2778 = vadd.f32 %v2359, %v2650
      %v2779 = vadd.f32 %v2360, %v2651
      %v2780 = vadd.f32 %v2361, %v2652
      %v2781 = vadd.f32 %v2362, %v2653
      %v2782 = vadd.f32 %v2363, %v2654
      %v2783 = vadd.f32 %v2364, %v2655
      %v2784 = vadd.f32 %v2365, %v2656
      %v2785 = vadd.f32 %v2366, %v2657
      %v2786 = vadd.f32 %v2367, %v2658
      %v2787 = vadd.f32 %v2368, %v2659
      %v2788 = vadd.f32 %v2369, %v2660
      %v2789 = vadd.f32 %v2370, %v2661
      %v2790 = vadd.f32 %v2371, %v2662
      %v2791 = vadd.f32 %v2372, %v2663
      %v2792 = vadd.f32 %v2373, %v2664
      %v2793 = vadd.f32 %v2374, %v2665
      %v2794 = vadd.f32 %v2375, %v2666
      %v2795 = vadd.f32 %v2376, %v2667
      %v2796 = vadd.f32 %v2377, %v2668
      %v2797 = vadd.f32 %v2378, %v2669
      %v2798 = vadd.f32 %v2379, %v2670
      %v2799 = vadd.f32 %v2380, %v2671
      %v2800 = vadd.f32 %v2381, %v2672
      %v2801 = vadd.f32 %v2382, %v2673
      %v2802 = vadd.f32 %v2383, %v2674
      %v2803 = vadd.f32 %v2384, %v2675
      %v2804 = vadd.f32 %v2385, %v2676
      %v2805 = vadd.f32 %v2386, %v2677
      %v2806 = vadd.f32 %v2387, %v2678
      %v2807 = vadd.f32 %v2388, %v2679
      %v2808 = vadd.f32 %v2389, %v2680
      %v2809 = vadd.f32 %v2390, %v2681
      %v2810 = vadd.f32 %v2391, %v2682
      %v2811 = vadd.f32 %v2392, %v2683
      %v2812 = vadd.f32 %v2393, %v2684
      %v2813 = vadd.f32 %v2394, %v2685
      %v2814 = vadd.f32 %v2395, %v2686
      %v2815 = vadd.f32 %v2396, %v2687
      %v2816 = vadd.f32 %v2397, %v2688
      %v2817 = vadd.f32 %v2398, %v2689
      %v2818 = vadd.f32 %v2399, %v2690
      %v2819 = vadd.f32 %v2400, %v2691
      %v2820 = vadd.f32 %v2401, %v2692
      %v2821 = vadd.f32 %v2402, %v2693
      %v2822 = vadd.f32 %v2403, %v2694
      %v2823 = vadd.f32 %v2404, %v2695
      %v2824 = vadd.f32 %v2405, %v2696
      %v2825 = vadd.f32 %v2406, %v2697
      %v2826 = vadd.f32 %v2407, %v2698
      %v2827 = vadd.f32 %v2408, %v2699
      %v2828 = vadd.f32 %v2409, %v2700
      %v2829 = vadd.f32 %v2410, %v2701
      %v2830 = vadd.f32 %v2411, %v2702
      %v2831 = vadd.f32 %v2412, %v2703
      %v2832 = vadd.f32 %v2413, %v2704
      %v2833 = vadd.f32 %v2414, %v2705
      %v2834 = vadd.f32 %v2415, %v2706
      %v2835 = vadd.f32 %v2416, %v2707
      %v2836 = vadd.f32 %v2417, %v2708
      %v2837 = vadd.f32 %v2418, %v2709
      %v2838 = vadd.f32 %v2419, %v2710
      %v2839 = vadd.f32 %v2420, %v2711
      %v2840 = vadd.f32 %v2421, %v2712
      %v2841 = vadd.f32 %v2422, %v2713
      %v2842 = vadd.f32 %v2423, %v2714
      %v2843 = vadd.f32 %v2424, %v2715
      %v2844 = vadd.f32 %v2425, %v2716
      %v2845 = vadd.f32 %v2426, %v2717
      %v2846 = vadd.f32 %v2427, %v2718
      %v2847 = vadd.f32 %v2428, %v2719
      %v2848 = vadd.f32 %v2429, %v2720
      %v2849 = vadd.f32 %v2430, %v2721
      %v2850 = vadd.f32 %v2431, %v2722
      %v2851 = vadd.f32 %v2432, %v2723
      %v2852 = vadd.f32 %v2433, %v2724
      %v2853 = vadd.f32 %v2434, %v2725
      %v2854 = vadd.f32 %v2435, %v2726
      %v2855 = vadd.f32 %v2436, %v2727
      %v2856 = vadd.f32 %v2437, %v2728
      %v2857 = vadd.f32 %v2438, %v2729
      %v2858 = vadd.f32 %v2439, %v2730
      %v2859 = vadd.f32 %v2440, %v2731
      %v2860 = vadd.f32 %v2441, %v2732
      %v2861 = vadd.f32 %v2442, %v2733
      %v2862 = vadd.f32 %v2443, %v2734
      %v2863 = vadd.f32 %v2444, %v2735
      %v2864 = vadd.f32 %v2445, %v2736
      %v2865 = vadd.f32 %v2446, %v2737
      %v2866 = vadd.f32 %v2447, %v2738
      %v2867 = vadd.f32 %v2448, %v2739
      %v2868 = vadd.f32 %v2449, %v2740
      %v2869 = vadd.f32 %v2450, %v2741
      %v2870 = vadd.f32 %v2451, %v2742
      %v2871 = vadd.f32 %v2452, %v2743
      %v2872 = vadd.f32 %v2453, %v2744
      %v2873 = vadd.f32 %v2454, %v2745
      %v2874 = vadd.f32 %v2455, %v2746
      %v2875 = vadd.f32 %v2456, %v2747
      %v2876 = vadd.f32 %v2457, %v2748
      %v2877 = vlaneseq
      %v2878 = vshrl.u32 %v2877, 7
      %v2879 = vsub.s32 2, %v2878
      %v2880 = vrot.slane %v1544, %v2879
      %v2881 = vlaneseq
      %v2882 = vshrl.u32 %v2881, 7
      %v2883 = vsub.s32 6, %v2882
      %v2884 = vrot.slane %v1544, %v2883
      %v2885 = vlaneseq
      %v2886 = vshrl.u32 %v2885, 7
      %v2887 = vsub.s32 2, %v2886
      %v2888 = vrot.slane %v2880, %v2887
      %v2889 = vlaneseq
      %v2890 = vshrl.u32 %v2889, 7
      %v2891 = vsub.s32 2, %v2890
      %v2892 = vrot.slane %v2884, %v2891
      %vm2893 = vcmp.eq.s32.totalorder %v1486, %v2888
      %vm2894 = vcmp.eq.s32.totalorder %v1486, %v2892
      %vm2895 = vcmp.eq.s32.totalorder %v1487, %v2888
      %vm2896 = vcmp.eq.s32.totalorder %v1487, %v2892
      %vm2897 = vcmp.eq.s32.totalorder %v1488, %v2888
      %vm2898 = vcmp.eq.s32.totalorder %v1488, %v2892
      %vm2899 = vcmp.eq.s32.totalorder %v1489, %v2888
      %vm2900 = vcmp.eq.s32.totalorder %v1489, %v2892
      %vm2901 = vcmp.eq.s32.totalorder %v1490, %v2888
      %vm2902 = vcmp.eq.s32.totalorder %v1490, %v2892
      %vm2903 = vcmp.eq.s32.totalorder %v1561, %v2888
      %vm2904 = vcmp.eq.s32.totalorder %v1561, %v2892
      %vm2905 = vcmp.eq.s32.totalorder %v1562, %v2888
      %vm2906 = vcmp.eq.s32.totalorder %v1562, %v2892
      %vm2907 = vcmp.eq.s32.totalorder %v1563, %v2888
      %vm2908 = vcmp.eq.s32.totalorder %v1563, %v2892
      %vm2909 = vcmp.eq.s32.totalorder %v1564, %v2888
      %vm2910 = vcmp.eq.s32.totalorder %v1564, %v2892
      %vm2911 = vcmp.eq.s32.totalorder %v1565, %v2888
      %vm2912 = vcmp.eq.s32.totalorder %v1565, %v2892
      %vm2913 = vcmp.eq.s32.totalorder %v1566, %v2888
      %vm2914 = vcmp.eq.s32.totalorder %v1566, %v2892
      %vm2915 = vcmp.eq.s32.totalorder %v1567, %v2888
      %vm2916 = vcmp.eq.s32.totalorder %v1567, %v2892
      %vm2917 = vcmp.eq.s32.totalorder %v1568, %v2888
      %vm2918 = vcmp.eq.s32.totalorder %v1568, %v2892
      %vm2919 = vcmp.eq.s32.totalorder %v1569, %v2888
      %vm2920 = vcmp.eq.s32.totalorder %v1569, %v2892
      %vm2921 = vcmp.eq.s32.totalorder %v1570, %v2888
      %vm2922 = vcmp.eq.s32.totalorder %v1570, %v2892
      %vm2923 = vcmp.eq.s32.totalorder %v1571, %v2888
      %vm2924 = vcmp.eq.s32.totalorder %v1571, %v2892
      %vm2925 = vcmp.eq.s32.totalorder %v1572, %v2888
      %vm2926 = vcmp.eq.s32.totalorder %v1572, %v2892
      %vm2927 = vcmp.eq.s32.totalorder %v1573, %v2888
      %vm2928 = vcmp.eq.s32.totalorder %v1573, %v2892
      %vm2929 = vcmp.eq.s32.totalorder %v1574, %v2888
      %vm2930 = vcmp.eq.s32.totalorder %v1574, %v2892
      %vm2931 = vcmp.eq.s32.totalorder %v1575, %v2888
      %vm2932 = vcmp.eq.s32.totalorder %v1575, %v2892
      %vm2933 = vcmp.eq.s32.totalorder %v1576, %v2888
      %vm2934 = vcmp.eq.s32.totalorder %v1576, %v2892
      %vm2935 = vcmp.eq.s32.totalorder %v1577, %v2888
      %vm2936 = vcmp.eq.s32.totalorder %v1577, %v2892
      %vm2937 = vcmp.eq.s32.totalorder %v1578, %v2888
      %vm2938 = vcmp.eq.s32.totalorder %v1578, %v2892
      %vm2939 = vcmp.eq.s32.totalorder %v1579, %v2888
      %vm2940 = vcmp.eq.s32.totalorder %v1579, %v2892
      %vm2941 = vcmp.eq.s32.totalorder %v1580, %v2888
      %vm2942 = vcmp.eq.s32.totalorder %v1580, %v2892
      %vm2943 = vcmp.eq.s32.totalorder %v1581, %v2888
      %vm2944 = vcmp.eq.s32.totalorder %v1581, %v2892
      %vm2945 = vcmp.eq.s32.totalorder %v1582, %v2888
      %vm2946 = vcmp.eq.s32.totalorder %v1582, %v2892
      %vm2947 = vcmp.eq.s32.totalorder %v1583, %v2888
      %vm2948 = vcmp.eq.s32.totalorder %v1583, %v2892
      %vm2949 = vcmp.eq.s32.totalorder %v1584, %v2888
      %vm2950 = vcmp.eq.s32.totalorder %v1584, %v2892
      %vm2951 = vcmp.eq.s32.totalorder %v1585, %v2888
      %vm2952 = vcmp.eq.s32.totalorder %v1585, %v2892
      %vm2953 = vcmp.eq.s32.totalorder %v1586, %v2888
      %vm2954 = vcmp.eq.s32.totalorder %v1586, %v2892
      %vm2955 = vcmp.eq.s32.totalorder %v1587, %v2888
      %vm2956 = vcmp.eq.s32.totalorder %v1587, %v2892
      %vm2957 = vcmp.eq.s32.totalorder %v1588, %v2888
      %vm2958 = vcmp.eq.s32.totalorder %v1588, %v2892
      %vm2959 = vcmp.eq.s32.totalorder %v1589, %v2888
      %vm2960 = vcmp.eq.s32.totalorder %v1589, %v2892
      %vm2961 = vcmp.eq.s32.totalorder %v1590, %v2888
      %vm2962 = vcmp.eq.s32.totalorder %v1590, %v2892
      %vm2963 = vcmp.eq.s32.totalorder %v1591, %v2888
      %vm2964 = vcmp.eq.s32.totalorder %v1591, %v2892
      %vm2965 = vcmp.eq.s32.totalorder %v1592, %v2888
      %vm2966 = vcmp.eq.s32.totalorder %v1592, %v2892
      %vm2967 = vcmp.eq.s32.totalorder %v1593, %v2888
      %vm2968 = vcmp.eq.s32.totalorder %v1593, %v2892
      %vm2969 = vcmp.eq.s32.totalorder %v1594, %v2888
      %vm2970 = vcmp.eq.s32.totalorder %v1594, %v2892
      %vm2971 = vcmp.eq.s32.totalorder %v1595, %v2888
      %vm2972 = vcmp.eq.s32.totalorder %v1595, %v2892
      %vm2973 = vcmp.eq.s32.totalorder %v1596, %v2888
      %vm2974 = vcmp.eq.s32.totalorder %v1596, %v2892
      %vm2975 = vcmp.eq.s32.totalorder %v1597, %v2888
      %vm2976 = vcmp.eq.s32.totalorder %v1597, %v2892
      %vm2977 = vcmp.eq.s32.totalorder %v1598, %v2888
      %vm2978 = vcmp.eq.s32.totalorder %v1598, %v2892
      %vm2979 = vcmp.eq.s32.totalorder %v1599, %v2888
      %vm2980 = vcmp.eq.s32.totalorder %v1599, %v2892
      %vm2981 = vcmp.eq.s32.totalorder %v1600, %v2888
      %vm2982 = vcmp.eq.s32.totalorder %v1600, %v2892
      %vm2983 = vcmp.eq.s32.totalorder %v1601, %v2888
      %vm2984 = vcmp.eq.s32.totalorder %v1601, %v2892
      %vm2985 = vcmp.eq.s32.totalorder %v1602, %v2888
      %vm2986 = vcmp.eq.s32.totalorder %v1602, %v2892
      %vm2987 = vcmp.eq.s32.totalorder %v1603, %v2888
      %vm2988 = vcmp.eq.s32.totalorder %v1603, %v2892
      %vm2989 = vcmp.eq.s32.totalorder %v1604, %v2888
      %vm2990 = vcmp.eq.s32.totalorder %v1604, %v2892
      %vm2991 = vcmp.eq.s32.totalorder %v1605, %v2888
      %vm2992 = vcmp.eq.s32.totalorder %v1605, %v2892
      %vm2993 = vcmp.eq.s32.totalorder %v1606, %v2888
      %vm2994 = vcmp.eq.s32.totalorder %v1606, %v2892
      %vm2995 = vcmp.eq.s32.totalorder %v1607, %v2888
      %vm2996 = vcmp.eq.s32.totalorder %v1607, %v2892
      %vm2997 = vcmp.eq.s32.totalorder %v1608, %v2888
      %vm2998 = vcmp.eq.s32.totalorder %v1608, %v2892
      %vm2999 = vcmp.eq.s32.totalorder %v1609, %v2888
      %vm3000 = vcmp.eq.s32.totalorder %v1609, %v2892
      %vm3001 = vcmp.eq.s32.totalorder %v1610, %v2888
      %vm3002 = vcmp.eq.s32.totalorder %v1610, %v2892
      %vm3003 = vcmp.eq.s32.totalorder %v1611, %v2888
      %vm3004 = vcmp.eq.s32.totalorder %v1611, %v2892
      %vm3005 = vcmp.eq.s32.totalorder %v1612, %v2888
      %vm3006 = vcmp.eq.s32.totalorder %v1612, %v2892
      %vm3007 = vcmp.eq.s32.totalorder %v1613, %v2888
      %vm3008 = vcmp.eq.s32.totalorder %v1613, %v2892
      %vm3009 = vcmp.eq.s32.totalorder %v1614, %v2888
      %vm3010 = vcmp.eq.s32.totalorder %v1614, %v2892
      %vm3011 = vcmp.eq.s32.totalorder %v1615, %v2888
      %vm3012 = vcmp.eq.s32.totalorder %v1615, %v2892
      %vm3013 = vcmp.eq.s32.totalorder %v1616, %v2888
      %vm3014 = vcmp.eq.s32.totalorder %v1616, %v2892
      %vm3015 = vcmp.eq.s32.totalorder %v1617, %v2888
      %vm3016 = vcmp.eq.s32.totalorder %v1617, %v2892
      %vm3017 = vcmp.eq.s32.totalorder %v1618, %v2888
      %vm3018 = vcmp.eq.s32.totalorder %v1618, %v2892
      %vm3019 = vcmp.eq.s32.totalorder %v1619, %v2888
      %vm3020 = vcmp.eq.s32.totalorder %v1619, %v2892
      %v3022 = vlaneseq
      %v3023 = vshrl.u32 %v3022, 7
      %v3024 = vsub.s32 2, %v3023
      %v3025 = vrot.slane %v1545, %v3024
      %v3026 = vlaneseq
      %v3027 = vshrl.u32 %v3026, 7
      %v3028 = vsub.s32 6, %v3027
      %v3029 = vrot.slane %v1545, %v3028
      %v3032 = vlaneseq
      %v3033 = vshrl.u32 %v3032, 7
      %v3034 = vsub.s32 2, %v3033
      %v3035 = vrot.slane %v3025, %v3034
      %v3036 = vlaneseq
      %v3037 = vshrl.u32 %v3036, 7
      %v3038 = vsub.s32 2, %v3037
      %v3039 = vrot.slane %v3029, %v3038
      %v3040 = vsel %vm2893, %v3035, 0.0
      %v3041 = vsel %vm2894, %v3039, 0.0
      %v3042 = vsel %vm2895, %v3035, 0.0
      %v3043 = vsel %vm2896, %v3039, 0.0
      %v3044 = vsel %vm2897, %v3035, 0.0
      %v3045 = vsel %vm2898, %v3039, 0.0
      %v3046 = vsel %vm2899, %v3035, 0.0
      %v3047 = vsel %vm2900, %v3039, 0.0
      %v3048 = vsel %vm2901, %v3035, 0.0
      %v3049 = vsel %vm2902, %v3039, 0.0
      %v3050 = vsel %vm2903, %v3035, 0.0
      %v3051 = vsel %vm2904, %v3039, 0.0
      %v3052 = vsel %vm2905, %v3035, 0.0
      %v3053 = vsel %vm2906, %v3039, 0.0
      %v3054 = vsel %vm2907, %v3035, 0.0
      %v3055 = vsel %vm2908, %v3039, 0.0
      %v3056 = vsel %vm2909, %v3035, 0.0
      %v3057 = vsel %vm2910, %v3039, 0.0
      %v3058 = vsel %vm2911, %v3035, 0.0
      %v3059 = vsel %vm2912, %v3039, 0.0
      %v3060 = vsel %vm2913, %v3035, 0.0
      %v3061 = vsel %vm2914, %v3039, 0.0
      %v3062 = vsel %vm2915, %v3035, 0.0
      %v3063 = vsel %vm2916, %v3039, 0.0
      %v3064 = vsel %vm2917, %v3035, 0.0
      %v3065 = vsel %vm2918, %v3039, 0.0
      %v3066 = vsel %vm2919, %v3035, 0.0
      %v3067 = vsel %vm2920, %v3039, 0.0
      %v3068 = vsel %vm2921, %v3035, 0.0
      %v3069 = vsel %vm2922, %v3039, 0.0
      %v3070 = vsel %vm2923, %v3035, 0.0
      %v3071 = vsel %vm2924, %v3039, 0.0
      %v3072 = vsel %vm2925, %v3035, 0.0
      %v3073 = vsel %vm2926, %v3039, 0.0
      %v3074 = vsel %vm2927, %v3035, 0.0
      %v3075 = vsel %vm2928, %v3039, 0.0
      %v3076 = vsel %vm2929, %v3035, 0.0
      %v3077 = vsel %vm2930, %v3039, 0.0
      %v3078 = vsel %vm2931, %v3035, 0.0
      %v3079 = vsel %vm2932, %v3039, 0.0
      %v3080 = vsel %vm2933, %v3035, 0.0
      %v3081 = vsel %vm2934, %v3039, 0.0
      %v3082 = vsel %vm2935, %v3035, 0.0
      %v3083 = vsel %vm2936, %v3039, 0.0
      %v3084 = vsel %vm2937, %v3035, 0.0
      %v3085 = vsel %vm2938, %v3039, 0.0
      %v3086 = vsel %vm2939, %v3035, 0.0
      %v3087 = vsel %vm2940, %v3039, 0.0
      %v3088 = vsel %vm2941, %v3035, 0.0
      %v3089 = vsel %vm2942, %v3039, 0.0
      %v3090 = vsel %vm2943, %v3035, 0.0
      %v3091 = vsel %vm2944, %v3039, 0.0
      %v3092 = vsel %vm2945, %v3035, 0.0
      %v3093 = vsel %vm2946, %v3039, 0.0
      %v3094 = vsel %vm2947, %v3035, 0.0
      %v3095 = vsel %vm2948, %v3039, 0.0
      %v3096 = vsel %vm2949, %v3035, 0.0
      %v3097 = vsel %vm2950, %v3039, 0.0
      %v3098 = vsel %vm2951, %v3035, 0.0
      %v3099 = vsel %vm2952, %v3039, 0.0
      %v3100 = vsel %vm2953, %v3035, 0.0
      %v3101 = vsel %vm2954, %v3039, 0.0
      %v3102 = vsel %vm2955, %v3035, 0.0
      %v3103 = vsel %vm2956, %v3039, 0.0
      %v3104 = vsel %vm2957, %v3035, 0.0
      %v3105 = vsel %vm2958, %v3039, 0.0
      %v3106 = vsel %vm2959, %v3035, 0.0
      %v3107 = vsel %vm2960, %v3039, 0.0
      %v3108 = vsel %vm2961, %v3035, 0.0
      %v3109 = vsel %vm2962, %v3039, 0.0
      %v3110 = vsel %vm2963, %v3035, 0.0
      %v3111 = vsel %vm2964, %v3039, 0.0
      %v3112 = vsel %vm2965, %v3035, 0.0
      %v3113 = vsel %vm2966, %v3039, 0.0
      %v3114 = vsel %vm2967, %v3035, 0.0
      %v3115 = vsel %vm2968, %v3039, 0.0
      %v3116 = vsel %vm2969, %v3035, 0.0
      %v3117 = vsel %vm2970, %v3039, 0.0
      %v3118 = vsel %vm2971, %v3035, 0.0
      %v3119 = vsel %vm2972, %v3039, 0.0
      %v3120 = vsel %vm2973, %v3035, 0.0
      %v3121 = vsel %vm2974, %v3039, 0.0
      %v3122 = vsel %vm2975, %v3035, 0.0
      %v3123 = vsel %vm2976, %v3039, 0.0
      %v3124 = vsel %vm2977, %v3035, 0.0
      %v3125 = vsel %vm2978, %v3039, 0.0
      %v3126 = vsel %vm2979, %v3035, 0.0
      %v3127 = vsel %vm2980, %v3039, 0.0
      %v3128 = vsel %vm2981, %v3035, 0.0
      %v3129 = vsel %vm2982, %v3039, 0.0
      %v3130 = vsel %vm2983, %v3035, 0.0
      %v3131 = vsel %vm2984, %v3039, 0.0
      %v3132 = vsel %vm2985, %v3035, 0.0
      %v3133 = vsel %vm2986, %v3039, 0.0
      %v3134 = vsel %vm2987, %v3035, 0.0
      %v3135 = vsel %vm2988, %v3039, 0.0
      %v3136 = vsel %vm2989, %v3035, 0.0
      %v3137 = vsel %vm2990, %v3039, 0.0
      %v3138 = vsel %vm2991, %v3035, 0.0
      %v3139 = vsel %vm2992, %v3039, 0.0
      %v3140 = vsel %vm2993, %v3035, 0.0
      %v3141 = vsel %vm2994, %v3039, 0.0
      %v3142 = vsel %vm2995, %v3035, 0.0
      %v3143 = vsel %vm2996, %v3039, 0.0
      %v3144 = vsel %vm2997, %v3035, 0.0
      %v3145 = vsel %vm2998, %v3039, 0.0
      %v3146 = vsel %vm2999, %v3035, 0.0
      %v3147 = vsel %vm3000, %v3039, 0.0
      %v3148 = vsel %vm3001, %v3035, 0.0
      %v3149 = vsel %vm3002, %v3039, 0.0
      %v3150 = vsel %vm3003, %v3035, 0.0
      %v3151 = vsel %vm3004, %v3039, 0.0
      %v3152 = vsel %vm3005, %v3035, 0.0
      %v3153 = vsel %vm3006, %v3039, 0.0
      %v3154 = vsel %vm3007, %v3035, 0.0
      %v3155 = vsel %vm3008, %v3039, 0.0
      %v3156 = vsel %vm3009, %v3035, 0.0
      %v3157 = vsel %vm3010, %v3039, 0.0
      %v3158 = vsel %vm3011, %v3035, 0.0
      %v3159 = vsel %vm3012, %v3039, 0.0
      %v3160 = vsel %vm3013, %v3035, 0.0
      %v3161 = vsel %vm3014, %v3039, 0.0
      %v3162 = vsel %vm3015, %v3035, 0.0
      %v3163 = vsel %vm3016, %v3039, 0.0
      %v3164 = vsel %vm3017, %v3035, 0.0
      %v3165 = vsel %vm3018, %v3039, 0.0
      %v3166 = vsel %vm3019, %v3035, 0.0
      %v3167 = vsel %vm3020, %v3039, 0.0
      %v3168 = vadd.f32 %v2749, %v3040
      %v3169 = vadd.f32 %v2750, %v3041
      %v3170 = vadd.f32 %v2751, %v3042
      %v3171 = vadd.f32 %v2752, %v3043
      %v3172 = vadd.f32 %v2753, %v3044
      %v3173 = vadd.f32 %v2754, %v3045
      %v3174 = vadd.f32 %v2755, %v3046
      %v3175 = vadd.f32 %v2756, %v3047
      %v3176 = vadd.f32 %v2757, %v3048
      %v3177 = vadd.f32 %v2758, %v3049
      %v3178 = vadd.f32 %v2759, %v3050
      %v3179 = vadd.f32 %v2760, %v3051
      %v3180 = vadd.f32 %v2761, %v3052
      %v3181 = vadd.f32 %v2762, %v3053
      %v3182 = vadd.f32 %v2763, %v3054
      %v3183 = vadd.f32 %v2764, %v3055
      %v3184 = vadd.f32 %v2765, %v3056
      %v3185 = vadd.f32 %v2766, %v3057
      %v3186 = vadd.f32 %v2767, %v3058
      %v3187 = vadd.f32 %v2768, %v3059
      %v3188 = vadd.f32 %v2769, %v3060
      %v3189 = vadd.f32 %v2770, %v3061
      %v3190 = vadd.f32 %v2771, %v3062
      %v3191 = vadd.f32 %v2772, %v3063
      %v3192 = vadd.f32 %v2773, %v3064
      %v3193 = vadd.f32 %v2774, %v3065
      %v3194 = vadd.f32 %v2775, %v3066
      %v3195 = vadd.f32 %v2776, %v3067
      %v3196 = vadd.f32 %v2777, %v3068
      %v3197 = vadd.f32 %v2778, %v3069
      %v3198 = vadd.f32 %v2779, %v3070
      %v3199 = vadd.f32 %v2780, %v3071
      %v3200 = vadd.f32 %v2781, %v3072
      %v3201 = vadd.f32 %v2782, %v3073
      %v3202 = vadd.f32 %v2783, %v3074
      %v3203 = vadd.f32 %v2784, %v3075
      %v3204 = vadd.f32 %v2785, %v3076
      %v3205 = vadd.f32 %v2786, %v3077
      %v3206 = vadd.f32 %v2787, %v3078
      %v3207 = vadd.f32 %v2788, %v3079
      %v3208 = vadd.f32 %v2789, %v3080
      %v3209 = vadd.f32 %v2790, %v3081
      %v3210 = vadd.f32 %v2791, %v3082
      %v3211 = vadd.f32 %v2792, %v3083
      %v3212 = vadd.f32 %v2793, %v3084
      %v3213 = vadd.f32 %v2794, %v3085
      %v3214 = vadd.f32 %v2795, %v3086
      %v3215 = vadd.f32 %v2796, %v3087
      %v3216 = vadd.f32 %v2797, %v3088
      %v3217 = vadd.f32 %v2798, %v3089
      %v3218 = vadd.f32 %v2799, %v3090
      %v3219 = vadd.f32 %v2800, %v3091
      %v3220 = vadd.f32 %v2801, %v3092
      %v3221 = vadd.f32 %v2802, %v3093
      %v3222 = vadd.f32 %v2803, %v3094
      %v3223 = vadd.f32 %v2804, %v3095
      %v3224 = vadd.f32 %v2805, %v3096
      %v3225 = vadd.f32 %v2806, %v3097
      %v3226 = vadd.f32 %v2807, %v3098
      %v3227 = vadd.f32 %v2808, %v3099
      %v3228 = vadd.f32 %v2809, %v3100
      %v3229 = vadd.f32 %v2810, %v3101
      %v3230 = vadd.f32 %v2811, %v3102
      %v3231 = vadd.f32 %v2812, %v3103
      %v3232 = vadd.f32 %v2813, %v3104
      %v3233 = vadd.f32 %v2814, %v3105
      %v3234 = vadd.f32 %v2815, %v3106
      %v3235 = vadd.f32 %v2816, %v3107
      %v3236 = vadd.f32 %v2817, %v3108
      %v3237 = vadd.f32 %v2818, %v3109
      %v3238 = vadd.f32 %v2819, %v3110
      %v3239 = vadd.f32 %v2820, %v3111
      %v3240 = vadd.f32 %v2821, %v3112
      %v3241 = vadd.f32 %v2822, %v3113
      %v3242 = vadd.f32 %v2823, %v3114
      %v3243 = vadd.f32 %v2824, %v3115
      %v3244 = vadd.f32 %v2825, %v3116
      %v3245 = vadd.f32 %v2826, %v3117
      %v3246 = vadd.f32 %v2827, %v3118
      %v3247 = vadd.f32 %v2828, %v3119
      %v3248 = vadd.f32 %v2829, %v3120
      %v3249 = vadd.f32 %v2830, %v3121
      %v3250 = vadd.f32 %v2831, %v3122
      %v3251 = vadd.f32 %v2832, %v3123
      %v3252 = vadd.f32 %v2833, %v3124
      %v3253 = vadd.f32 %v2834, %v3125
      %v3254 = vadd.f32 %v2835, %v3126
      %v3255 = vadd.f32 %v2836, %v3127
      %v3256 = vadd.f32 %v2837, %v3128
      %v3257 = vadd.f32 %v2838, %v3129
      %v3258 = vadd.f32 %v2839, %v3130
      %v3259 = vadd.f32 %v2840, %v3131
      %v3260 = vadd.f32 %v2841, %v3132
      %v3261 = vadd.f32 %v2842, %v3133
      %v3262 = vadd.f32 %v2843, %v3134
      %v3263 = vadd.f32 %v2844, %v3135
      %v3264 = vadd.f32 %v2845, %v3136
      %v3265 = vadd.f32 %v2846, %v3137
      %v3266 = vadd.f32 %v2847, %v3138
      %v3267 = vadd.f32 %v2848, %v3139
      %v3268 = vadd.f32 %v2849, %v3140
      %v3269 = vadd.f32 %v2850, %v3141
      %v3270 = vadd.f32 %v2851, %v3142
      %v3271 = vadd.f32 %v2852, %v3143
      %v3272 = vadd.f32 %v2853, %v3144
      %v3273 = vadd.f32 %v2854, %v3145
      %v3274 = vadd.f32 %v2855, %v3146
      %v3275 = vadd.f32 %v2856, %v3147
      %v3276 = vadd.f32 %v2857, %v3148
      %v3277 = vadd.f32 %v2858, %v3149
      %v3278 = vadd.f32 %v2859, %v3150
      %v3279 = vadd.f32 %v2860, %v3151
      %v3280 = vadd.f32 %v2861, %v3152
      %v3281 = vadd.f32 %v2862, %v3153
      %v3282 = vadd.f32 %v2863, %v3154
      %v3283 = vadd.f32 %v2864, %v3155
      %v3284 = vadd.f32 %v2865, %v3156
      %v3285 = vadd.f32 %v2866, %v3157
      %v3286 = vadd.f32 %v2867, %v3158
      %v3287 = vadd.f32 %v2868, %v3159
      %v3288 = vadd.f32 %v2869, %v3160
      %v3289 = vadd.f32 %v2870, %v3161
      %v3290 = vadd.f32 %v2871, %v3162
      %v3291 = vadd.f32 %v2872, %v3163
      %v3292 = vadd.f32 %v2873, %v3164
      %v3293 = vadd.f32 %v2874, %v3165
      %v3294 = vadd.f32 %v2875, %v3166
      %v3295 = vadd.f32 %v2876, %v3167
      %v3296 = vlaneseq
      %v3297 = vshrl.u32 %v3296, 7
      %v3298 = vsub.s32 2, %v3297
      %v3299 = vrot.slane %v1550, %v3298
      %v3300 = vlaneseq
      %v3301 = vshrl.u32 %v3300, 7
      %v3302 = vsub.s32 6, %v3301
      %v3303 = vrot.slane %v1550, %v3302
      %v3304 = vlaneseq
      %v3305 = vshrl.u32 %v3304, 7
      %v3306 = vsub.s32 2, %v3305
      %v3307 = vrot.slane %v3299, %v3306
      %v3308 = vlaneseq
      %v3309 = vshrl.u32 %v3308, 7
      %v3310 = vsub.s32 2, %v3309
      %v3311 = vrot.slane %v3303, %v3310
      %vm3312 = vcmp.eq.s32.totalorder %v1486, %v3307
      %vm3313 = vcmp.eq.s32.totalorder %v1486, %v3311
      %vm3314 = vcmp.eq.s32.totalorder %v1487, %v3307
      %vm3315 = vcmp.eq.s32.totalorder %v1487, %v3311
      %vm3316 = vcmp.eq.s32.totalorder %v1488, %v3307
      %vm3317 = vcmp.eq.s32.totalorder %v1488, %v3311
      %vm3318 = vcmp.eq.s32.totalorder %v1489, %v3307
      %vm3319 = vcmp.eq.s32.totalorder %v1489, %v3311
      %vm3320 = vcmp.eq.s32.totalorder %v1490, %v3307
      %vm3321 = vcmp.eq.s32.totalorder %v1490, %v3311
      %vm3322 = vcmp.eq.s32.totalorder %v1561, %v3307
      %vm3323 = vcmp.eq.s32.totalorder %v1561, %v3311
      %vm3324 = vcmp.eq.s32.totalorder %v1562, %v3307
      %vm3325 = vcmp.eq.s32.totalorder %v1562, %v3311
      %vm3326 = vcmp.eq.s32.totalorder %v1563, %v3307
      %vm3327 = vcmp.eq.s32.totalorder %v1563, %v3311
      %vm3328 = vcmp.eq.s32.totalorder %v1564, %v3307
      %vm3329 = vcmp.eq.s32.totalorder %v1564, %v3311
      %vm3330 = vcmp.eq.s32.totalorder %v1565, %v3307
      %vm3331 = vcmp.eq.s32.totalorder %v1565, %v3311
      %vm3332 = vcmp.eq.s32.totalorder %v1566, %v3307
      %vm3333 = vcmp.eq.s32.totalorder %v1566, %v3311
      %vm3334 = vcmp.eq.s32.totalorder %v1567, %v3307
      %vm3335 = vcmp.eq.s32.totalorder %v1567, %v3311
      %vm3336 = vcmp.eq.s32.totalorder %v1568, %v3307
      %vm3337 = vcmp.eq.s32.totalorder %v1568, %v3311
      %vm3338 = vcmp.eq.s32.totalorder %v1569, %v3307
      %vm3339 = vcmp.eq.s32.totalorder %v1569, %v3311
      %vm3340 = vcmp.eq.s32.totalorder %v1570, %v3307
      %vm3341 = vcmp.eq.s32.totalorder %v1570, %v3311
      %vm3342 = vcmp.eq.s32.totalorder %v1571, %v3307
      %vm3343 = vcmp.eq.s32.totalorder %v1571, %v3311
      %vm3344 = vcmp.eq.s32.totalorder %v1572, %v3307
      %vm3345 = vcmp.eq.s32.totalorder %v1572, %v3311
      %vm3346 = vcmp.eq.s32.totalorder %v1573, %v3307
      %vm3347 = vcmp.eq.s32.totalorder %v1573, %v3311
      %vm3348 = vcmp.eq.s32.totalorder %v1574, %v3307
      %vm3349 = vcmp.eq.s32.totalorder %v1574, %v3311
      %vm3350 = vcmp.eq.s32.totalorder %v1575, %v3307
      %vm3351 = vcmp.eq.s32.totalorder %v1575, %v3311
      %vm3352 = vcmp.eq.s32.totalorder %v1576, %v3307
      %vm3353 = vcmp.eq.s32.totalorder %v1576, %v3311
      %vm3354 = vcmp.eq.s32.totalorder %v1577, %v3307
      %vm3355 = vcmp.eq.s32.totalorder %v1577, %v3311
      %vm3356 = vcmp.eq.s32.totalorder %v1578, %v3307
      %vm3357 = vcmp.eq.s32.totalorder %v1578, %v3311
      %vm3358 = vcmp.eq.s32.totalorder %v1579, %v3307
      %vm3359 = vcmp.eq.s32.totalorder %v1579, %v3311
      %vm3360 = vcmp.eq.s32.totalorder %v1580, %v3307
      %vm3361 = vcmp.eq.s32.totalorder %v1580, %v3311
      %vm3362 = vcmp.eq.s32.totalorder %v1581, %v3307
      %vm3363 = vcmp.eq.s32.totalorder %v1581, %v3311
      %vm3364 = vcmp.eq.s32.totalorder %v1582, %v3307
      %vm3365 = vcmp.eq.s32.totalorder %v1582, %v3311
      %vm3366 = vcmp.eq.s32.totalorder %v1583, %v3307
      %vm3367 = vcmp.eq.s32.totalorder %v1583, %v3311
      %vm3368 = vcmp.eq.s32.totalorder %v1584, %v3307
      %vm3369 = vcmp.eq.s32.totalorder %v1584, %v3311
      %vm3370 = vcmp.eq.s32.totalorder %v1585, %v3307
      %vm3371 = vcmp.eq.s32.totalorder %v1585, %v3311
      %vm3372 = vcmp.eq.s32.totalorder %v1586, %v3307
      %vm3373 = vcmp.eq.s32.totalorder %v1586, %v3311
      %vm3374 = vcmp.eq.s32.totalorder %v1587, %v3307
      %vm3375 = vcmp.eq.s32.totalorder %v1587, %v3311
      %vm3376 = vcmp.eq.s32.totalorder %v1588, %v3307
      %vm3377 = vcmp.eq.s32.totalorder %v1588, %v3311
      %vm3378 = vcmp.eq.s32.totalorder %v1589, %v3307
      %vm3379 = vcmp.eq.s32.totalorder %v1589, %v3311
      %vm3380 = vcmp.eq.s32.totalorder %v1590, %v3307
      %vm3381 = vcmp.eq.s32.totalorder %v1590, %v3311
      %vm3382 = vcmp.eq.s32.totalorder %v1591, %v3307
      %vm3383 = vcmp.eq.s32.totalorder %v1591, %v3311
      %vm3384 = vcmp.eq.s32.totalorder %v1592, %v3307
      %vm3385 = vcmp.eq.s32.totalorder %v1592, %v3311
      %vm3386 = vcmp.eq.s32.totalorder %v1593, %v3307
      %vm3387 = vcmp.eq.s32.totalorder %v1593, %v3311
      %vm3388 = vcmp.eq.s32.totalorder %v1594, %v3307
      %vm3389 = vcmp.eq.s32.totalorder %v1594, %v3311
      %vm3390 = vcmp.eq.s32.totalorder %v1595, %v3307
      %vm3391 = vcmp.eq.s32.totalorder %v1595, %v3311
      %vm3392 = vcmp.eq.s32.totalorder %v1596, %v3307
      %vm3393 = vcmp.eq.s32.totalorder %v1596, %v3311
      %vm3394 = vcmp.eq.s32.totalorder %v1597, %v3307
      %vm3395 = vcmp.eq.s32.totalorder %v1597, %v3311
      %vm3396 = vcmp.eq.s32.totalorder %v1598, %v3307
      %vm3397 = vcmp.eq.s32.totalorder %v1598, %v3311
      %vm3398 = vcmp.eq.s32.totalorder %v1599, %v3307
      %vm3399 = vcmp.eq.s32.totalorder %v1599, %v3311
      %vm3400 = vcmp.eq.s32.totalorder %v1600, %v3307
      %vm3401 = vcmp.eq.s32.totalorder %v1600, %v3311
      %vm3402 = vcmp.eq.s32.totalorder %v1601, %v3307
      %vm3403 = vcmp.eq.s32.totalorder %v1601, %v3311
      %vm3404 = vcmp.eq.s32.totalorder %v1602, %v3307
      %vm3405 = vcmp.eq.s32.totalorder %v1602, %v3311
      %vm3406 = vcmp.eq.s32.totalorder %v1603, %v3307
      %vm3407 = vcmp.eq.s32.totalorder %v1603, %v3311
      %vm3408 = vcmp.eq.s32.totalorder %v1604, %v3307
      %vm3409 = vcmp.eq.s32.totalorder %v1604, %v3311
      %vm3410 = vcmp.eq.s32.totalorder %v1605, %v3307
      %vm3411 = vcmp.eq.s32.totalorder %v1605, %v3311
      %vm3412 = vcmp.eq.s32.totalorder %v1606, %v3307
      %vm3413 = vcmp.eq.s32.totalorder %v1606, %v3311
      %vm3414 = vcmp.eq.s32.totalorder %v1607, %v3307
      %vm3415 = vcmp.eq.s32.totalorder %v1607, %v3311
      %vm3416 = vcmp.eq.s32.totalorder %v1608, %v3307
      %vm3417 = vcmp.eq.s32.totalorder %v1608, %v3311
      %vm3418 = vcmp.eq.s32.totalorder %v1609, %v3307
      %vm3419 = vcmp.eq.s32.totalorder %v1609, %v3311
      %vm3420 = vcmp.eq.s32.totalorder %v1610, %v3307
      %vm3421 = vcmp.eq.s32.totalorder %v1610, %v3311
      %vm3422 = vcmp.eq.s32.totalorder %v1611, %v3307
      %vm3423 = vcmp.eq.s32.totalorder %v1611, %v3311
      %vm3424 = vcmp.eq.s32.totalorder %v1612, %v3307
      %vm3425 = vcmp.eq.s32.totalorder %v1612, %v3311
      %vm3426 = vcmp.eq.s32.totalorder %v1613, %v3307
      %vm3427 = vcmp.eq.s32.totalorder %v1613, %v3311
      %vm3428 = vcmp.eq.s32.totalorder %v1614, %v3307
      %vm3429 = vcmp.eq.s32.totalorder %v1614, %v3311
      %vm3430 = vcmp.eq.s32.totalorder %v1615, %v3307
      %vm3431 = vcmp.eq.s32.totalorder %v1615, %v3311
      %vm3432 = vcmp.eq.s32.totalorder %v1616, %v3307
      %vm3433 = vcmp.eq.s32.totalorder %v1616, %v3311
      %vm3434 = vcmp.eq.s32.totalorder %v1617, %v3307
      %vm3435 = vcmp.eq.s32.totalorder %v1617, %v3311
      %vm3436 = vcmp.eq.s32.totalorder %v1618, %v3307
      %vm3437 = vcmp.eq.s32.totalorder %v1618, %v3311
      %vm3438 = vcmp.eq.s32.totalorder %v1619, %v3307
      %vm3439 = vcmp.eq.s32.totalorder %v1619, %v3311
      %v3441 = vlaneseq
      %v3442 = vshrl.u32 %v3441, 7
      %v3443 = vsub.s32 2, %v3442
      %v3444 = vrot.slane %v1551, %v3443
      %v3445 = vlaneseq
      %v3446 = vshrl.u32 %v3445, 7
      %v3447 = vsub.s32 6, %v3446
      %v3448 = vrot.slane %v1551, %v3447
      %v3451 = vlaneseq
      %v3452 = vshrl.u32 %v3451, 7
      %v3453 = vsub.s32 2, %v3452
      %v3454 = vrot.slane %v3444, %v3453
      %v3455 = vlaneseq
      %v3456 = vshrl.u32 %v3455, 7
      %v3457 = vsub.s32 2, %v3456
      %v3458 = vrot.slane %v3448, %v3457
      %v3459 = vsel %vm3312, %v3454, 0.0
      %v3460 = vsel %vm3313, %v3458, 0.0
      %v3461 = vsel %vm3314, %v3454, 0.0
      %v3462 = vsel %vm3315, %v3458, 0.0
      %v3463 = vsel %vm3316, %v3454, 0.0
      %v3464 = vsel %vm3317, %v3458, 0.0
      %v3465 = vsel %vm3318, %v3454, 0.0
      %v3466 = vsel %vm3319, %v3458, 0.0
      %v3467 = vsel %vm3320, %v3454, 0.0
      %v3468 = vsel %vm3321, %v3458, 0.0
      %v3469 = vsel %vm3322, %v3454, 0.0
      %v3470 = vsel %vm3323, %v3458, 0.0
      %v3471 = vsel %vm3324, %v3454, 0.0
      %v3472 = vsel %vm3325, %v3458, 0.0
      %v3473 = vsel %vm3326, %v3454, 0.0
      %v3474 = vsel %vm3327, %v3458, 0.0
      %v3475 = vsel %vm3328, %v3454, 0.0
      %v3476 = vsel %vm3329, %v3458, 0.0
      %v3477 = vsel %vm3330, %v3454, 0.0
      %v3478 = vsel %vm3331, %v3458, 0.0
      %v3479 = vsel %vm3332, %v3454, 0.0
      %v3480 = vsel %vm3333, %v3458, 0.0
      %v3481 = vsel %vm3334, %v3454, 0.0
      %v3482 = vsel %vm3335, %v3458, 0.0
      %v3483 = vsel %vm3336, %v3454, 0.0
      %v3484 = vsel %vm3337, %v3458, 0.0
      %v3485 = vsel %vm3338, %v3454, 0.0
      %v3486 = vsel %vm3339, %v3458, 0.0
      %v3487 = vsel %vm3340, %v3454, 0.0
      %v3488 = vsel %vm3341, %v3458, 0.0
      %v3489 = vsel %vm3342, %v3454, 0.0
      %v3490 = vsel %vm3343, %v3458, 0.0
      %v3491 = vsel %vm3344, %v3454, 0.0
      %v3492 = vsel %vm3345, %v3458, 0.0
      %v3493 = vsel %vm3346, %v3454, 0.0
      %v3494 = vsel %vm3347, %v3458, 0.0
      %v3495 = vsel %vm3348, %v3454, 0.0
      %v3496 = vsel %vm3349, %v3458, 0.0
      %v3497 = vsel %vm3350, %v3454, 0.0
      %v3498 = vsel %vm3351, %v3458, 0.0
      %v3499 = vsel %vm3352, %v3454, 0.0
      %v3500 = vsel %vm3353, %v3458, 0.0
      %v3501 = vsel %vm3354, %v3454, 0.0
      %v3502 = vsel %vm3355, %v3458, 0.0
      %v3503 = vsel %vm3356, %v3454, 0.0
      %v3504 = vsel %vm3357, %v3458, 0.0
      %v3505 = vsel %vm3358, %v3454, 0.0
      %v3506 = vsel %vm3359, %v3458, 0.0
      %v3507 = vsel %vm3360, %v3454, 0.0
      %v3508 = vsel %vm3361, %v3458, 0.0
      %v3509 = vsel %vm3362, %v3454, 0.0
      %v3510 = vsel %vm3363, %v3458, 0.0
      %v3511 = vsel %vm3364, %v3454, 0.0
      %v3512 = vsel %vm3365, %v3458, 0.0
      %v3513 = vsel %vm3366, %v3454, 0.0
      %v3514 = vsel %vm3367, %v3458, 0.0
      %v3515 = vsel %vm3368, %v3454, 0.0
      %v3516 = vsel %vm3369, %v3458, 0.0
      %v3517 = vsel %vm3370, %v3454, 0.0
      %v3518 = vsel %vm3371, %v3458, 0.0
      %v3519 = vsel %vm3372, %v3454, 0.0
      %v3520 = vsel %vm3373, %v3458, 0.0
      %v3521 = vsel %vm3374, %v3454, 0.0
      %v3522 = vsel %vm3375, %v3458, 0.0
      %v3523 = vsel %vm3376, %v3454, 0.0
      %v3524 = vsel %vm3377, %v3458, 0.0
      %v3525 = vsel %vm3378, %v3454, 0.0
      %v3526 = vsel %vm3379, %v3458, 0.0
      %v3527 = vsel %vm3380, %v3454, 0.0
      %v3528 = vsel %vm3381, %v3458, 0.0
      %v3529 = vsel %vm3382, %v3454, 0.0
      %v3530 = vsel %vm3383, %v3458, 0.0
      %v3531 = vsel %vm3384, %v3454, 0.0
      %v3532 = vsel %vm3385, %v3458, 0.0
      %v3533 = vsel %vm3386, %v3454, 0.0
      %v3534 = vsel %vm3387, %v3458, 0.0
      %v3535 = vsel %vm3388, %v3454, 0.0
      %v3536 = vsel %vm3389, %v3458, 0.0
      %v3537 = vsel %vm3390, %v3454, 0.0
      %v3538 = vsel %vm3391, %v3458, 0.0
      %v3539 = vsel %vm3392, %v3454, 0.0
      %v3540 = vsel %vm3393, %v3458, 0.0
      %v3541 = vsel %vm3394, %v3454, 0.0
      %v3542 = vsel %vm3395, %v3458, 0.0
      %v3543 = vsel %vm3396, %v3454, 0.0
      %v3544 = vsel %vm3397, %v3458, 0.0
      %v3545 = vsel %vm3398, %v3454, 0.0
      %v3546 = vsel %vm3399, %v3458, 0.0
      %v3547 = vsel %vm3400, %v3454, 0.0
      %v3548 = vsel %vm3401, %v3458, 0.0
      %v3549 = vsel %vm3402, %v3454, 0.0
      %v3550 = vsel %vm3403, %v3458, 0.0
      %v3551 = vsel %vm3404, %v3454, 0.0
      %v3552 = vsel %vm3405, %v3458, 0.0
      %v3553 = vsel %vm3406, %v3454, 0.0
      %v3554 = vsel %vm3407, %v3458, 0.0
      %v3555 = vsel %vm3408, %v3454, 0.0
      %v3556 = vsel %vm3409, %v3458, 0.0
      %v3557 = vsel %vm3410, %v3454, 0.0
      %v3558 = vsel %vm3411, %v3458, 0.0
      %v3559 = vsel %vm3412, %v3454, 0.0
      %v3560 = vsel %vm3413, %v3458, 0.0
      %v3561 = vsel %vm3414, %v3454, 0.0
      %v3562 = vsel %vm3415, %v3458, 0.0
      %v3563 = vsel %vm3416, %v3454, 0.0
      %v3564 = vsel %vm3417, %v3458, 0.0
      %v3565 = vsel %vm3418, %v3454, 0.0
      %v3566 = vsel %vm3419, %v3458, 0.0
      %v3567 = vsel %vm3420, %v3454, 0.0
      %v3568 = vsel %vm3421, %v3458, 0.0
      %v3569 = vsel %vm3422, %v3454, 0.0
      %v3570 = vsel %vm3423, %v3458, 0.0
      %v3571 = vsel %vm3424, %v3454, 0.0
      %v3572 = vsel %vm3425, %v3458, 0.0
      %v3573 = vsel %vm3426, %v3454, 0.0
      %v3574 = vsel %vm3427, %v3458, 0.0
      %v3575 = vsel %vm3428, %v3454, 0.0
      %v3576 = vsel %vm3429, %v3458, 0.0
      %v3577 = vsel %vm3430, %v3454, 0.0
      %v3578 = vsel %vm3431, %v3458, 0.0
      %v3579 = vsel %vm3432, %v3454, 0.0
      %v3580 = vsel %vm3433, %v3458, 0.0
      %v3581 = vsel %vm3434, %v3454, 0.0
      %v3582 = vsel %vm3435, %v3458, 0.0
      %v3583 = vsel %vm3436, %v3454, 0.0
      %v3584 = vsel %vm3437, %v3458, 0.0
      %v3585 = vsel %vm3438, %v3454, 0.0
      %v3586 = vsel %vm3439, %v3458, 0.0
      %v3587 = vadd.f32 %v3168, %v3459
      %v3588 = vadd.f32 %v3169, %v3460
      %v3589 = vadd.f32 %v3170, %v3461
      %v3590 = vadd.f32 %v3171, %v3462
      %v3591 = vadd.f32 %v3172, %v3463
      %v3592 = vadd.f32 %v3173, %v3464
      %v3593 = vadd.f32 %v3174, %v3465
      %v3594 = vadd.f32 %v3175, %v3466
      %v3595 = vadd.f32 %v3176, %v3467
      %v3596 = vadd.f32 %v3177, %v3468
      %v3597 = vadd.f32 %v3178, %v3469
      %v3598 = vadd.f32 %v3179, %v3470
      %v3599 = vadd.f32 %v3180, %v3471
      %v3600 = vadd.f32 %v3181, %v3472
      %v3601 = vadd.f32 %v3182, %v3473
      %v3602 = vadd.f32 %v3183, %v3474
      %v3603 = vadd.f32 %v3184, %v3475
      %v3604 = vadd.f32 %v3185, %v3476
      %v3605 = vadd.f32 %v3186, %v3477
      %v3606 = vadd.f32 %v3187, %v3478
      %v3607 = vadd.f32 %v3188, %v3479
      %v3608 = vadd.f32 %v3189, %v3480
      %v3609 = vadd.f32 %v3190, %v3481
      %v3610 = vadd.f32 %v3191, %v3482
      %v3611 = vadd.f32 %v3192, %v3483
      %v3612 = vadd.f32 %v3193, %v3484
      %v3613 = vadd.f32 %v3194, %v3485
      %v3614 = vadd.f32 %v3195, %v3486
      %v3615 = vadd.f32 %v3196, %v3487
      %v3616 = vadd.f32 %v3197, %v3488
      %v3617 = vadd.f32 %v3198, %v3489
      %v3618 = vadd.f32 %v3199, %v3490
      %v3619 = vadd.f32 %v3200, %v3491
      %v3620 = vadd.f32 %v3201, %v3492
      %v3621 = vadd.f32 %v3202, %v3493
      %v3622 = vadd.f32 %v3203, %v3494
      %v3623 = vadd.f32 %v3204, %v3495
      %v3624 = vadd.f32 %v3205, %v3496
      %v3625 = vadd.f32 %v3206, %v3497
      %v3626 = vadd.f32 %v3207, %v3498
      %v3627 = vadd.f32 %v3208, %v3499
      %v3628 = vadd.f32 %v3209, %v3500
      %v3629 = vadd.f32 %v3210, %v3501
      %v3630 = vadd.f32 %v3211, %v3502
      %v3631 = vadd.f32 %v3212, %v3503
      %v3632 = vadd.f32 %v3213, %v3504
      %v3633 = vadd.f32 %v3214, %v3505
      %v3634 = vadd.f32 %v3215, %v3506
      %v3635 = vadd.f32 %v3216, %v3507
      %v3636 = vadd.f32 %v3217, %v3508
      %v3637 = vadd.f32 %v3218, %v3509
      %v3638 = vadd.f32 %v3219, %v3510
      %v3639 = vadd.f32 %v3220, %v3511
      %v3640 = vadd.f32 %v3221, %v3512
      %v3641 = vadd.f32 %v3222, %v3513
      %v3642 = vadd.f32 %v3223, %v3514
      %v3643 = vadd.f32 %v3224, %v3515
      %v3644 = vadd.f32 %v3225, %v3516
      %v3645 = vadd.f32 %v3226, %v3517
      %v3646 = vadd.f32 %v3227, %v3518
      %v3647 = vadd.f32 %v3228, %v3519
      %v3648 = vadd.f32 %v3229, %v3520
      %v3649 = vadd.f32 %v3230, %v3521
      %v3650 = vadd.f32 %v3231, %v3522
      %v3651 = vadd.f32 %v3232, %v3523
      %v3652 = vadd.f32 %v3233, %v3524
      %v3653 = vadd.f32 %v3234, %v3525
      %v3654 = vadd.f32 %v3235, %v3526
      %v3655 = vadd.f32 %v3236, %v3527
      %v3656 = vadd.f32 %v3237, %v3528
      %v3657 = vadd.f32 %v3238, %v3529
      %v3658 = vadd.f32 %v3239, %v3530
      %v3659 = vadd.f32 %v3240, %v3531
      %v3660 = vadd.f32 %v3241, %v3532
      %v3661 = vadd.f32 %v3242, %v3533
      %v3662 = vadd.f32 %v3243, %v3534
      %v3663 = vadd.f32 %v3244, %v3535
      %v3664 = vadd.f32 %v3245, %v3536
      %v3665 = vadd.f32 %v3246, %v3537
      %v3666 = vadd.f32 %v3247, %v3538
      %v3667 = vadd.f32 %v3248, %v3539
      %v3668 = vadd.f32 %v3249, %v3540
      %v3669 = vadd.f32 %v3250, %v3541
      %v3670 = vadd.f32 %v3251, %v3542
      %v3671 = vadd.f32 %v3252, %v3543
      %v3672 = vadd.f32 %v3253, %v3544
      %v3673 = vadd.f32 %v3254, %v3545
      %v3674 = vadd.f32 %v3255, %v3546
      %v3675 = vadd.f32 %v3256, %v3547
      %v3676 = vadd.f32 %v3257, %v3548
      %v3677 = vadd.f32 %v3258, %v3549
      %v3678 = vadd.f32 %v3259, %v3550
      %v3679 = vadd.f32 %v3260, %v3551
      %v3680 = vadd.f32 %v3261, %v3552
      %v3681 = vadd.f32 %v3262, %v3553
      %v3682 = vadd.f32 %v3263, %v3554
      %v3683 = vadd.f32 %v3264, %v3555
      %v3684 = vadd.f32 %v3265, %v3556
      %v3685 = vadd.f32 %v3266, %v3557
      %v3686 = vadd.f32 %v3267, %v3558
      %v3687 = vadd.f32 %v3268, %v3559
      %v3688 = vadd.f32 %v3269, %v3560
      %v3689 = vadd.f32 %v3270, %v3561
      %v3690 = vadd.f32 %v3271, %v3562
      %v3691 = vadd.f32 %v3272, %v3563
      %v3692 = vadd.f32 %v3273, %v3564
      %v3693 = vadd.f32 %v3274, %v3565
      %v3694 = vadd.f32 %v3275, %v3566
      %v3695 = vadd.f32 %v3276, %v3567
      %v3696 = vadd.f32 %v3277, %v3568
      %v3697 = vadd.f32 %v3278, %v3569
      %v3698 = vadd.f32 %v3279, %v3570
      %v3699 = vadd.f32 %v3280, %v3571
      %v3700 = vadd.f32 %v3281, %v3572
      %v3701 = vadd.f32 %v3282, %v3573
      %v3702 = vadd.f32 %v3283, %v3574
      %v3703 = vadd.f32 %v3284, %v3575
      %v3704 = vadd.f32 %v3285, %v3576
      %v3705 = vadd.f32 %v3286, %v3577
      %v3706 = vadd.f32 %v3287, %v3578
      %v3707 = vadd.f32 %v3288, %v3579
      %v3708 = vadd.f32 %v3289, %v3580
      %v3709 = vadd.f32 %v3290, %v3581
      %v3710 = vadd.f32 %v3291, %v3582
      %v3711 = vadd.f32 %v3292, %v3583
      %v3712 = vadd.f32 %v3293, %v3584
      %v3713 = vadd.f32 %v3294, %v3585
      %v3714 = vadd.f32 %v3295, %v3586
      %v3715 = vlaneseq
      %v3716 = vshrl.u32 %v3715, 7
      %v3717 = vsub.s32 2, %v3716
      %v3718 = vrot.slane %v1552, %v3717
      %v3719 = vlaneseq
      %v3720 = vshrl.u32 %v3719, 7
      %v3721 = vsub.s32 6, %v3720
      %v3722 = vrot.slane %v1552, %v3721
      %v3723 = vlaneseq
      %v3724 = vshrl.u32 %v3723, 7
      %v3725 = vsub.s32 2, %v3724
      %v3726 = vrot.slane %v3718, %v3725
      %v3727 = vlaneseq
      %v3728 = vshrl.u32 %v3727, 7
      %v3729 = vsub.s32 2, %v3728
      %v3730 = vrot.slane %v3722, %v3729
      %vm3731 = vcmp.eq.s32.totalorder %v1486, %v3726
      %vm3732 = vcmp.eq.s32.totalorder %v1486, %v3730
      %vm3733 = vcmp.eq.s32.totalorder %v1487, %v3726
      %vm3734 = vcmp.eq.s32.totalorder %v1487, %v3730
      %vm3735 = vcmp.eq.s32.totalorder %v1488, %v3726
      %vm3736 = vcmp.eq.s32.totalorder %v1488, %v3730
      %vm3737 = vcmp.eq.s32.totalorder %v1489, %v3726
      %vm3738 = vcmp.eq.s32.totalorder %v1489, %v3730
      %vm3739 = vcmp.eq.s32.totalorder %v1490, %v3726
      %vm3740 = vcmp.eq.s32.totalorder %v1490, %v3730
      %vm3741 = vcmp.eq.s32.totalorder %v1561, %v3726
      %vm3742 = vcmp.eq.s32.totalorder %v1561, %v3730
      %vm3743 = vcmp.eq.s32.totalorder %v1562, %v3726
      %vm3744 = vcmp.eq.s32.totalorder %v1562, %v3730
      %vm3745 = vcmp.eq.s32.totalorder %v1563, %v3726
      %vm3746 = vcmp.eq.s32.totalorder %v1563, %v3730
      %vm3747 = vcmp.eq.s32.totalorder %v1564, %v3726
      %vm3748 = vcmp.eq.s32.totalorder %v1564, %v3730
      %vm3749 = vcmp.eq.s32.totalorder %v1565, %v3726
      %vm3750 = vcmp.eq.s32.totalorder %v1565, %v3730
      %vm3751 = vcmp.eq.s32.totalorder %v1566, %v3726
      %vm3752 = vcmp.eq.s32.totalorder %v1566, %v3730
      %vm3753 = vcmp.eq.s32.totalorder %v1567, %v3726
      %vm3754 = vcmp.eq.s32.totalorder %v1567, %v3730
      %vm3755 = vcmp.eq.s32.totalorder %v1568, %v3726
      %vm3756 = vcmp.eq.s32.totalorder %v1568, %v3730
      %vm3757 = vcmp.eq.s32.totalorder %v1569, %v3726
      %vm3758 = vcmp.eq.s32.totalorder %v1569, %v3730
      %vm3759 = vcmp.eq.s32.totalorder %v1570, %v3726
      %vm3760 = vcmp.eq.s32.totalorder %v1570, %v3730
      %vm3761 = vcmp.eq.s32.totalorder %v1571, %v3726
      %vm3762 = vcmp.eq.s32.totalorder %v1571, %v3730
      %vm3763 = vcmp.eq.s32.totalorder %v1572, %v3726
      %vm3764 = vcmp.eq.s32.totalorder %v1572, %v3730
      %vm3765 = vcmp.eq.s32.totalorder %v1573, %v3726
      %vm3766 = vcmp.eq.s32.totalorder %v1573, %v3730
      %vm3767 = vcmp.eq.s32.totalorder %v1574, %v3726
      %vm3768 = vcmp.eq.s32.totalorder %v1574, %v3730
      %vm3769 = vcmp.eq.s32.totalorder %v1575, %v3726
      %vm3770 = vcmp.eq.s32.totalorder %v1575, %v3730
      %vm3771 = vcmp.eq.s32.totalorder %v1576, %v3726
      %vm3772 = vcmp.eq.s32.totalorder %v1576, %v3730
      %vm3773 = vcmp.eq.s32.totalorder %v1577, %v3726
      %vm3774 = vcmp.eq.s32.totalorder %v1577, %v3730
      %vm3775 = vcmp.eq.s32.totalorder %v1578, %v3726
      %vm3776 = vcmp.eq.s32.totalorder %v1578, %v3730
      %vm3777 = vcmp.eq.s32.totalorder %v1579, %v3726
      %vm3778 = vcmp.eq.s32.totalorder %v1579, %v3730
      %vm3779 = vcmp.eq.s32.totalorder %v1580, %v3726
      %vm3780 = vcmp.eq.s32.totalorder %v1580, %v3730
      %vm3781 = vcmp.eq.s32.totalorder %v1581, %v3726
      %vm3782 = vcmp.eq.s32.totalorder %v1581, %v3730
      %vm3783 = vcmp.eq.s32.totalorder %v1582, %v3726
      %vm3784 = vcmp.eq.s32.totalorder %v1582, %v3730
      %vm3785 = vcmp.eq.s32.totalorder %v1583, %v3726
      %vm3786 = vcmp.eq.s32.totalorder %v1583, %v3730
      %vm3787 = vcmp.eq.s32.totalorder %v1584, %v3726
      %vm3788 = vcmp.eq.s32.totalorder %v1584, %v3730
      %vm3789 = vcmp.eq.s32.totalorder %v1585, %v3726
      %vm3790 = vcmp.eq.s32.totalorder %v1585, %v3730
      %vm3791 = vcmp.eq.s32.totalorder %v1586, %v3726
      %vm3792 = vcmp.eq.s32.totalorder %v1586, %v3730
      %vm3793 = vcmp.eq.s32.totalorder %v1587, %v3726
      %vm3794 = vcmp.eq.s32.totalorder %v1587, %v3730
      %vm3795 = vcmp.eq.s32.totalorder %v1588, %v3726
      %vm3796 = vcmp.eq.s32.totalorder %v1588, %v3730
      %vm3797 = vcmp.eq.s32.totalorder %v1589, %v3726
      %vm3798 = vcmp.eq.s32.totalorder %v1589, %v3730
      %vm3799 = vcmp.eq.s32.totalorder %v1590, %v3726
      %vm3800 = vcmp.eq.s32.totalorder %v1590, %v3730
      %vm3801 = vcmp.eq.s32.totalorder %v1591, %v3726
      %vm3802 = vcmp.eq.s32.totalorder %v1591, %v3730
      %vm3803 = vcmp.eq.s32.totalorder %v1592, %v3726
      %vm3804 = vcmp.eq.s32.totalorder %v1592, %v3730
      %vm3805 = vcmp.eq.s32.totalorder %v1593, %v3726
      %vm3806 = vcmp.eq.s32.totalorder %v1593, %v3730
      %vm3807 = vcmp.eq.s32.totalorder %v1594, %v3726
      %vm3808 = vcmp.eq.s32.totalorder %v1594, %v3730
      %vm3809 = vcmp.eq.s32.totalorder %v1595, %v3726
      %vm3810 = vcmp.eq.s32.totalorder %v1595, %v3730
      %vm3811 = vcmp.eq.s32.totalorder %v1596, %v3726
      %vm3812 = vcmp.eq.s32.totalorder %v1596, %v3730
      %vm3813 = vcmp.eq.s32.totalorder %v1597, %v3726
      %vm3814 = vcmp.eq.s32.totalorder %v1597, %v3730
      %vm3815 = vcmp.eq.s32.totalorder %v1598, %v3726
      %vm3816 = vcmp.eq.s32.totalorder %v1598, %v3730
      %vm3817 = vcmp.eq.s32.totalorder %v1599, %v3726
      %vm3818 = vcmp.eq.s32.totalorder %v1599, %v3730
      %vm3819 = vcmp.eq.s32.totalorder %v1600, %v3726
      %vm3820 = vcmp.eq.s32.totalorder %v1600, %v3730
      %vm3821 = vcmp.eq.s32.totalorder %v1601, %v3726
      %vm3822 = vcmp.eq.s32.totalorder %v1601, %v3730
      %vm3823 = vcmp.eq.s32.totalorder %v1602, %v3726
      %vm3824 = vcmp.eq.s32.totalorder %v1602, %v3730
      %vm3825 = vcmp.eq.s32.totalorder %v1603, %v3726
      %vm3826 = vcmp.eq.s32.totalorder %v1603, %v3730
      %vm3827 = vcmp.eq.s32.totalorder %v1604, %v3726
      %vm3828 = vcmp.eq.s32.totalorder %v1604, %v3730
      %vm3829 = vcmp.eq.s32.totalorder %v1605, %v3726
      %vm3830 = vcmp.eq.s32.totalorder %v1605, %v3730
      %vm3831 = vcmp.eq.s32.totalorder %v1606, %v3726
      %vm3832 = vcmp.eq.s32.totalorder %v1606, %v3730
      %vm3833 = vcmp.eq.s32.totalorder %v1607, %v3726
      %vm3834 = vcmp.eq.s32.totalorder %v1607, %v3730
      %vm3835 = vcmp.eq.s32.totalorder %v1608, %v3726
      %vm3836 = vcmp.eq.s32.totalorder %v1608, %v3730
      %vm3837 = vcmp.eq.s32.totalorder %v1609, %v3726
      %vm3838 = vcmp.eq.s32.totalorder %v1609, %v3730
      %vm3839 = vcmp.eq.s32.totalorder %v1610, %v3726
      %vm3840 = vcmp.eq.s32.totalorder %v1610, %v3730
      %vm3841 = vcmp.eq.s32.totalorder %v1611, %v3726
      %vm3842 = vcmp.eq.s32.totalorder %v1611, %v3730
      %vm3843 = vcmp.eq.s32.totalorder %v1612, %v3726
      %vm3844 = vcmp.eq.s32.totalorder %v1612, %v3730
      %vm3845 = vcmp.eq.s32.totalorder %v1613, %v3726
      %vm3846 = vcmp.eq.s32.totalorder %v1613, %v3730
      %vm3847 = vcmp.eq.s32.totalorder %v1614, %v3726
      %vm3848 = vcmp.eq.s32.totalorder %v1614, %v3730
      %vm3849 = vcmp.eq.s32.totalorder %v1615, %v3726
      %vm3850 = vcmp.eq.s32.totalorder %v1615, %v3730
      %vm3851 = vcmp.eq.s32.totalorder %v1616, %v3726
      %vm3852 = vcmp.eq.s32.totalorder %v1616, %v3730
      %vm3853 = vcmp.eq.s32.totalorder %v1617, %v3726
      %vm3854 = vcmp.eq.s32.totalorder %v1617, %v3730
      %vm3855 = vcmp.eq.s32.totalorder %v1618, %v3726
      %vm3856 = vcmp.eq.s32.totalorder %v1618, %v3730
      %vm3857 = vcmp.eq.s32.totalorder %v1619, %v3726
      %vm3858 = vcmp.eq.s32.totalorder %v1619, %v3730
      %v3860 = vlaneseq
      %v3861 = vshrl.u32 %v3860, 7
      %v3862 = vsub.s32 2, %v3861
      %v3863 = vrot.slane %v1553, %v3862
      %v3864 = vlaneseq
      %v3865 = vshrl.u32 %v3864, 7
      %v3866 = vsub.s32 6, %v3865
      %v3867 = vrot.slane %v1553, %v3866
      %v3870 = vlaneseq
      %v3871 = vshrl.u32 %v3870, 7
      %v3872 = vsub.s32 2, %v3871
      %v3873 = vrot.slane %v3863, %v3872
      %v3874 = vlaneseq
      %v3875 = vshrl.u32 %v3874, 7
      %v3876 = vsub.s32 2, %v3875
      %v3877 = vrot.slane %v3867, %v3876
      %v3878 = vsel %vm3731, %v3873, 0.0
      %v3879 = vsel %vm3732, %v3877, 0.0
      %v3880 = vsel %vm3733, %v3873, 0.0
      %v3881 = vsel %vm3734, %v3877, 0.0
      %v3882 = vsel %vm3735, %v3873, 0.0
      %v3883 = vsel %vm3736, %v3877, 0.0
      %v3884 = vsel %vm3737, %v3873, 0.0
      %v3885 = vsel %vm3738, %v3877, 0.0
      %v3886 = vsel %vm3739, %v3873, 0.0
      %v3887 = vsel %vm3740, %v3877, 0.0
      %v3888 = vsel %vm3741, %v3873, 0.0
      %v3889 = vsel %vm3742, %v3877, 0.0
      %v3890 = vsel %vm3743, %v3873, 0.0
      %v3891 = vsel %vm3744, %v3877, 0.0
      %v3892 = vsel %vm3745, %v3873, 0.0
      %v3893 = vsel %vm3746, %v3877, 0.0
      %v3894 = vsel %vm3747, %v3873, 0.0
      %v3895 = vsel %vm3748, %v3877, 0.0
      %v3896 = vsel %vm3749, %v3873, 0.0
      %v3897 = vsel %vm3750, %v3877, 0.0
      %v3898 = vsel %vm3751, %v3873, 0.0
      %v3899 = vsel %vm3752, %v3877, 0.0
      %v3900 = vsel %vm3753, %v3873, 0.0
      %v3901 = vsel %vm3754, %v3877, 0.0
      %v3902 = vsel %vm3755, %v3873, 0.0
      %v3903 = vsel %vm3756, %v3877, 0.0
      %v3904 = vsel %vm3757, %v3873, 0.0
      %v3905 = vsel %vm3758, %v3877, 0.0
      %v3906 = vsel %vm3759, %v3873, 0.0
      %v3907 = vsel %vm3760, %v3877, 0.0
      %v3908 = vsel %vm3761, %v3873, 0.0
      %v3909 = vsel %vm3762, %v3877, 0.0
      %v3910 = vsel %vm3763, %v3873, 0.0
      %v3911 = vsel %vm3764, %v3877, 0.0
      %v3912 = vsel %vm3765, %v3873, 0.0
      %v3913 = vsel %vm3766, %v3877, 0.0
      %v3914 = vsel %vm3767, %v3873, 0.0
      %v3915 = vsel %vm3768, %v3877, 0.0
      %v3916 = vsel %vm3769, %v3873, 0.0
      %v3917 = vsel %vm3770, %v3877, 0.0
      %v3918 = vsel %vm3771, %v3873, 0.0
      %v3919 = vsel %vm3772, %v3877, 0.0
      %v3920 = vsel %vm3773, %v3873, 0.0
      %v3921 = vsel %vm3774, %v3877, 0.0
      %v3922 = vsel %vm3775, %v3873, 0.0
      %v3923 = vsel %vm3776, %v3877, 0.0
      %v3924 = vsel %vm3777, %v3873, 0.0
      %v3925 = vsel %vm3778, %v3877, 0.0
      %v3926 = vsel %vm3779, %v3873, 0.0
      %v3927 = vsel %vm3780, %v3877, 0.0
      %v3928 = vsel %vm3781, %v3873, 0.0
      %v3929 = vsel %vm3782, %v3877, 0.0
      %v3930 = vsel %vm3783, %v3873, 0.0
      %v3931 = vsel %vm3784, %v3877, 0.0
      %v3932 = vsel %vm3785, %v3873, 0.0
      %v3933 = vsel %vm3786, %v3877, 0.0
      %v3934 = vsel %vm3787, %v3873, 0.0
      %v3935 = vsel %vm3788, %v3877, 0.0
      %v3936 = vsel %vm3789, %v3873, 0.0
      %v3937 = vsel %vm3790, %v3877, 0.0
      %v3938 = vsel %vm3791, %v3873, 0.0
      %v3939 = vsel %vm3792, %v3877, 0.0
      %v3940 = vsel %vm3793, %v3873, 0.0
      %v3941 = vsel %vm3794, %v3877, 0.0
      %v3942 = vsel %vm3795, %v3873, 0.0
      %v3943 = vsel %vm3796, %v3877, 0.0
      %v3944 = vsel %vm3797, %v3873, 0.0
      %v3945 = vsel %vm3798, %v3877, 0.0
      %v3946 = vsel %vm3799, %v3873, 0.0
      %v3947 = vsel %vm3800, %v3877, 0.0
      %v3948 = vsel %vm3801, %v3873, 0.0
      %v3949 = vsel %vm3802, %v3877, 0.0
      %v3950 = vsel %vm3803, %v3873, 0.0
      %v3951 = vsel %vm3804, %v3877, 0.0
      %v3952 = vsel %vm3805, %v3873, 0.0
      %v3953 = vsel %vm3806, %v3877, 0.0
      %v3954 = vsel %vm3807, %v3873, 0.0
      %v3955 = vsel %vm3808, %v3877, 0.0
      %v3956 = vsel %vm3809, %v3873, 0.0
      %v3957 = vsel %vm3810, %v3877, 0.0
      %v3958 = vsel %vm3811, %v3873, 0.0
      %v3959 = vsel %vm3812, %v3877, 0.0
      %v3960 = vsel %vm3813, %v3873, 0.0
      %v3961 = vsel %vm3814, %v3877, 0.0
      %v3962 = vsel %vm3815, %v3873, 0.0
      %v3963 = vsel %vm3816, %v3877, 0.0
      %v3964 = vsel %vm3817, %v3873, 0.0
      %v3965 = vsel %vm3818, %v3877, 0.0
      %v3966 = vsel %vm3819, %v3873, 0.0
      %v3967 = vsel %vm3820, %v3877, 0.0
      %v3968 = vsel %vm3821, %v3873, 0.0
      %v3969 = vsel %vm3822, %v3877, 0.0
      %v3970 = vsel %vm3823, %v3873, 0.0
      %v3971 = vsel %vm3824, %v3877, 0.0
      %v3972 = vsel %vm3825, %v3873, 0.0
      %v3973 = vsel %vm3826, %v3877, 0.0
      %v3974 = vsel %vm3827, %v3873, 0.0
      %v3975 = vsel %vm3828, %v3877, 0.0
      %v3976 = vsel %vm3829, %v3873, 0.0
      %v3977 = vsel %vm3830, %v3877, 0.0
      %v3978 = vsel %vm3831, %v3873, 0.0
      %v3979 = vsel %vm3832, %v3877, 0.0
      %v3980 = vsel %vm3833, %v3873, 0.0
      %v3981 = vsel %vm3834, %v3877, 0.0
      %v3982 = vsel %vm3835, %v3873, 0.0
      %v3983 = vsel %vm3836, %v3877, 0.0
      %v3984 = vsel %vm3837, %v3873, 0.0
      %v3985 = vsel %vm3838, %v3877, 0.0
      %v3986 = vsel %vm3839, %v3873, 0.0
      %v3987 = vsel %vm3840, %v3877, 0.0
      %v3988 = vsel %vm3841, %v3873, 0.0
      %v3989 = vsel %vm3842, %v3877, 0.0
      %v3990 = vsel %vm3843, %v3873, 0.0
      %v3991 = vsel %vm3844, %v3877, 0.0
      %v3992 = vsel %vm3845, %v3873, 0.0
      %v3993 = vsel %vm3846, %v3877, 0.0
      %v3994 = vsel %vm3847, %v3873, 0.0
      %v3995 = vsel %vm3848, %v3877, 0.0
      %v3996 = vsel %vm3849, %v3873, 0.0
      %v3997 = vsel %vm3850, %v3877, 0.0
      %v3998 = vsel %vm3851, %v3873, 0.0
      %v3999 = vsel %vm3852, %v3877, 0.0
      %v4000 = vsel %vm3853, %v3873, 0.0
      %v4001 = vsel %vm3854, %v3877, 0.0
      %v4002 = vsel %vm3855, %v3873, 0.0
      %v4003 = vsel %vm3856, %v3877, 0.0
      %v4004 = vsel %vm3857, %v3873, 0.0
      %v4005 = vsel %vm3858, %v3877, 0.0
      %v4006 = vadd.f32 %v3587, %v3878
      %v4007 = vadd.f32 %v3588, %v3879
      %v4008 = vadd.f32 %v3589, %v3880
      %v4009 = vadd.f32 %v3590, %v3881
      %v4010 = vadd.f32 %v3591, %v3882
      %v4011 = vadd.f32 %v3592, %v3883
      %v4012 = vadd.f32 %v3593, %v3884
      %v4013 = vadd.f32 %v3594, %v3885
      %v4014 = vadd.f32 %v3595, %v3886
      %v4015 = vadd.f32 %v3596, %v3887
      %v4016 = vadd.f32 %v3597, %v3888
      %v4017 = vadd.f32 %v3598, %v3889
      %v4018 = vadd.f32 %v3599, %v3890
      %v4019 = vadd.f32 %v3600, %v3891
      %v4020 = vadd.f32 %v3601, %v3892
      %v4021 = vadd.f32 %v3602, %v3893
      %v4022 = vadd.f32 %v3603, %v3894
      %v4023 = vadd.f32 %v3604, %v3895
      %v4024 = vadd.f32 %v3605, %v3896
      %v4025 = vadd.f32 %v3606, %v3897
      %v4026 = vadd.f32 %v3607, %v3898
      %v4027 = vadd.f32 %v3608, %v3899
      %v4028 = vadd.f32 %v3609, %v3900
      %v4029 = vadd.f32 %v3610, %v3901
      %v4030 = vadd.f32 %v3611, %v3902
      %v4031 = vadd.f32 %v3612, %v3903
      %v4032 = vadd.f32 %v3613, %v3904
      %v4033 = vadd.f32 %v3614, %v3905
      %v4034 = vadd.f32 %v3615, %v3906
      %v4035 = vadd.f32 %v3616, %v3907
      %v4036 = vadd.f32 %v3617, %v3908
      %v4037 = vadd.f32 %v3618, %v3909
      %v4038 = vadd.f32 %v3619, %v3910
      %v4039 = vadd.f32 %v3620, %v3911
      %v4040 = vadd.f32 %v3621, %v3912
      %v4041 = vadd.f32 %v3622, %v3913
      %v4042 = vadd.f32 %v3623, %v3914
      %v4043 = vadd.f32 %v3624, %v3915
      %v4044 = vadd.f32 %v3625, %v3916
      %v4045 = vadd.f32 %v3626, %v3917
      %v4046 = vadd.f32 %v3627, %v3918
      %v4047 = vadd.f32 %v3628, %v3919
      %v4048 = vadd.f32 %v3629, %v3920
      %v4049 = vadd.f32 %v3630, %v3921
      %v4050 = vadd.f32 %v3631, %v3922
      %v4051 = vadd.f32 %v3632, %v3923
      %v4052 = vadd.f32 %v3633, %v3924
      %v4053 = vadd.f32 %v3634, %v3925
      %v4054 = vadd.f32 %v3635, %v3926
      %v4055 = vadd.f32 %v3636, %v3927
      %v4056 = vadd.f32 %v3637, %v3928
      %v4057 = vadd.f32 %v3638, %v3929
      %v4058 = vadd.f32 %v3639, %v3930
      %v4059 = vadd.f32 %v3640, %v3931
      %v4060 = vadd.f32 %v3641, %v3932
      %v4061 = vadd.f32 %v3642, %v3933
      %v4062 = vadd.f32 %v3643, %v3934
      %v4063 = vadd.f32 %v3644, %v3935
      %v4064 = vadd.f32 %v3645, %v3936
      %v4065 = vadd.f32 %v3646, %v3937
      %v4066 = vadd.f32 %v3647, %v3938
      %v4067 = vadd.f32 %v3648, %v3939
      %v4068 = vadd.f32 %v3649, %v3940
      %v4069 = vadd.f32 %v3650, %v3941
      %v4070 = vadd.f32 %v3651, %v3942
      %v4071 = vadd.f32 %v3652, %v3943
      %v4072 = vadd.f32 %v3653, %v3944
      %v4073 = vadd.f32 %v3654, %v3945
      %v4074 = vadd.f32 %v3655, %v3946
      %v4075 = vadd.f32 %v3656, %v3947
      %v4076 = vadd.f32 %v3657, %v3948
      %v4077 = vadd.f32 %v3658, %v3949
      %v4078 = vadd.f32 %v3659, %v3950
      %v4079 = vadd.f32 %v3660, %v3951
      %v4080 = vadd.f32 %v3661, %v3952
      %v4081 = vadd.f32 %v3662, %v3953
      %v4082 = vadd.f32 %v3663, %v3954
      %v4083 = vadd.f32 %v3664, %v3955
      %v4084 = vadd.f32 %v3665, %v3956
      %v4085 = vadd.f32 %v3666, %v3957
      %v4086 = vadd.f32 %v3667, %v3958
      %v4087 = vadd.f32 %v3668, %v3959
      %v4088 = vadd.f32 %v3669, %v3960
      %v4089 = vadd.f32 %v3670, %v3961
      %v4090 = vadd.f32 %v3671, %v3962
      %v4091 = vadd.f32 %v3672, %v3963
      %v4092 = vadd.f32 %v3673, %v3964
      %v4093 = vadd.f32 %v3674, %v3965
      %v4094 = vadd.f32 %v3675, %v3966
      %v4095 = vadd.f32 %v3676, %v3967
      %v4096 = vadd.f32 %v3677, %v3968
      %v4097 = vadd.f32 %v3678, %v3969
      %v4098 = vadd.f32 %v3679, %v3970
      %v4099 = vadd.f32 %v3680, %v3971
      %v4100 = vadd.f32 %v3681, %v3972
      %v4101 = vadd.f32 %v3682, %v3973
      %v4102 = vadd.f32 %v3683, %v3974
      %v4103 = vadd.f32 %v3684, %v3975
      %v4104 = vadd.f32 %v3685, %v3976
      %v4105 = vadd.f32 %v3686, %v3977
      %v4106 = vadd.f32 %v3687, %v3978
      %v4107 = vadd.f32 %v3688, %v3979
      %v4108 = vadd.f32 %v3689, %v3980
      %v4109 = vadd.f32 %v3690, %v3981
      %v4110 = vadd.f32 %v3691, %v3982
      %v4111 = vadd.f32 %v3692, %v3983
      %v4112 = vadd.f32 %v3693, %v3984
      %v4113 = vadd.f32 %v3694, %v3985
      %v4114 = vadd.f32 %v3695, %v3986
      %v4115 = vadd.f32 %v3696, %v3987
      %v4116 = vadd.f32 %v3697, %v3988
      %v4117 = vadd.f32 %v3698, %v3989
      %v4118 = vadd.f32 %v3699, %v3990
      %v4119 = vadd.f32 %v3700, %v3991
      %v4120 = vadd.f32 %v3701, %v3992
      %v4121 = vadd.f32 %v3702, %v3993
      %v4122 = vadd.f32 %v3703, %v3994
      %v4123 = vadd.f32 %v3704, %v3995
      %v4124 = vadd.f32 %v3705, %v3996
      %v4125 = vadd.f32 %v3706, %v3997
      %v4126 = vadd.f32 %v3707, %v3998
      %v4127 = vadd.f32 %v3708, %v3999
      %v4128 = vadd.f32 %v3709, %v4000
      %v4129 = vadd.f32 %v3710, %v4001
      %v4130 = vadd.f32 %v3711, %v4002
      %v4131 = vadd.f32 %v3712, %v4003
      %v4132 = vadd.f32 %v3713, %v4004
      %v4133 = vadd.f32 %v3714, %v4005
      %v4134 = vlaneseq
      %v4135 = vshrl.u32 %v4134, 7
      %v4136 = vsub.s32 2, %v4135
      %v4137 = vrot.slane %v1557, %v4136
      %v4138 = vlaneseq
      %v4139 = vshrl.u32 %v4138, 7
      %v4140 = vsub.s32 6, %v4139
      %v4141 = vrot.slane %v1557, %v4140
      %v4142 = vlaneseq
      %v4143 = vshrl.u32 %v4142, 7
      %v4144 = vsub.s32 2, %v4143
      %v4145 = vrot.slane %v4137, %v4144
      %v4146 = vlaneseq
      %v4147 = vshrl.u32 %v4146, 7
      %v4148 = vsub.s32 2, %v4147
      %v4149 = vrot.slane %v4141, %v4148
      %vm4150 = vcmp.eq.s32.totalorder %v1486, %v4145
      %vm4151 = vcmp.eq.s32.totalorder %v1486, %v4149
      %vm4152 = vcmp.eq.s32.totalorder %v1487, %v4145
      %vm4153 = vcmp.eq.s32.totalorder %v1487, %v4149
      %vm4154 = vcmp.eq.s32.totalorder %v1488, %v4145
      %vm4155 = vcmp.eq.s32.totalorder %v1488, %v4149
      %vm4156 = vcmp.eq.s32.totalorder %v1489, %v4145
      %vm4157 = vcmp.eq.s32.totalorder %v1489, %v4149
      %vm4158 = vcmp.eq.s32.totalorder %v1490, %v4145
      %vm4159 = vcmp.eq.s32.totalorder %v1490, %v4149
      %vm4160 = vcmp.eq.s32.totalorder %v1561, %v4145
      %vm4161 = vcmp.eq.s32.totalorder %v1561, %v4149
      %vm4162 = vcmp.eq.s32.totalorder %v1562, %v4145
      %vm4163 = vcmp.eq.s32.totalorder %v1562, %v4149
      %vm4164 = vcmp.eq.s32.totalorder %v1563, %v4145
      %vm4165 = vcmp.eq.s32.totalorder %v1563, %v4149
      %vm4166 = vcmp.eq.s32.totalorder %v1564, %v4145
      %vm4167 = vcmp.eq.s32.totalorder %v1564, %v4149
      %vm4168 = vcmp.eq.s32.totalorder %v1565, %v4145
      %vm4169 = vcmp.eq.s32.totalorder %v1565, %v4149
      %vm4170 = vcmp.eq.s32.totalorder %v1566, %v4145
      %vm4171 = vcmp.eq.s32.totalorder %v1566, %v4149
      %vm4172 = vcmp.eq.s32.totalorder %v1567, %v4145
      %vm4173 = vcmp.eq.s32.totalorder %v1567, %v4149
      %vm4174 = vcmp.eq.s32.totalorder %v1568, %v4145
      %vm4175 = vcmp.eq.s32.totalorder %v1568, %v4149
      %vm4176 = vcmp.eq.s32.totalorder %v1569, %v4145
      %vm4177 = vcmp.eq.s32.totalorder %v1569, %v4149
      %vm4178 = vcmp.eq.s32.totalorder %v1570, %v4145
      %vm4179 = vcmp.eq.s32.totalorder %v1570, %v4149
      %vm4180 = vcmp.eq.s32.totalorder %v1571, %v4145
      %vm4181 = vcmp.eq.s32.totalorder %v1571, %v4149
      %vm4182 = vcmp.eq.s32.totalorder %v1572, %v4145
      %vm4183 = vcmp.eq.s32.totalorder %v1572, %v4149
      %vm4184 = vcmp.eq.s32.totalorder %v1573, %v4145
      %vm4185 = vcmp.eq.s32.totalorder %v1573, %v4149
      %vm4186 = vcmp.eq.s32.totalorder %v1574, %v4145
      %vm4187 = vcmp.eq.s32.totalorder %v1574, %v4149
      %vm4188 = vcmp.eq.s32.totalorder %v1575, %v4145
      %vm4189 = vcmp.eq.s32.totalorder %v1575, %v4149
      %vm4190 = vcmp.eq.s32.totalorder %v1576, %v4145
      %vm4191 = vcmp.eq.s32.totalorder %v1576, %v4149
      %vm4192 = vcmp.eq.s32.totalorder %v1577, %v4145
      %vm4193 = vcmp.eq.s32.totalorder %v1577, %v4149
      %vm4194 = vcmp.eq.s32.totalorder %v1578, %v4145
      %vm4195 = vcmp.eq.s32.totalorder %v1578, %v4149
      %vm4196 = vcmp.eq.s32.totalorder %v1579, %v4145
      %vm4197 = vcmp.eq.s32.totalorder %v1579, %v4149
      %vm4198 = vcmp.eq.s32.totalorder %v1580, %v4145
      %vm4199 = vcmp.eq.s32.totalorder %v1580, %v4149
      %vm4200 = vcmp.eq.s32.totalorder %v1581, %v4145
      %vm4201 = vcmp.eq.s32.totalorder %v1581, %v4149
      %vm4202 = vcmp.eq.s32.totalorder %v1582, %v4145
      %vm4203 = vcmp.eq.s32.totalorder %v1582, %v4149
      %vm4204 = vcmp.eq.s32.totalorder %v1583, %v4145
      %vm4205 = vcmp.eq.s32.totalorder %v1583, %v4149
      %vm4206 = vcmp.eq.s32.totalorder %v1584, %v4145
      %vm4207 = vcmp.eq.s32.totalorder %v1584, %v4149
      %vm4208 = vcmp.eq.s32.totalorder %v1585, %v4145
      %vm4209 = vcmp.eq.s32.totalorder %v1585, %v4149
      %vm4210 = vcmp.eq.s32.totalorder %v1586, %v4145
      %vm4211 = vcmp.eq.s32.totalorder %v1586, %v4149
      %vm4212 = vcmp.eq.s32.totalorder %v1587, %v4145
      %vm4213 = vcmp.eq.s32.totalorder %v1587, %v4149
      %vm4214 = vcmp.eq.s32.totalorder %v1588, %v4145
      %vm4215 = vcmp.eq.s32.totalorder %v1588, %v4149
      %vm4216 = vcmp.eq.s32.totalorder %v1589, %v4145
      %vm4217 = vcmp.eq.s32.totalorder %v1589, %v4149
      %vm4218 = vcmp.eq.s32.totalorder %v1590, %v4145
      %vm4219 = vcmp.eq.s32.totalorder %v1590, %v4149
      %vm4220 = vcmp.eq.s32.totalorder %v1591, %v4145
      %vm4221 = vcmp.eq.s32.totalorder %v1591, %v4149
      %vm4222 = vcmp.eq.s32.totalorder %v1592, %v4145
      %vm4223 = vcmp.eq.s32.totalorder %v1592, %v4149
      %vm4224 = vcmp.eq.s32.totalorder %v1593, %v4145
      %vm4225 = vcmp.eq.s32.totalorder %v1593, %v4149
      %vm4226 = vcmp.eq.s32.totalorder %v1594, %v4145
      %vm4227 = vcmp.eq.s32.totalorder %v1594, %v4149
      %vm4228 = vcmp.eq.s32.totalorder %v1595, %v4145
      %vm4229 = vcmp.eq.s32.totalorder %v1595, %v4149
      %vm4230 = vcmp.eq.s32.totalorder %v1596, %v4145
      %vm4231 = vcmp.eq.s32.totalorder %v1596, %v4149
      %vm4232 = vcmp.eq.s32.totalorder %v1597, %v4145
      %vm4233 = vcmp.eq.s32.totalorder %v1597, %v4149
      %vm4234 = vcmp.eq.s32.totalorder %v1598, %v4145
      %vm4235 = vcmp.eq.s32.totalorder %v1598, %v4149
      %vm4236 = vcmp.eq.s32.totalorder %v1599, %v4145
      %vm4237 = vcmp.eq.s32.totalorder %v1599, %v4149
      %vm4238 = vcmp.eq.s32.totalorder %v1600, %v4145
      %vm4239 = vcmp.eq.s32.totalorder %v1600, %v4149
      %vm4240 = vcmp.eq.s32.totalorder %v1601, %v4145
      %vm4241 = vcmp.eq.s32.totalorder %v1601, %v4149
      %vm4242 = vcmp.eq.s32.totalorder %v1602, %v4145
      %vm4243 = vcmp.eq.s32.totalorder %v1602, %v4149
      %vm4244 = vcmp.eq.s32.totalorder %v1603, %v4145
      %vm4245 = vcmp.eq.s32.totalorder %v1603, %v4149
      %vm4246 = vcmp.eq.s32.totalorder %v1604, %v4145
      %vm4247 = vcmp.eq.s32.totalorder %v1604, %v4149
      %vm4248 = vcmp.eq.s32.totalorder %v1605, %v4145
      %vm4249 = vcmp.eq.s32.totalorder %v1605, %v4149
      %vm4250 = vcmp.eq.s32.totalorder %v1606, %v4145
      %vm4251 = vcmp.eq.s32.totalorder %v1606, %v4149
      %vm4252 = vcmp.eq.s32.totalorder %v1607, %v4145
      %vm4253 = vcmp.eq.s32.totalorder %v1607, %v4149
      %vm4254 = vcmp.eq.s32.totalorder %v1608, %v4145
      %vm4255 = vcmp.eq.s32.totalorder %v1608, %v4149
      %vm4256 = vcmp.eq.s32.totalorder %v1609, %v4145
      %vm4257 = vcmp.eq.s32.totalorder %v1609, %v4149
      %vm4258 = vcmp.eq.s32.totalorder %v1610, %v4145
      %vm4259 = vcmp.eq.s32.totalorder %v1610, %v4149
      %vm4260 = vcmp.eq.s32.totalorder %v1611, %v4145
      %vm4261 = vcmp.eq.s32.totalorder %v1611, %v4149
      %vm4262 = vcmp.eq.s32.totalorder %v1612, %v4145
      %vm4263 = vcmp.eq.s32.totalorder %v1612, %v4149
      %vm4264 = vcmp.eq.s32.totalorder %v1613, %v4145
      %vm4265 = vcmp.eq.s32.totalorder %v1613, %v4149
      %vm4266 = vcmp.eq.s32.totalorder %v1614, %v4145
      %vm4267 = vcmp.eq.s32.totalorder %v1614, %v4149
      %vm4268 = vcmp.eq.s32.totalorder %v1615, %v4145
      %vm4269 = vcmp.eq.s32.totalorder %v1615, %v4149
      %vm4270 = vcmp.eq.s32.totalorder %v1616, %v4145
      %vm4271 = vcmp.eq.s32.totalorder %v1616, %v4149
      %vm4272 = vcmp.eq.s32.totalorder %v1617, %v4145
      %vm4273 = vcmp.eq.s32.totalorder %v1617, %v4149
      %vm4274 = vcmp.eq.s32.totalorder %v1618, %v4145
      %vm4275 = vcmp.eq.s32.totalorder %v1618, %v4149
      %vm4276 = vcmp.eq.s32.totalorder %v1619, %v4145
      %vm4277 = vcmp.eq.s32.totalorder %v1619, %v4149
      %v4279 = vlaneseq
      %v4280 = vshrl.u32 %v4279, 7
      %v4281 = vsub.s32 2, %v4280
      %v4282 = vrot.slane %v1558, %v4281
      %v4283 = vlaneseq
      %v4284 = vshrl.u32 %v4283, 7
      %v4285 = vsub.s32 6, %v4284
      %v4286 = vrot.slane %v1558, %v4285
      %v4289 = vlaneseq
      %v4290 = vshrl.u32 %v4289, 7
      %v4291 = vsub.s32 2, %v4290
      %v4292 = vrot.slane %v4282, %v4291
      %v4293 = vlaneseq
      %v4294 = vshrl.u32 %v4293, 7
      %v4295 = vsub.s32 2, %v4294
      %v4296 = vrot.slane %v4286, %v4295
      %v4297 = vsel %vm4150, %v4292, 0.0
      %v4298 = vsel %vm4151, %v4296, 0.0
      %v4299 = vsel %vm4152, %v4292, 0.0
      %v4300 = vsel %vm4153, %v4296, 0.0
      %v4301 = vsel %vm4154, %v4292, 0.0
      %v4302 = vsel %vm4155, %v4296, 0.0
      %v4303 = vsel %vm4156, %v4292, 0.0
      %v4304 = vsel %vm4157, %v4296, 0.0
      %v4305 = vsel %vm4158, %v4292, 0.0
      %v4306 = vsel %vm4159, %v4296, 0.0
      %v4307 = vsel %vm4160, %v4292, 0.0
      %v4308 = vsel %vm4161, %v4296, 0.0
      %v4309 = vsel %vm4162, %v4292, 0.0
      %v4310 = vsel %vm4163, %v4296, 0.0
      %v4311 = vsel %vm4164, %v4292, 0.0
      %v4312 = vsel %vm4165, %v4296, 0.0
      %v4313 = vsel %vm4166, %v4292, 0.0
      %v4314 = vsel %vm4167, %v4296, 0.0
      %v4315 = vsel %vm4168, %v4292, 0.0
      %v4316 = vsel %vm4169, %v4296, 0.0
      %v4317 = vsel %vm4170, %v4292, 0.0
      %v4318 = vsel %vm4171, %v4296, 0.0
      %v4319 = vsel %vm4172, %v4292, 0.0
      %v4320 = vsel %vm4173, %v4296, 0.0
      %v4321 = vsel %vm4174, %v4292, 0.0
      %v4322 = vsel %vm4175, %v4296, 0.0
      %v4323 = vsel %vm4176, %v4292, 0.0
      %v4324 = vsel %vm4177, %v4296, 0.0
      %v4325 = vsel %vm4178, %v4292, 0.0
      %v4326 = vsel %vm4179, %v4296, 0.0
      %v4327 = vsel %vm4180, %v4292, 0.0
      %v4328 = vsel %vm4181, %v4296, 0.0
      %v4329 = vsel %vm4182, %v4292, 0.0
      %v4330 = vsel %vm4183, %v4296, 0.0
      %v4331 = vsel %vm4184, %v4292, 0.0
      %v4332 = vsel %vm4185, %v4296, 0.0
      %v4333 = vsel %vm4186, %v4292, 0.0
      %v4334 = vsel %vm4187, %v4296, 0.0
      %v4335 = vsel %vm4188, %v4292, 0.0
      %v4336 = vsel %vm4189, %v4296, 0.0
      %v4337 = vsel %vm4190, %v4292, 0.0
      %v4338 = vsel %vm4191, %v4296, 0.0
      %v4339 = vsel %vm4192, %v4292, 0.0
      %v4340 = vsel %vm4193, %v4296, 0.0
      %v4341 = vsel %vm4194, %v4292, 0.0
      %v4342 = vsel %vm4195, %v4296, 0.0
      %v4343 = vsel %vm4196, %v4292, 0.0
      %v4344 = vsel %vm4197, %v4296, 0.0
      %v4345 = vsel %vm4198, %v4292, 0.0
      %v4346 = vsel %vm4199, %v4296, 0.0
      %v4347 = vsel %vm4200, %v4292, 0.0
      %v4348 = vsel %vm4201, %v4296, 0.0
      %v4349 = vsel %vm4202, %v4292, 0.0
      %v4350 = vsel %vm4203, %v4296, 0.0
      %v4351 = vsel %vm4204, %v4292, 0.0
      %v4352 = vsel %vm4205, %v4296, 0.0
      %v4353 = vsel %vm4206, %v4292, 0.0
      %v4354 = vsel %vm4207, %v4296, 0.0
      %v4355 = vsel %vm4208, %v4292, 0.0
      %v4356 = vsel %vm4209, %v4296, 0.0
      %v4357 = vsel %vm4210, %v4292, 0.0
      %v4358 = vsel %vm4211, %v4296, 0.0
      %v4359 = vsel %vm4212, %v4292, 0.0
      %v4360 = vsel %vm4213, %v4296, 0.0
      %v4361 = vsel %vm4214, %v4292, 0.0
      %v4362 = vsel %vm4215, %v4296, 0.0
      %v4363 = vsel %vm4216, %v4292, 0.0
      %v4364 = vsel %vm4217, %v4296, 0.0
      %v4365 = vsel %vm4218, %v4292, 0.0
      %v4366 = vsel %vm4219, %v4296, 0.0
      %v4367 = vsel %vm4220, %v4292, 0.0
      %v4368 = vsel %vm4221, %v4296, 0.0
      %v4369 = vsel %vm4222, %v4292, 0.0
      %v4370 = vsel %vm4223, %v4296, 0.0
      %v4371 = vsel %vm4224, %v4292, 0.0
      %v4372 = vsel %vm4225, %v4296, 0.0
      %v4373 = vsel %vm4226, %v4292, 0.0
      %v4374 = vsel %vm4227, %v4296, 0.0
      %v4375 = vsel %vm4228, %v4292, 0.0
      %v4376 = vsel %vm4229, %v4296, 0.0
      %v4377 = vsel %vm4230, %v4292, 0.0
      %v4378 = vsel %vm4231, %v4296, 0.0
      %v4379 = vsel %vm4232, %v4292, 0.0
      %v4380 = vsel %vm4233, %v4296, 0.0
      %v4381 = vsel %vm4234, %v4292, 0.0
      %v4382 = vsel %vm4235, %v4296, 0.0
      %v4383 = vsel %vm4236, %v4292, 0.0
      %v4384 = vsel %vm4237, %v4296, 0.0
      %v4385 = vsel %vm4238, %v4292, 0.0
      %v4386 = vsel %vm4239, %v4296, 0.0
      %v4387 = vsel %vm4240, %v4292, 0.0
      %v4388 = vsel %vm4241, %v4296, 0.0
      %v4389 = vsel %vm4242, %v4292, 0.0
      %v4390 = vsel %vm4243, %v4296, 0.0
      %v4391 = vsel %vm4244, %v4292, 0.0
      %v4392 = vsel %vm4245, %v4296, 0.0
      %v4393 = vsel %vm4246, %v4292, 0.0
      %v4394 = vsel %vm4247, %v4296, 0.0
      %v4395 = vsel %vm4248, %v4292, 0.0
      %v4396 = vsel %vm4249, %v4296, 0.0
      %v4397 = vsel %vm4250, %v4292, 0.0
      %v4398 = vsel %vm4251, %v4296, 0.0
      %v4399 = vsel %vm4252, %v4292, 0.0
      %v4400 = vsel %vm4253, %v4296, 0.0
      %v4401 = vsel %vm4254, %v4292, 0.0
      %v4402 = vsel %vm4255, %v4296, 0.0
      %v4403 = vsel %vm4256, %v4292, 0.0
      %v4404 = vsel %vm4257, %v4296, 0.0
      %v4405 = vsel %vm4258, %v4292, 0.0
      %v4406 = vsel %vm4259, %v4296, 0.0
      %v4407 = vsel %vm4260, %v4292, 0.0
      %v4408 = vsel %vm4261, %v4296, 0.0
      %v4409 = vsel %vm4262, %v4292, 0.0
      %v4410 = vsel %vm4263, %v4296, 0.0
      %v4411 = vsel %vm4264, %v4292, 0.0
      %v4412 = vsel %vm4265, %v4296, 0.0
      %v4413 = vsel %vm4266, %v4292, 0.0
      %v4414 = vsel %vm4267, %v4296, 0.0
      %v4415 = vsel %vm4268, %v4292, 0.0
      %v4416 = vsel %vm4269, %v4296, 0.0
      %v4417 = vsel %vm4270, %v4292, 0.0
      %v4418 = vsel %vm4271, %v4296, 0.0
      %v4419 = vsel %vm4272, %v4292, 0.0
      %v4420 = vsel %vm4273, %v4296, 0.0
      %v4421 = vsel %vm4274, %v4292, 0.0
      %v4422 = vsel %vm4275, %v4296, 0.0
      %v4423 = vsel %vm4276, %v4292, 0.0
      %v4424 = vsel %vm4277, %v4296, 0.0
      %v4425 = vadd.f32 %v4006, %v4297
      %v4426 = vadd.f32 %v4007, %v4298
      %v4427 = vadd.f32 %v4008, %v4299
      %v4428 = vadd.f32 %v4009, %v4300
      %v4429 = vadd.f32 %v4010, %v4301
      %v4430 = vadd.f32 %v4011, %v4302
      %v4431 = vadd.f32 %v4012, %v4303
      %v4432 = vadd.f32 %v4013, %v4304
      %v4433 = vadd.f32 %v4014, %v4305
      %v4434 = vadd.f32 %v4015, %v4306
      %v4435 = vadd.f32 %v4016, %v4307
      %v4436 = vadd.f32 %v4017, %v4308
      %v4437 = vadd.f32 %v4018, %v4309
      %v4438 = vadd.f32 %v4019, %v4310
      %v4439 = vadd.f32 %v4020, %v4311
      %v4440 = vadd.f32 %v4021, %v4312
      %v4441 = vadd.f32 %v4022, %v4313
      %v4442 = vadd.f32 %v4023, %v4314
      %v4443 = vadd.f32 %v4024, %v4315
      %v4444 = vadd.f32 %v4025, %v4316
      %v4445 = vadd.f32 %v4026, %v4317
      %v4446 = vadd.f32 %v4027, %v4318
      %v4447 = vadd.f32 %v4028, %v4319
      %v4448 = vadd.f32 %v4029, %v4320
      %v4449 = vadd.f32 %v4030, %v4321
      %v4450 = vadd.f32 %v4031, %v4322
      %v4451 = vadd.f32 %v4032, %v4323
      %v4452 = vadd.f32 %v4033, %v4324
      %v4453 = vadd.f32 %v4034, %v4325
      %v4454 = vadd.f32 %v4035, %v4326
      %v4455 = vadd.f32 %v4036, %v4327
      %v4456 = vadd.f32 %v4037, %v4328
      %v4457 = vadd.f32 %v4038, %v4329
      %v4458 = vadd.f32 %v4039, %v4330
      %v4459 = vadd.f32 %v4040, %v4331
      %v4460 = vadd.f32 %v4041, %v4332
      %v4461 = vadd.f32 %v4042, %v4333
      %v4462 = vadd.f32 %v4043, %v4334
      %v4463 = vadd.f32 %v4044, %v4335
      %v4464 = vadd.f32 %v4045, %v4336
      %v4465 = vadd.f32 %v4046, %v4337
      %v4466 = vadd.f32 %v4047, %v4338
      %v4467 = vadd.f32 %v4048, %v4339
      %v4468 = vadd.f32 %v4049, %v4340
      %v4469 = vadd.f32 %v4050, %v4341
      %v4470 = vadd.f32 %v4051, %v4342
      %v4471 = vadd.f32 %v4052, %v4343
      %v4472 = vadd.f32 %v4053, %v4344
      %v4473 = vadd.f32 %v4054, %v4345
      %v4474 = vadd.f32 %v4055, %v4346
      %v4475 = vadd.f32 %v4056, %v4347
      %v4476 = vadd.f32 %v4057, %v4348
      %v4477 = vadd.f32 %v4058, %v4349
      %v4478 = vadd.f32 %v4059, %v4350
      %v4479 = vadd.f32 %v4060, %v4351
      %v4480 = vadd.f32 %v4061, %v4352
      %v4481 = vadd.f32 %v4062, %v4353
      %v4482 = vadd.f32 %v4063, %v4354
      %v4483 = vadd.f32 %v4064, %v4355
      %v4484 = vadd.f32 %v4065, %v4356
      %v4485 = vadd.f32 %v4066, %v4357
      %v4486 = vadd.f32 %v4067, %v4358
      %v4487 = vadd.f32 %v4068, %v4359
      %v4488 = vadd.f32 %v4069, %v4360
      %v4489 = vadd.f32 %v4070, %v4361
      %v4490 = vadd.f32 %v4071, %v4362
      %v4491 = vadd.f32 %v4072, %v4363
      %v4492 = vadd.f32 %v4073, %v4364
      %v4493 = vadd.f32 %v4074, %v4365
      %v4494 = vadd.f32 %v4075, %v4366
      %v4495 = vadd.f32 %v4076, %v4367
      %v4496 = vadd.f32 %v4077, %v4368
      %v4497 = vadd.f32 %v4078, %v4369
      %v4498 = vadd.f32 %v4079, %v4370
      %v4499 = vadd.f32 %v4080, %v4371
      %v4500 = vadd.f32 %v4081, %v4372
      %v4501 = vadd.f32 %v4082, %v4373
      %v4502 = vadd.f32 %v4083, %v4374
      %v4503 = vadd.f32 %v4084, %v4375
      %v4504 = vadd.f32 %v4085, %v4376
      %v4505 = vadd.f32 %v4086, %v4377
      %v4506 = vadd.f32 %v4087, %v4378
      %v4507 = vadd.f32 %v4088, %v4379
      %v4508 = vadd.f32 %v4089, %v4380
      %v4509 = vadd.f32 %v4090, %v4381
      %v4510 = vadd.f32 %v4091, %v4382
      %v4511 = vadd.f32 %v4092, %v4383
      %v4512 = vadd.f32 %v4093, %v4384
      %v4513 = vadd.f32 %v4094, %v4385
      %v4514 = vadd.f32 %v4095, %v4386
      %v4515 = vadd.f32 %v4096, %v4387
      %v4516 = vadd.f32 %v4097, %v4388
      %v4517 = vadd.f32 %v4098, %v4389
      %v4518 = vadd.f32 %v4099, %v4390
      %v4519 = vadd.f32 %v4100, %v4391
      %v4520 = vadd.f32 %v4101, %v4392
      %v4521 = vadd.f32 %v4102, %v4393
      %v4522 = vadd.f32 %v4103, %v4394
      %v4523 = vadd.f32 %v4104, %v4395
      %v4524 = vadd.f32 %v4105, %v4396
      %v4525 = vadd.f32 %v4106, %v4397
      %v4526 = vadd.f32 %v4107, %v4398
      %v4527 = vadd.f32 %v4108, %v4399
      %v4528 = vadd.f32 %v4109, %v4400
      %v4529 = vadd.f32 %v4110, %v4401
      %v4530 = vadd.f32 %v4111, %v4402
      %v4531 = vadd.f32 %v4112, %v4403
      %v4532 = vadd.f32 %v4113, %v4404
      %v4533 = vadd.f32 %v4114, %v4405
      %v4534 = vadd.f32 %v4115, %v4406
      %v4535 = vadd.f32 %v4116, %v4407
      %v4536 = vadd.f32 %v4117, %v4408
      %v4537 = vadd.f32 %v4118, %v4409
      %v4538 = vadd.f32 %v4119, %v4410
      %v4539 = vadd.f32 %v4120, %v4411
      %v4540 = vadd.f32 %v4121, %v4412
      %v4541 = vadd.f32 %v4122, %v4413
      %v4542 = vadd.f32 %v4123, %v4414
      %v4543 = vadd.f32 %v4124, %v4415
      %v4544 = vadd.f32 %v4125, %v4416
      %v4545 = vadd.f32 %v4126, %v4417
      %v4546 = vadd.f32 %v4127, %v4418
      %v4547 = vadd.f32 %v4128, %v4419
      %v4548 = vadd.f32 %v4129, %v4420
      %v4549 = vadd.f32 %v4130, %v4421
      %v4550 = vadd.f32 %v4131, %v4422
      %v4551 = vadd.f32 %v4132, %v4423
      %v4552 = vadd.f32 %v4133, %v4424
      %v4553 = vlaneseq
      %v4554 = vshrl.u32 %v4553, 7
      %v4555 = vsub.s32 2, %v4554
      %v4556 = vrot.slane %v1559, %v4555
      %v4557 = vlaneseq
      %v4558 = vshrl.u32 %v4557, 7
      %v4559 = vsub.s32 6, %v4558
      %v4560 = vrot.slane %v1559, %v4559
      %v4561 = vlaneseq
      %v4562 = vshrl.u32 %v4561, 7
      %v4563 = vsub.s32 2, %v4562
      %v4564 = vrot.slane %v4556, %v4563
      %v4565 = vlaneseq
      %v4566 = vshrl.u32 %v4565, 7
      %v4567 = vsub.s32 2, %v4566
      %v4568 = vrot.slane %v4560, %v4567
      %vm4569 = vcmp.eq.s32.totalorder %v1486, %v4564
      %vm4570 = vcmp.eq.s32.totalorder %v1486, %v4568
      %vm4571 = vcmp.eq.s32.totalorder %v1487, %v4564
      %vm4572 = vcmp.eq.s32.totalorder %v1487, %v4568
      %vm4573 = vcmp.eq.s32.totalorder %v1488, %v4564
      %vm4574 = vcmp.eq.s32.totalorder %v1488, %v4568
      %vm4575 = vcmp.eq.s32.totalorder %v1489, %v4564
      %vm4576 = vcmp.eq.s32.totalorder %v1489, %v4568
      %vm4577 = vcmp.eq.s32.totalorder %v1490, %v4564
      %vm4578 = vcmp.eq.s32.totalorder %v1490, %v4568
      %vm4579 = vcmp.eq.s32.totalorder %v1561, %v4564
      %vm4580 = vcmp.eq.s32.totalorder %v1561, %v4568
      %vm4581 = vcmp.eq.s32.totalorder %v1562, %v4564
      %vm4582 = vcmp.eq.s32.totalorder %v1562, %v4568
      %vm4583 = vcmp.eq.s32.totalorder %v1563, %v4564
      %vm4584 = vcmp.eq.s32.totalorder %v1563, %v4568
      %vm4585 = vcmp.eq.s32.totalorder %v1564, %v4564
      %vm4586 = vcmp.eq.s32.totalorder %v1564, %v4568
      %vm4587 = vcmp.eq.s32.totalorder %v1565, %v4564
      %vm4588 = vcmp.eq.s32.totalorder %v1565, %v4568
      %vm4589 = vcmp.eq.s32.totalorder %v1566, %v4564
      %vm4590 = vcmp.eq.s32.totalorder %v1566, %v4568
      %vm4591 = vcmp.eq.s32.totalorder %v1567, %v4564
      %vm4592 = vcmp.eq.s32.totalorder %v1567, %v4568
      %vm4593 = vcmp.eq.s32.totalorder %v1568, %v4564
      %vm4594 = vcmp.eq.s32.totalorder %v1568, %v4568
      %vm4595 = vcmp.eq.s32.totalorder %v1569, %v4564
      %vm4596 = vcmp.eq.s32.totalorder %v1569, %v4568
      %vm4597 = vcmp.eq.s32.totalorder %v1570, %v4564
      %vm4598 = vcmp.eq.s32.totalorder %v1570, %v4568
      %vm4599 = vcmp.eq.s32.totalorder %v1571, %v4564
      %vm4600 = vcmp.eq.s32.totalorder %v1571, %v4568
      %vm4601 = vcmp.eq.s32.totalorder %v1572, %v4564
      %vm4602 = vcmp.eq.s32.totalorder %v1572, %v4568
      %vm4603 = vcmp.eq.s32.totalorder %v1573, %v4564
      %vm4604 = vcmp.eq.s32.totalorder %v1573, %v4568
      %vm4605 = vcmp.eq.s32.totalorder %v1574, %v4564
      %vm4606 = vcmp.eq.s32.totalorder %v1574, %v4568
      %vm4607 = vcmp.eq.s32.totalorder %v1575, %v4564
      %vm4608 = vcmp.eq.s32.totalorder %v1575, %v4568
      %vm4609 = vcmp.eq.s32.totalorder %v1576, %v4564
      %vm4610 = vcmp.eq.s32.totalorder %v1576, %v4568
      %vm4611 = vcmp.eq.s32.totalorder %v1577, %v4564
      %vm4612 = vcmp.eq.s32.totalorder %v1577, %v4568
      %vm4613 = vcmp.eq.s32.totalorder %v1578, %v4564
      %vm4614 = vcmp.eq.s32.totalorder %v1578, %v4568
      %vm4615 = vcmp.eq.s32.totalorder %v1579, %v4564
      %vm4616 = vcmp.eq.s32.totalorder %v1579, %v4568
      %vm4617 = vcmp.eq.s32.totalorder %v1580, %v4564
      %vm4618 = vcmp.eq.s32.totalorder %v1580, %v4568
      %vm4619 = vcmp.eq.s32.totalorder %v1581, %v4564
      %vm4620 = vcmp.eq.s32.totalorder %v1581, %v4568
      %vm4621 = vcmp.eq.s32.totalorder %v1582, %v4564
      %vm4622 = vcmp.eq.s32.totalorder %v1582, %v4568
      %vm4623 = vcmp.eq.s32.totalorder %v1583, %v4564
      %vm4624 = vcmp.eq.s32.totalorder %v1583, %v4568
      %vm4625 = vcmp.eq.s32.totalorder %v1584, %v4564
      %vm4626 = vcmp.eq.s32.totalorder %v1584, %v4568
      %vm4627 = vcmp.eq.s32.totalorder %v1585, %v4564
      %vm4628 = vcmp.eq.s32.totalorder %v1585, %v4568
      %vm4629 = vcmp.eq.s32.totalorder %v1586, %v4564
      %vm4630 = vcmp.eq.s32.totalorder %v1586, %v4568
      %vm4631 = vcmp.eq.s32.totalorder %v1587, %v4564
      %vm4632 = vcmp.eq.s32.totalorder %v1587, %v4568
      %vm4633 = vcmp.eq.s32.totalorder %v1588, %v4564
      %vm4634 = vcmp.eq.s32.totalorder %v1588, %v4568
      %vm4635 = vcmp.eq.s32.totalorder %v1589, %v4564
      %vm4636 = vcmp.eq.s32.totalorder %v1589, %v4568
      %vm4637 = vcmp.eq.s32.totalorder %v1590, %v4564
      %vm4638 = vcmp.eq.s32.totalorder %v1590, %v4568
      %vm4639 = vcmp.eq.s32.totalorder %v1591, %v4564
      %vm4640 = vcmp.eq.s32.totalorder %v1591, %v4568
      %vm4641 = vcmp.eq.s32.totalorder %v1592, %v4564
      %vm4642 = vcmp.eq.s32.totalorder %v1592, %v4568
      %vm4643 = vcmp.eq.s32.totalorder %v1593, %v4564
      %vm4644 = vcmp.eq.s32.totalorder %v1593, %v4568
      %vm4645 = vcmp.eq.s32.totalorder %v1594, %v4564
      %vm4646 = vcmp.eq.s32.totalorder %v1594, %v4568
      %vm4647 = vcmp.eq.s32.totalorder %v1595, %v4564
      %vm4648 = vcmp.eq.s32.totalorder %v1595, %v4568
      %vm4649 = vcmp.eq.s32.totalorder %v1596, %v4564
      %vm4650 = vcmp.eq.s32.totalorder %v1596, %v4568
      %vm4651 = vcmp.eq.s32.totalorder %v1597, %v4564
      %vm4652 = vcmp.eq.s32.totalorder %v1597, %v4568
      %vm4653 = vcmp.eq.s32.totalorder %v1598, %v4564
      %vm4654 = vcmp.eq.s32.totalorder %v1598, %v4568
      %vm4655 = vcmp.eq.s32.totalorder %v1599, %v4564
      %vm4656 = vcmp.eq.s32.totalorder %v1599, %v4568
      %vm4657 = vcmp.eq.s32.totalorder %v1600, %v4564
      %vm4658 = vcmp.eq.s32.totalorder %v1600, %v4568
      %vm4659 = vcmp.eq.s32.totalorder %v1601, %v4564
      %vm4660 = vcmp.eq.s32.totalorder %v1601, %v4568
      %vm4661 = vcmp.eq.s32.totalorder %v1602, %v4564
      %vm4662 = vcmp.eq.s32.totalorder %v1602, %v4568
      %vm4663 = vcmp.eq.s32.totalorder %v1603, %v4564
      %vm4664 = vcmp.eq.s32.totalorder %v1603, %v4568
      %vm4665 = vcmp.eq.s32.totalorder %v1604, %v4564
      %vm4666 = vcmp.eq.s32.totalorder %v1604, %v4568
      %vm4667 = vcmp.eq.s32.totalorder %v1605, %v4564
      %vm4668 = vcmp.eq.s32.totalorder %v1605, %v4568
      %vm4669 = vcmp.eq.s32.totalorder %v1606, %v4564
      %vm4670 = vcmp.eq.s32.totalorder %v1606, %v4568
      %vm4671 = vcmp.eq.s32.totalorder %v1607, %v4564
      %vm4672 = vcmp.eq.s32.totalorder %v1607, %v4568
      %vm4673 = vcmp.eq.s32.totalorder %v1608, %v4564
      %vm4674 = vcmp.eq.s32.totalorder %v1608, %v4568
      %vm4675 = vcmp.eq.s32.totalorder %v1609, %v4564
      %vm4676 = vcmp.eq.s32.totalorder %v1609, %v4568
      %vm4677 = vcmp.eq.s32.totalorder %v1610, %v4564
      %vm4678 = vcmp.eq.s32.totalorder %v1610, %v4568
      %vm4679 = vcmp.eq.s32.totalorder %v1611, %v4564
      %vm4680 = vcmp.eq.s32.totalorder %v1611, %v4568
      %vm4681 = vcmp.eq.s32.totalorder %v1612, %v4564
      %vm4682 = vcmp.eq.s32.totalorder %v1612, %v4568
      %vm4683 = vcmp.eq.s32.totalorder %v1613, %v4564
      %vm4684 = vcmp.eq.s32.totalorder %v1613, %v4568
      %vm4685 = vcmp.eq.s32.totalorder %v1614, %v4564
      %vm4686 = vcmp.eq.s32.totalorder %v1614, %v4568
      %vm4687 = vcmp.eq.s32.totalorder %v1615, %v4564
      %vm4688 = vcmp.eq.s32.totalorder %v1615, %v4568
      %vm4689 = vcmp.eq.s32.totalorder %v1616, %v4564
      %vm4690 = vcmp.eq.s32.totalorder %v1616, %v4568
      %vm4691 = vcmp.eq.s32.totalorder %v1617, %v4564
      %vm4692 = vcmp.eq.s32.totalorder %v1617, %v4568
      %vm4693 = vcmp.eq.s32.totalorder %v1618, %v4564
      %vm4694 = vcmp.eq.s32.totalorder %v1618, %v4568
      %vm4695 = vcmp.eq.s32.totalorder %v1619, %v4564
      %vm4696 = vcmp.eq.s32.totalorder %v1619, %v4568
      %v4698 = vlaneseq
      %v4699 = vshrl.u32 %v4698, 7
      %v4700 = vsub.s32 2, %v4699
      %v4701 = vrot.slane %v1560, %v4700
      %v4702 = vlaneseq
      %v4703 = vshrl.u32 %v4702, 7
      %v4704 = vsub.s32 6, %v4703
      %v4705 = vrot.slane %v1560, %v4704
      %v4708 = vlaneseq
      %v4709 = vshrl.u32 %v4708, 7
      %v4710 = vsub.s32 2, %v4709
      %v4711 = vrot.slane %v4701, %v4710
      %v4712 = vlaneseq
      %v4713 = vshrl.u32 %v4712, 7
      %v4714 = vsub.s32 2, %v4713
      %v4715 = vrot.slane %v4705, %v4714
      %v4716 = vsel %vm4569, %v4711, 0.0
      %v4717 = vsel %vm4570, %v4715, 0.0
      %v4718 = vsel %vm4571, %v4711, 0.0
      %v4719 = vsel %vm4572, %v4715, 0.0
      %v4720 = vsel %vm4573, %v4711, 0.0
      %v4721 = vsel %vm4574, %v4715, 0.0
      %v4722 = vsel %vm4575, %v4711, 0.0
      %v4723 = vsel %vm4576, %v4715, 0.0
      %v4724 = vsel %vm4577, %v4711, 0.0
      %v4725 = vsel %vm4578, %v4715, 0.0
      %v4726 = vsel %vm4579, %v4711, 0.0
      %v4727 = vsel %vm4580, %v4715, 0.0
      %v4728 = vsel %vm4581, %v4711, 0.0
      %v4729 = vsel %vm4582, %v4715, 0.0
      %v4730 = vsel %vm4583, %v4711, 0.0
      %v4731 = vsel %vm4584, %v4715, 0.0
      %v4732 = vsel %vm4585, %v4711, 0.0
      %v4733 = vsel %vm4586, %v4715, 0.0
      %v4734 = vsel %vm4587, %v4711, 0.0
      %v4735 = vsel %vm4588, %v4715, 0.0
      %v4736 = vsel %vm4589, %v4711, 0.0
      %v4737 = vsel %vm4590, %v4715, 0.0
      %v4738 = vsel %vm4591, %v4711, 0.0
      %v4739 = vsel %vm4592, %v4715, 0.0
      %v4740 = vsel %vm4593, %v4711, 0.0
      %v4741 = vsel %vm4594, %v4715, 0.0
      %v4742 = vsel %vm4595, %v4711, 0.0
      %v4743 = vsel %vm4596, %v4715, 0.0
      %v4744 = vsel %vm4597, %v4711, 0.0
      %v4745 = vsel %vm4598, %v4715, 0.0
      %v4746 = vsel %vm4599, %v4711, 0.0
      %v4747 = vsel %vm4600, %v4715, 0.0
      %v4748 = vsel %vm4601, %v4711, 0.0
      %v4749 = vsel %vm4602, %v4715, 0.0
      %v4750 = vsel %vm4603, %v4711, 0.0
      %v4751 = vsel %vm4604, %v4715, 0.0
      %v4752 = vsel %vm4605, %v4711, 0.0
      %v4753 = vsel %vm4606, %v4715, 0.0
      %v4754 = vsel %vm4607, %v4711, 0.0
      %v4755 = vsel %vm4608, %v4715, 0.0
      %v4756 = vsel %vm4609, %v4711, 0.0
      %v4757 = vsel %vm4610, %v4715, 0.0
      %v4758 = vsel %vm4611, %v4711, 0.0
      %v4759 = vsel %vm4612, %v4715, 0.0
      %v4760 = vsel %vm4613, %v4711, 0.0
      %v4761 = vsel %vm4614, %v4715, 0.0
      %v4762 = vsel %vm4615, %v4711, 0.0
      %v4763 = vsel %vm4616, %v4715, 0.0
      %v4764 = vsel %vm4617, %v4711, 0.0
      %v4765 = vsel %vm4618, %v4715, 0.0
      %v4766 = vsel %vm4619, %v4711, 0.0
      %v4767 = vsel %vm4620, %v4715, 0.0
      %v4768 = vsel %vm4621, %v4711, 0.0
      %v4769 = vsel %vm4622, %v4715, 0.0
      %v4770 = vsel %vm4623, %v4711, 0.0
      %v4771 = vsel %vm4624, %v4715, 0.0
      %v4772 = vsel %vm4625, %v4711, 0.0
      %v4773 = vsel %vm4626, %v4715, 0.0
      %v4774 = vsel %vm4627, %v4711, 0.0
      %v4775 = vsel %vm4628, %v4715, 0.0
      %v4776 = vsel %vm4629, %v4711, 0.0
      %v4777 = vsel %vm4630, %v4715, 0.0
      %v4778 = vsel %vm4631, %v4711, 0.0
      %v4779 = vsel %vm4632, %v4715, 0.0
      %v4780 = vsel %vm4633, %v4711, 0.0
      %v4781 = vsel %vm4634, %v4715, 0.0
      %v4782 = vsel %vm4635, %v4711, 0.0
      %v4783 = vsel %vm4636, %v4715, 0.0
      %v4784 = vsel %vm4637, %v4711, 0.0
      %v4785 = vsel %vm4638, %v4715, 0.0
      %v4786 = vsel %vm4639, %v4711, 0.0
      %v4787 = vsel %vm4640, %v4715, 0.0
      %v4788 = vsel %vm4641, %v4711, 0.0
      %v4789 = vsel %vm4642, %v4715, 0.0
      %v4790 = vsel %vm4643, %v4711, 0.0
      %v4791 = vsel %vm4644, %v4715, 0.0
      %v4792 = vsel %vm4645, %v4711, 0.0
      %v4793 = vsel %vm4646, %v4715, 0.0
      %v4794 = vsel %vm4647, %v4711, 0.0
      %v4795 = vsel %vm4648, %v4715, 0.0
      %v4796 = vsel %vm4649, %v4711, 0.0
      %v4797 = vsel %vm4650, %v4715, 0.0
      %v4798 = vsel %vm4651, %v4711, 0.0
      %v4799 = vsel %vm4652, %v4715, 0.0
      %v4800 = vsel %vm4653, %v4711, 0.0
      %v4801 = vsel %vm4654, %v4715, 0.0
      %v4802 = vsel %vm4655, %v4711, 0.0
      %v4803 = vsel %vm4656, %v4715, 0.0
      %v4804 = vsel %vm4657, %v4711, 0.0
      %v4805 = vsel %vm4658, %v4715, 0.0
      %v4806 = vsel %vm4659, %v4711, 0.0
      %v4807 = vsel %vm4660, %v4715, 0.0
      %v4808 = vsel %vm4661, %v4711, 0.0
      %v4809 = vsel %vm4662, %v4715, 0.0
      %v4810 = vsel %vm4663, %v4711, 0.0
      %v4811 = vsel %vm4664, %v4715, 0.0
      %v4812 = vsel %vm4665, %v4711, 0.0
      %v4813 = vsel %vm4666, %v4715, 0.0
      %v4814 = vsel %vm4667, %v4711, 0.0
      %v4815 = vsel %vm4668, %v4715, 0.0
      %v4816 = vsel %vm4669, %v4711, 0.0
      %v4817 = vsel %vm4670, %v4715, 0.0
      %v4818 = vsel %vm4671, %v4711, 0.0
      %v4819 = vsel %vm4672, %v4715, 0.0
      %v4820 = vsel %vm4673, %v4711, 0.0
      %v4821 = vsel %vm4674, %v4715, 0.0
      %v4822 = vsel %vm4675, %v4711, 0.0
      %v4823 = vsel %vm4676, %v4715, 0.0
      %v4824 = vsel %vm4677, %v4711, 0.0
      %v4825 = vsel %vm4678, %v4715, 0.0
      %v4826 = vsel %vm4679, %v4711, 0.0
      %v4827 = vsel %vm4680, %v4715, 0.0
      %v4828 = vsel %vm4681, %v4711, 0.0
      %v4829 = vsel %vm4682, %v4715, 0.0
      %v4830 = vsel %vm4683, %v4711, 0.0
      %v4831 = vsel %vm4684, %v4715, 0.0
      %v4832 = vsel %vm4685, %v4711, 0.0
      %v4833 = vsel %vm4686, %v4715, 0.0
      %v4834 = vsel %vm4687, %v4711, 0.0
      %v4835 = vsel %vm4688, %v4715, 0.0
      %v4836 = vsel %vm4689, %v4711, 0.0
      %v4837 = vsel %vm4690, %v4715, 0.0
      %v4838 = vsel %vm4691, %v4711, 0.0
      %v4839 = vsel %vm4692, %v4715, 0.0
      %v4840 = vsel %vm4693, %v4711, 0.0
      %v4841 = vsel %vm4694, %v4715, 0.0
      %v4842 = vsel %vm4695, %v4711, 0.0
      %v4843 = vsel %vm4696, %v4715, 0.0
      %v4844 = vadd.f32 %v4425, %v4716
      %v4845 = vadd.f32 %v4426, %v4717
      %v4846 = vadd.f32 %v4427, %v4718
      %v4847 = vadd.f32 %v4428, %v4719
      %v4848 = vadd.f32 %v4429, %v4720
      %v4849 = vadd.f32 %v4430, %v4721
      %v4850 = vadd.f32 %v4431, %v4722
      %v4851 = vadd.f32 %v4432, %v4723
      %v4852 = vadd.f32 %v4433, %v4724
      %v4853 = vadd.f32 %v4434, %v4725
      %v4854 = vadd.f32 %v4435, %v4726
      %v4855 = vadd.f32 %v4436, %v4727
      %v4856 = vadd.f32 %v4437, %v4728
      %v4857 = vadd.f32 %v4438, %v4729
      %v4858 = vadd.f32 %v4439, %v4730
      %v4859 = vadd.f32 %v4440, %v4731
      %v4860 = vadd.f32 %v4441, %v4732
      %v4861 = vadd.f32 %v4442, %v4733
      %v4862 = vadd.f32 %v4443, %v4734
      %v4863 = vadd.f32 %v4444, %v4735
      %v4864 = vadd.f32 %v4445, %v4736
      %v4865 = vadd.f32 %v4446, %v4737
      %v4866 = vadd.f32 %v4447, %v4738
      %v4867 = vadd.f32 %v4448, %v4739
      %v4868 = vadd.f32 %v4449, %v4740
      %v4869 = vadd.f32 %v4450, %v4741
      %v4870 = vadd.f32 %v4451, %v4742
      %v4871 = vadd.f32 %v4452, %v4743
      %v4872 = vadd.f32 %v4453, %v4744
      %v4873 = vadd.f32 %v4454, %v4745
      %v4874 = vadd.f32 %v4455, %v4746
      %v4875 = vadd.f32 %v4456, %v4747
      %v4876 = vadd.f32 %v4457, %v4748
      %v4877 = vadd.f32 %v4458, %v4749
      %v4878 = vadd.f32 %v4459, %v4750
      %v4879 = vadd.f32 %v4460, %v4751
      %v4880 = vadd.f32 %v4461, %v4752
      %v4881 = vadd.f32 %v4462, %v4753
      %v4882 = vadd.f32 %v4463, %v4754
      %v4883 = vadd.f32 %v4464, %v4755
      %v4884 = vadd.f32 %v4465, %v4756
      %v4885 = vadd.f32 %v4466, %v4757
      %v4886 = vadd.f32 %v4467, %v4758
      %v4887 = vadd.f32 %v4468, %v4759
      %v4888 = vadd.f32 %v4469, %v4760
      %v4889 = vadd.f32 %v4470, %v4761
      %v4890 = vadd.f32 %v4471, %v4762
      %v4891 = vadd.f32 %v4472, %v4763
      %v4892 = vadd.f32 %v4473, %v4764
      %v4893 = vadd.f32 %v4474, %v4765
      %v4894 = vadd.f32 %v4475, %v4766
      %v4895 = vadd.f32 %v4476, %v4767
      %v4896 = vadd.f32 %v4477, %v4768
      %v4897 = vadd.f32 %v4478, %v4769
      %v4898 = vadd.f32 %v4479, %v4770
      %v4899 = vadd.f32 %v4480, %v4771
      %v4900 = vadd.f32 %v4481, %v4772
      %v4901 = vadd.f32 %v4482, %v4773
      %v4902 = vadd.f32 %v4483, %v4774
      %v4903 = vadd.f32 %v4484, %v4775
      %v4904 = vadd.f32 %v4485, %v4776
      %v4905 = vadd.f32 %v4486, %v4777
      %v4906 = vadd.f32 %v4487, %v4778
      %v4907 = vadd.f32 %v4488, %v4779
      %v4908 = vadd.f32 %v4489, %v4780
      %v4909 = vadd.f32 %v4490, %v4781
      %v4910 = vadd.f32 %v4491, %v4782
      %v4911 = vadd.f32 %v4492, %v4783
      %v4912 = vadd.f32 %v4493, %v4784
      %v4913 = vadd.f32 %v4494, %v4785
      %v4914 = vadd.f32 %v4495, %v4786
      %v4915 = vadd.f32 %v4496, %v4787
      %v4916 = vadd.f32 %v4497, %v4788
      %v4917 = vadd.f32 %v4498, %v4789
      %v4918 = vadd.f32 %v4499, %v4790
      %v4919 = vadd.f32 %v4500, %v4791
      %v4920 = vadd.f32 %v4501, %v4792
      %v4921 = vadd.f32 %v4502, %v4793
      %v4922 = vadd.f32 %v4503, %v4794
      %v4923 = vadd.f32 %v4504, %v4795
      %v4924 = vadd.f32 %v4505, %v4796
      %v4925 = vadd.f32 %v4506, %v4797
      %v4926 = vadd.f32 %v4507, %v4798
      %v4927 = vadd.f32 %v4508, %v4799
      %v4928 = vadd.f32 %v4509, %v4800
      %v4929 = vadd.f32 %v4510, %v4801
      %v4930 = vadd.f32 %v4511, %v4802
      %v4931 = vadd.f32 %v4512, %v4803
      %v4932 = vadd.f32 %v4513, %v4804
      %v4933 = vadd.f32 %v4514, %v4805
      %v4934 = vadd.f32 %v4515, %v4806
      %v4935 = vadd.f32 %v4516, %v4807
      %v4936 = vadd.f32 %v4517, %v4808
      %v4937 = vadd.f32 %v4518, %v4809
      %v4938 = vadd.f32 %v4519, %v4810
      %v4939 = vadd.f32 %v4520, %v4811
      %v4940 = vadd.f32 %v4521, %v4812
      %v4941 = vadd.f32 %v4522, %v4813
      %v4942 = vadd.f32 %v4523, %v4814
      %v4943 = vadd.f32 %v4524, %v4815
      %v4944 = vadd.f32 %v4525, %v4816
      %v4945 = vadd.f32 %v4526, %v4817
      %v4946 = vadd.f32 %v4527, %v4818
      %v4947 = vadd.f32 %v4528, %v4819
      %v4948 = vadd.f32 %v4529, %v4820
      %v4949 = vadd.f32 %v4530, %v4821
      %v4950 = vadd.f32 %v4531, %v4822
      %v4951 = vadd.f32 %v4532, %v4823
      %v4952 = vadd.f32 %v4533, %v4824
      %v4953 = vadd.f32 %v4534, %v4825
      %v4954 = vadd.f32 %v4535, %v4826
      %v4955 = vadd.f32 %v4536, %v4827
      %v4956 = vadd.f32 %v4537, %v4828
      %v4957 = vadd.f32 %v4538, %v4829
      %v4958 = vadd.f32 %v4539, %v4830
      %v4959 = vadd.f32 %v4540, %v4831
      %v4960 = vadd.f32 %v4541, %v4832
      %v4961 = vadd.f32 %v4542, %v4833
      %v4962 = vadd.f32 %v4543, %v4834
      %v4963 = vadd.f32 %v4544, %v4835
      %v4964 = vadd.f32 %v4545, %v4836
      %v4965 = vadd.f32 %v4546, %v4837
      %v4966 = vadd.f32 %v4547, %v4838
      %v4967 = vadd.f32 %v4548, %v4839
      %v4968 = vadd.f32 %v4549, %v4840
      %v4969 = vadd.f32 %v4550, %v4841
      %v4970 = vadd.f32 %v4551, %v4842
      %v4971 = vadd.f32 %v4552, %v4843
      %v4972 = vld [vmem:[%s7] sm:$0xf]
      %v4974 = vlaneseq
      %v4975 = vshrl.u32 %v4974, 7
      %v4976 = vsub.s32 0, %v4975
      %v4977 = vrot.slane %v4972, %v4976
      %v4978 = vlaneseq
      %v4979 = vshrl.u32 %v4978, 7
      %v4980 = vsub.s32 1, %v4979
      %v4981 = vrot.slane %v4972, %v4980
      %v4982 = vlaneseq
      %v4983 = vshrl.u32 %v4982, 7
      %v4984 = vsub.s32 2, %v4983
      %v4985 = vrot.slane %v4972, %v4984
      %v4986 = vlaneseq
      %v4987 = vshrl.u32 %v4986, 7
      %v4988 = vsub.s32 3, %v4987
      %v4989 = vrot.slane %v4972, %v4988
      %4994 = vmatprep.subr.mxu0 %v4875
      %4995 = vmatpush1.msra.mxu0 %v4874
      %4996 = vmatprep.subr.mxu0 %v4873
      %4997 = vmatpush1.msra.mxu0 %v4872
      %4998 = vmatprep.subr.mxu0 %v4871
      %4999 = vmatpush1.msra.mxu0 %v4870
      %5000 = vmatprep.subr.mxu0 %v4869
      %5001 = vmatpush1.msra.mxu0 %v4868
      %5002 = vmatprep.subr.mxu0 %v4867
      %5003 = vmatpush1.msra.mxu0 %v4866
      %5004 = vmatprep.subr.mxu0 %v4865
      %5005 = vmatpush1.msra.mxu0 %v4864
      %5006 = vmatprep.subr.mxu0 %v4863
      %5007 = vmatpush1.msra.mxu0 %v4862
      %5008 = vmatprep.subr.mxu0 %v4861
      %5009 = vmatpush1.msra.mxu0 %v4860
      %5010 = vmatprep.subr.mxu0 %v4859
      %5011 = vmatpush1.msra.mxu0 %v4858
      %5012 = vmatprep.subr.mxu0 %v4857
      %5013 = vmatpush1.msra.mxu0 %v4856
      %5014 = vmatprep.subr.mxu0 %v4855
      %5015 = vmatpush1.msra.mxu0 %v4854
      %5016 = vmatprep.subr.mxu0 %v4853
      %5017 = vmatpush1.msra.mxu0 %v4852
      %5018 = vmatprep.subr.mxu0 %v4851
      %5019 = vmatpush1.msra.mxu0 %v4850
      %5020 = vmatprep.subr.mxu0 %v4849
      %5021 = vmatpush1.msra.mxu0 %v4848
      %5022 = vmatprep.subr.mxu0 %v4847
      %5023 = vmatpush1.msra.mxu0 %v4846
      %5024 = vmatprep.subr.mxu0 %v4845
      %5025 = vmatpush1.msra.mxu0 %v4844
      %5026 = vmatprep.subr.mxu0 %v4907
      %5027 = vmatpush2.msra.mxu0 %v4906
      %5028 = vmatprep.subr.mxu0 %v4905
      %5029 = vmatpush2.msra.mxu0 %v4904
      %5030 = vmatprep.subr.mxu0 %v4903
      %5031 = vmatpush2.msra.mxu0 %v4902
      %5032 = vmatprep.subr.mxu0 %v4901
      %5033 = vmatpush2.msra.mxu0 %v4900
      %5034 = vmatprep.subr.mxu0 %v4899
      %5035 = vmatpush2.msra.mxu0 %v4898
      %5036 = vmatprep.subr.mxu0 %v4897
      %5037 = vmatpush2.msra.mxu0 %v4896
      %5038 = vmatprep.subr.mxu0 %v4895
      %5039 = vmatpush2.msra.mxu0 %v4894
      %5040 = vmatprep.subr.mxu0 %v4893
      %5041 = vmatpush2.msra.mxu0 %v4892
      %5042 = vmatprep.subr.mxu0 %v4891
      %5043 = vmatpush2.msra.mxu0 %v4890
      %5044 = vmatprep.subr.mxu0 %v4889
      %5045 = vmatpush2.msra.mxu0 %v4888
      %5046 = vmatprep.subr.mxu0 %v4887
      %5047 = vmatpush2.msra.mxu0 %v4886
      %5048 = vmatprep.subr.mxu0 %v4885
      %5049 = vmatpush2.msra.mxu0 %v4884
      %5050 = vmatprep.subr.mxu0 %v4883
      %5051 = vmatpush2.msra.mxu0 %v4882
      %5052 = vmatprep.subr.mxu0 %v4881
      %5053 = vmatpush2.msra.mxu0 %v4880
      %5054 = vmatprep.subr.mxu0 %v4879
      %5055 = vmatpush2.msra.mxu0 %v4878
      %5056 = vmatprep.subr.mxu0 %v4877
      %5057 = vmatpush2.msra.mxu0 %v4876
      %5058 = vmatprep.mubr.f32.mxu0 %v4981
      %5059 = vmatmul.mubr.f32.gmra.mxu0 %v4977
      %v5060 = vpop.f32.mrf.mxu0
      %v5061 = vadd.f32 0.0, %v5060
      %v5062 = vpop.f32.mrf.mxu0
      %v5063 = vadd.f32 0.0, %v5062
      %5064 = vdwg.mxu0
      %5065 = vmatprep.subr.mxu0 %v4939
      %5066 = vmatpush1.msra.mxu0 %v4938
      %5067 = vmatprep.subr.mxu0 %v4937
      %5068 = vmatpush1.msra.mxu0 %v4936
      %5069 = vmatprep.subr.mxu0 %v4935
      %5070 = vmatpush1.msra.mxu0 %v4934
      %5071 = vmatprep.subr.mxu0 %v4933
      %5072 = vmatpush1.msra.mxu0 %v4932
      %5073 = vmatprep.subr.mxu0 %v4931
      %5074 = vmatpush1.msra.mxu0 %v4930
      %5075 = vmatprep.subr.mxu0 %v4929
      %5076 = vmatpush1.msra.mxu0 %v4928
      %5077 = vmatprep.subr.mxu0 %v4927
      %5078 = vmatpush1.msra.mxu0 %v4926
      %5079 = vmatprep.subr.mxu0 %v4925
      %5080 = vmatpush1.msra.mxu0 %v4924
      %5081 = vmatprep.subr.mxu0 %v4923
      %5082 = vmatpush1.msra.mxu0 %v4922
      %5083 = vmatprep.subr.mxu0 %v4921
      %5084 = vmatpush1.msra.mxu0 %v4920
      %5085 = vmatprep.subr.mxu0 %v4919
      %5086 = vmatpush1.msra.mxu0 %v4918
      %5087 = vmatprep.subr.mxu0 %v4917
      %5088 = vmatpush1.msra.mxu0 %v4916
      %5089 = vmatprep.subr.mxu0 %v4915
      %5090 = vmatpush1.msra.mxu0 %v4914
      %5091 = vmatprep.subr.mxu0 %v4913
      %5092 = vmatpush1.msra.mxu0 %v4912
      %5093 = vmatprep.subr.mxu0 %v4911
      %5094 = vmatpush1.msra.mxu0 %v4910
      %5095 = vmatprep.subr.mxu0 %v4909
      %5096 = vmatpush1.msra.mxu0 %v4908
      %5097 = vmatprep.subr.mxu0 %v4971
      %5098 = vmatpush2.msra.mxu0 %v4970
      %5099 = vmatprep.subr.mxu0 %v4969
      %5100 = vmatpush2.msra.mxu0 %v4968
      %5101 = vmatprep.subr.mxu0 %v4967
      %5102 = vmatpush2.msra.mxu0 %v4966
      %5103 = vmatprep.subr.mxu0 %v4965
      %5104 = vmatpush2.msra.mxu0 %v4964
      %5105 = vmatprep.subr.mxu0 %v4963
      %5106 = vmatpush2.msra.mxu0 %v4962
      %5107 = vmatprep.subr.mxu0 %v4961
      %5108 = vmatpush2.msra.mxu0 %v4960
      %5109 = vmatprep.subr.mxu0 %v4959
      %5110 = vmatpush2.msra.mxu0 %v4958
      %5111 = vmatprep.subr.mxu0 %v4957
      %5112 = vmatpush2.msra.mxu0 %v4956
      %5113 = vmatprep.subr.mxu0 %v4955
      %5114 = vmatpush2.msra.mxu0 %v4954
      %5115 = vmatprep.subr.mxu0 %v4953
      %5116 = vmatpush2.msra.mxu0 %v4952
      %5117 = vmatprep.subr.mxu0 %v4951
      %5118 = vmatpush2.msra.mxu0 %v4950
      %5119 = vmatprep.subr.mxu0 %v4949
      %5120 = vmatpush2.msra.mxu0 %v4948
      %5121 = vmatprep.subr.mxu0 %v4947
      %5122 = vmatpush2.msra.mxu0 %v4946
      %5123 = vmatprep.subr.mxu0 %v4945
      %5124 = vmatpush2.msra.mxu0 %v4944
      %5125 = vmatprep.subr.mxu0 %v4943
      %5126 = vmatpush2.msra.mxu0 %v4942
      %5127 = vmatprep.subr.mxu0 %v4941
      %5128 = vmatpush2.msra.mxu0 %v4940
      %5129 = vmatprep.mubr.f32.mxu0 %v4989
      %5130 = vmatmul.mubr.f32.gmra.mxu0 %v4985
      %v5131 = vpop.f32.mrf.mxu0
      %v5132 = vadd.f32 %v5061, %v5131
      %v5133 = vpop.f32.mrf.mxu0
      %v5134 = vadd.f32 %v5063, %v5133
      %5135 = vdwg.mxu0
      %s5136 = sld [smem:[#allocation2]]
      %v5137 = vstv %s5136
      %v5138 = vmul.f32 %v5132, %v5137
      %v5139 = vmul.f32 %v5134, %v5137
      %v5140 = vmul.f32 %v5138, 1.442695
      %v5141 = vpow.pop %v5140
      %v5142 = vmul.f32 %v5139, 1.442695
      %v5143 = vpow.pop %v5142
      %v5144 = vadd.f32 %v5141, 1.0
      %v5145 = vadd.f32 %v5143, 1.0
      %v5146 = vrcp.pop %v5144
      %v5147 = vrcp.pop %v5145
      %v5148 = vmul.f32 %v5146, %v5137
      %v5149 = vmul.f32 %v5147, %v5137
      %5150 = vst [vmem:[%s407] sm:$0xff] %v1496
      %5151 = vst [vmem:[%s407 + $0x8] sm:$0xff] %v1497
      %5152 = vst [vmem:[%s407 + $0x10] sm:$0xff] %v1498
      %5153 = vst [vmem:[%s407 + $0x18] sm:$0xff] %v1499
      %5154 = vst [vmem:[%s407 + $0x20] sm:$0xff] %v1500
      %5155 = vst [vmem:[%s407 + $0x28] sm:$0xff] %v1501
      %5156 = vst [vmem:[%s407 + $0x30] sm:$0xff] %v1502
      %5157 = vst [vmem:[%s407 + $0x38] sm:$0xff] %v1503
      %5158 = vst [vmem:[%s407 + $0x40] sm:$0x1] %v1504
      %5159 = vst [vmem:[%s407 + $0x48] sm:$0x1] %v1505
      %v5162 = vcombine.low %v5148, %v5149
      %v5164 = vunpack.c.l.s4 1966171168
      %v5165 = vunpack.c.0.s8 %v5164
      %v5166 = vlaneseq
      %v5167 = vshrl.u32 %v5166, 7
      %v5168 = vsub.s32 %v5165, %v5167
      %v5169 = vrot.slane %v5162, %v5168
      %v5171 = vunpack.c.l.s4 1966171168
      %v5172 = vunpack.c.0.s8 %v5171
      %v5173 = vlaneseq
      %v5174 = vshrl.u32 %v5173, 7
      %v5175 = vsub.s32 %v5172, %v5174
      %v5176 = vrot.slane %v5169, %v5175
      %v5178 = vlaneseq
      %vm5179 = vcmp.ge.s32.totalorder %v5178, 0
      %vm5180 = vcmp.lt.s32.totalorder %v5178, 256
      %vm5181 = vmand %vm5179, %vm5180
      %s5182 = scalar_lea.vmem %s407, 65
      %5183 = vst.msk [vmem:[%s5182] ss:$8 sm:$0x3] %vm5181, %v5176
      %5184 = vst.msk [vmem:[%s5182] ss:$8 sm:$0x0] %vm5181, %v5176
      %s5185 = smul.u32 2, %s26
      %p5186 = scmp.lt.s32.totalorder %s25, 1
      %s5187 = scalar_select %p5186, %s25, 1
      %p5188 = scmp.lt.s32.totalorder %s5185, 1
      %s5189 = scalar_select %p5188, %s5185, 1
      %s5190 = smul.addr %s5187, 10
      %s5191 = sadd.s32 %s5189, %s5190
      %s5192 = smul.addr %s5191, 8
      %s5193 = scalar_lea.vmem %s9, %s5192
      // Predicated region
      $region57: #{tpu_custom_call.1} parent=55 // pred_check
        %p5194 = pneg %p256
      $region58: #{tpu_custom_call.1} parent=55 // pred_check_branch
        %5196 = sbr.rel (%p5194) target = $region60
      $region59: #{tpu_custom_call.1} parent=55 // pred_region
        %s5197 = smul.u32 2, %s26
      $region60: #{tpu_custom_call.1} parent=55 // pred_fallthru
        _
    $region56: #{tpu_custom_call.1} parent=5 // pred_fallthru
      _
    %p5198 = scmp.le.s32.totalorder 2, %s16
    // Predicated region
    $region61: #{tpu_custom_call.1} parent=5 // pred_check
      %p5199 = pneg %p5198
    $region62: #{tpu_custom_call.1} parent=5 // pred_check_branch
      %5201 = sbr.rel (%p5199) target = $region64
    $region63: #{tpu_custom_call.1} parent=5 // pred_region
      %s5202 = ssub.s32 %s16, 2
      // Predicated region
      $region65: #{tpu_custom_call.1} parent=63 // pred_check
        %p5203 = pneg %p262
      $region66: #{tpu_custom_call.1} parent=63 // pred_check_branch
        %5205 = sbr.rel (%p5203) target = $region68
      $region67: #{tpu_custom_call.1} parent=63 // pred_region
        %s5206 = smul.u32 2, %s28
        %p5207 = scmp.lt.s32.totalorder %s27, 1
        %s5208 = scalar_select %p5207, %s27, 1
        %p5209 = scmp.lt.s32.totalorder %s5206, 1
        %s5210 = scalar_select %p5209, %s5206, 1
        %s5211 = smul.addr %s5208, 10
        %s5212 = sadd.s32 %s5210, %s5211
        %s5213 = smul.addr %s5212, 8
        %s5214 = scalar_lea.vmem %s9, %s5213
      $region68: #{tpu_custom_call.1} parent=63 // pred_fallthru
        _
    $region64: #{tpu_custom_call.1} parent=5 // pred_fallthru
      _
  $region6: #{tpu_custom_call.1} parent=0 // loop_footer
    %s20 = sadd.s32 1, %s16
  $region7: #{tpu_custom_call.1} parent=0 // loop_footer_branch
    %15 = sbr.rel target = $region3
  $region8: #{tpu_custom_call.1} parent=0 // loop_exit
    _

</llo_original>
